<compile_context>
chip_gen: v5e
topology: v5e:2x2
jax: 0.10.0
libtpu: 0.0.40
codegen_flags: <defaults>
</compile_context>

<pallas_src>
import numpy as np
import jax
import jax.numpy as jnp
from jax.experimental import pallas as pl
from jax.experimental.pallas import tpu as pltpu

EPS = 1e-5
LANES = 128      # TPU lane width; only in-VMEM matmul operands are padded to this.


def _pad_to_lanes(c):
    return ((c + LANES - 1) // LANES) * LANES


def _row_tile(m):
    """Row tile for the elementwise tail: one grid step when it fits comfortably (no forced
    2-way split on single-TC chips); cap so very large tails still pipeline / fit VMEM."""
    if m <= 4096:
        return m
    for t in (4096, 2048, 1024, 512, 256, 128, 64, 32, 16, 8):
        if m % t == 0:
            return t
    return m


def _choose_panels(n, ho, wo):
    """Split the ho output rows into panels so the conv grid has >=4 total steps (gives the
    software pipeline something to overlap) while keeping panel_m modest and a multiple of 8
    (legal BlockSpec second-to-last dim)."""
    best = 1
    for p in range(1, ho + 1):
        if ho % p:
            continue
        panel_m = (ho // p) * wo
        if p > 1 and panel_m % 8:
            continue
        best = p
        if n * p >= 4 and panel_m <= 256:
            return p
    return best


# --------------------------- Pallas kernels ---------------------------------

def _make_conv_kernel(k, stride, wo, cin, cout, panel_rows):
    """Direct convolution: one output-row panel per grid step.

    The k*k taps x cin real channels are packed into the matmul K dimension by writing each
    tap's contiguous window into its column slot of a VMEM scratch (mini-im2col in VMEM only,
    no HBM blowup), then a single bf16 MXU pass with f32 accumulation into a second VMEM
    scratch produces the panel.  Per-channel BN sum / sum-of-squares are reduced from that
    scratch in small row chunks (fused stats -> no extra HBM pass over the conv output)."""
    taps = [(dy, dx) for dy in range(k) for dx in range(k)]
    panel_m = panel_rows * wo
    rchunk = 32 if panel_m % 32 == 0 else (8 if panel_m % 8 == 0 else panel_m)

    def kernel(xph_ref, w_ref, y_ref, sum_ref, sq_ref, a_scr, acc_scr):
        p = pl.program_id(1)
        row0 = p * panel_rows

        # mini-im2col in VMEM.  Zero the scratch so the K-padding lanes (>= k*k*cin) hold
        # exact zeros (uninitialised VMEM could be NaN; the matching weight rows are zero).
        a_scr[...] = jnp.zeros(a_scr.shape, a_scr.dtype)
        for t, (dy, dx) in enumerate(taps):
            ph = (dy % stride) * stride + (dx % stride)
            oy, ox = dy // stride, dx // stride
            win = xph_ref[0, ph, pl.ds(row0 + oy, panel_rows), ox:ox + wo, :]
            a_scr[:, t * cin:(t + 1) * cin] = win.reshape(panel_m, cin)

        # ONE MXU pass per panel (bf16 operands, f32 accumulation into VMEM scratch).
        acc_scr[...] = jnp.dot(a_scr[...], w_ref[...],
                               preferred_element_type=jnp.float32)

        # conv output written back in bf16 at REAL channel width (no 128-lane HBM padding).
        y_ref[...] = acc_scr[:, :cout].astype(y_ref.dtype)[None]

        # fused BN statistics, reduced from the VMEM scratch in small row chunks so the full
        # accumulator and its square are never simultaneously live in vregs.
        s = jnp.zeros((1, cout), jnp.float32)
        q = jnp.zeros((1, cout), jnp.float32)
        for r0 in range(0, panel_m, rchunk):
            c = acc_scr[r0:r0 + rchunk, :cout]
            s = s + jnp.sum(c, axis=0, keepdims=True)
            q = q + jnp.sum(c * c, axis=0, keepdims=True)
        sum_ref[...] = s[None, None]
        sq_ref[...] = q[None, None]

    return kernel


def _bn_add_relu_id_kernel(y2_ref, x_ref, s2_ref, b2_ref, o_ref):
    # Identity shortcut at real channel width: relu( bn2(conv2_out) + x ).
    o_ref[...] = jnp.maximum(
        y2_ref[...].astype(jnp.float32) * s2_ref[...] + b2_ref[...] + x_ref[...], 0.0)


def _bn_add_relu_proj_kernel(y2_ref, ysc_ref, s2_ref, b2_ref, ss_ref, bs_ref, o_ref):
    # relu( bn2(conv2_out) + bn_sc(shortcut_conv_out) ), BN folded to per-channel scale/bias.
    o_ref[...] = jnp.maximum(
        y2_ref[...].astype(jnp.float32) * s2_ref[...] + b2_ref[...]
        + ysc_ref[...].astype(jnp.float32) * ss_ref[...] + bs_ref[...], 0.0)


# --------------------------- Pallas wrappers ---------------------------------

def conv_with_stats(xph, w_packed, k, stride, ho, wo, cout, n_panels):
    """xph:      (N, stride*stride, hph, wph, cin) bf16 phased input at REAL channel width.
       w_packed: (KP, COUTP) bf16 K-packed weights (K = k*k*cin, zero-padded to 128 lanes).
       Returns y (N, ho*wo, cout) bf16 plus per-(image, panel) BN partial stats (f32)."""
    n, s2, hph, wph, cin = xph.shape
    kp, coutp = w_packed.shape
    assert s2 == stride * stride and k * k * cin <= kp
    m = ho * wo
    panel_rows = ho // n_panels
    panel_m = panel_rows * wo
    kernel = _make_conv_kernel(k, stride, wo, cin, cout, panel_rows)
    return pl.pallas_call(
        kernel,
        out_shape=(jax.ShapeDtypeStruct((n, m, cout), jnp.bfloat16),
                   jax.ShapeDtypeStruct((n, n_panels, 1, cout), jnp.float32),
                   jax.ShapeDtypeStruct((n, n_panels, 1, cout), jnp.float32)),
        grid=(n, n_panels),
        in_specs=[
            # whole phased image per batch element; identical block index across the panel
            # axis, so it stays VMEM-resident (re-DMA only when the image changes).
            pl.BlockSpec((1, s2, hph, wph, cin), lambda b, p: (b, 0, 0, 0, 0)),
            # packed weights resident across the whole grid.
            pl.BlockSpec((kp, coutp), lambda b, p: (0, 0)),
        ],
        out_specs=(
            pl.BlockSpec((1, panel_m, cout), lambda b, p: (b, p, 0)),
            pl.BlockSpec((1, 1, 1, cout), lambda b, p: (b, p, 0, 0)),
            pl.BlockSpec((1, 1, 1, cout), lambda b, p: (b, p, 0, 0)),
        ),
        scratch_shapes=[pltpu.VMEM((panel_m, kp), jnp.bfloat16),     # K-packed A operand
                        pltpu.VMEM((panel_m, coutp), jnp.float32)],  # f32 matmul accumulator
        compiler_params=pltpu.CompilerParams(
            dimension_semantics=("parallel", "arbitrary"),  # distinct output blocks per step
            # tiny per-step footprint; 32 MiB is safe on every generation incl. v7x (64 MiB).
            vmem_limit_bytes=32 * 1024 * 1024),
    )(xph, w_packed)


def fused_bn_add_relu(y2, shortcut, scale2, bias2, scale_s=None, bias_s=None):
    m, c = y2.shape
    tm = _row_tile(m)
    row = pl.BlockSpec((tm, c), lambda i: (i, 0))
    vec = pl.BlockSpec((1, c), lambda i: (0, 0))
    if scale_s is None:
        kernel, in_specs = _bn_add_relu_id_kernel, [row, row, vec, vec]
        args = (y2, shortcut, scale2, bias2)
    else:
        kernel, in_specs = _bn_add_relu_proj_kernel, [row, row, vec, vec, vec, vec]
        args = (y2, shortcut, scale2, bias2, scale_s, bias_s)
    return pl.pallas_call(
        kernel,
        out_shape=jax.ShapeDtypeStruct((m, c), jnp.float32),
        grid=(m // tm,),
        in_specs=in_specs,
        out_specs=row,
        compiler_params=pltpu.CompilerParams(dimension_semantics=("arbitrary",)),
    )(*args)


# --------------------------- JAX glue ----------------------------------------

def prepare_conv_input(x, k, stride, pad):
    """Spatial zero-pad, cast to bf16 and phase-decompose so the conv kernel only ever reads
    contiguous (unstrided) windows.  Channels stay at REAL width (no 128-lane HBM padding).
    x: (N, H, W, C) -> (N, stride*stride, hph, wph, C) bf16, plus (ho, wo).
    phase(a, b)[i, j, :] == x_padded[stride*i + a, stride*j + b, :]."""
    n, h, w, c = x.shape
    ho = (h + 2 * pad - k) // stride + 1
    wo = (w + 2 * pad - k) // stride + 1
    hph = (k - 1) // stride + ho
    wph = (k - 1) // stride + wo
    need_h, need_w = stride * hph, stride * wph
    xp = x.astype(jnp.bfloat16)
    xp = jnp.pad(xp, ((0, 0),
                      (pad, max(0, need_h - h - pad)),
                      (pad, max(0, need_w - w - pad)),
                      (0, 0)))
    xp = xp[:, :need_h, :need_w, :]
    xph = xp.reshape(n, hph, stride, wph, stride, c)
    xph = xph.transpose(0, 2, 4, 1, 3, 5).reshape(n, stride * stride, hph, wph, c)
    return xph, ho, wo


def pack_weight(wgt, coutp):
    """(kh, kw, Cin, Cout) HWIO -> (KP, coutp) bf16 with the k*k taps and real input channels
    packed into the matmul K dimension (row index = tap*Cin + cin), zero-padded to 128."""
    kh, kw, ci, co = wgt.shape
    kkc = kh * kw * ci
    kp = _pad_to_lanes(kkc)
    wflat = wgt.reshape(kkc, co)
    wflat = jnp.pad(wflat, ((0, kp - kkc), (0, coutp - co)))
    return wflat.astype(jnp.bfloat16)


def bn_fold(psum, psq, count, gamma, beta):
    """Training-mode BN (batch statistics, biased variance) folded to per-channel scale/bias
    from the conv kernel's fused per-(image, panel) partial sums.  Tiny vectors -> plain JAX."""
    s = jnp.sum(psum, axis=(0, 1, 2))
    sq = jnp.sum(psq, axis=(0, 1, 2))
    mean = s / count
    # TODO(synk): E[x^2]-E[x]^2 can cancel for large-mean activations; fine at f32 here.
    var = sq / count - mean * mean
    scale = gamma.astype(jnp.float32) * jax.lax.rsqrt(var + EPS)
    bias = beta.astype(jnp.float32) - mean * scale
    return scale.reshape(1, -1), bias.reshape(1, -1)


def basic_block_forward(x, params, stride=1):
    """x: (N, H, W, Cin) NHWC float32.  Returns (N, Ho, Wo, planes) NHWC float32."""
    n, h, w, cin = x.shape
    w1 = params["conv1_w"]                       # (3, 3, Cin, planes)  HWIO
    planes = w1.shape[-1]
    coutp = _pad_to_lanes(planes)                # MXU N dim (weights only; HBM stays real width)

    # conv1 (+ fused BN1 statistics)
    xph1, ho, wo = prepare_conv_input(x, k=3, stride=stride, pad=1)
    y1, p1s, p1q = conv_with_stats(xph1, pack_weight(w1, coutp), 3, stride, ho, wo,
                                   planes, _choose_panels(n, ho, wo))
    s1, b1 = bn_fold(p1s, p1q, n * ho * wo, params["bn1_gamma"], params["bn1_beta"])

    # bn1 + relu folded into the XLA copy that builds conv2's padded/phased bf16 input.
    # (relu/bias applied BEFORE spatial padding, so the zero halo stays exact.)
    a1 = jnp.maximum(y1.astype(jnp.float32) * s1 + b1, 0.0).reshape(n, ho, wo, planes)
    xph2, ho2, wo2 = prepare_conv_input(a1, k=3, stride=1, pad=1)

    # conv2 (+ fused BN2 statistics)
    y2, p2s, p2q = conv_with_stats(xph2, pack_weight(params["conv2_w"], coutp), 3, 1,
                                   ho2, wo2, planes, _choose_panels(n, ho2, wo2))
    s2, b2 = bn_fold(p2s, p2q, n * ho2 * wo2, params["bn2_gamma"], params["bn2_beta"])

    m = n * ho2 * wo2
    y2f = y2.reshape(m, planes)

    if stride != 1 or cin != planes:
        # projection shortcut: 1x1 stride-s conv (+ fused stats), then fused bn2+bn_sc+add+relu
        xphs, hos, wos = prepare_conv_input(x, k=1, stride=stride, pad=0)
        ysc, pss, psqs = conv_with_stats(xphs, pack_weight(params["sc_w"], coutp), 1, stride,
                                         hos, wos, planes, _choose_panels(n, hos, wos))
        ss, bs = bn_fold(pss, psqs, n * hos * wos, params["sc_gamma"], params["sc_beta"])
        out = fused_bn_add_relu(y2f, ysc.reshape(m, planes), s2, b2, ss, bs)
    else:
        # identity shortcut at real channel width (no 128-lane padded HBM residual copy)
        out = fused_bn_add_relu(y2f, x.reshape(m, cin), s2, b2)

    return out.reshape(n, ho2, wo2, planes)


# --------------------------- reference & setup --------------------------------

def reference_basic_block(x, params, stride=1):
    def conv(v, wgt, st):
        pad = ((1, 1), (1, 1)) if wgt.shape[0] == 3 else ((0, 0), (0, 0))
        return jax.lax.conv_general_dilated(
            v, wgt, window_strides=(st, st), padding=pad,
            dimension_numbers=("NHWC", "HWIO", "NHWC"),
            precision=jax.lax.Precision.HIGHEST)

    def bn(v, gamma, beta):
        mean = jnp.mean(v, axis=(0, 1, 2))
        var = jnp.var(v, axis=(0, 1, 2))
        return (v - mean) * gamma * jax.lax.rsqrt(var + EPS) + beta

    planes = params["conv1_w"].shape[-1]
    out = jax.nn.relu(bn(conv(x, params["conv1_w"], stride),
                         params["bn1_gamma"], params["bn1_beta"]))
    out = bn(conv(out, params["conv2_w"], 1), params["bn2_gamma"], params["bn2_beta"])
    if stride != 1 or x.shape[-1] != planes:
        sc = bn(conv(x, params["sc_w"], stride), params["sc_gamma"], params["sc_beta"])
    else:
        sc = x
    return jax.nn.relu(out + sc)


def make_params(key, in_planes, planes, stride):
    ks = jax.random.split(key, 9)
    p = {
        "conv1_w": jax.random.normal(ks[0], (3, 3, in_planes, planes), jnp.float32)
                   / float(np.sqrt(9 * in_planes)),
        "bn1_gamma": 1.0 + 0.1 * jax.random.normal(ks[1], (planes,), jnp.float32),
        "bn1_beta": 0.1 * jax.random.normal(ks[2], (planes,), jnp.float32),
        "conv2_w": jax.random.normal(ks[3], (3, 3, planes, planes), jnp.float32)
                   / float(np.sqrt(9 * planes)),
        "bn2_gamma": 1.0 + 0.1 * jax.random.normal(ks[4], (planes,), jnp.float32),
        "bn2_beta": 0.1 * jax.random.normal(ks[5], (planes,), jnp.float32),
    }
    if stride != 1 or in_planes != planes:
        p["sc_w"] = jax.random.normal(ks[6], (1, 1, in_planes, planes), jnp.float32) \
                    / float(np.sqrt(in_planes))
        p["sc_gamma"] = 1.0 + 0.1 * jax.random.normal(ks[7], (planes,), jnp.float32)
        p["sc_beta"] = 0.1 * jax.random.normal(ks[8], (planes,), jnp.float32)
    return p


if __name__ == "__main__":
    key = jax.random.PRNGKey(0)
    kx, kp1, kp2 = jax.random.split(key, 3)

    # NHWC input, equivalent to PyTorch NCHW (2, 4, 16, 16)
    x = jax.random.normal(kx, (2, 16, 16, 4), jnp.float32)

    fwd = jax.jit(basic_block_forward, static_argnames=("stride",))

    # bf16 MXU operands + bf16 conv-output writeback (f32 accumulation / f32 BN stats)
    # -> slightly looser tolerance than pure f32.
    TOL = dict(atol=4e-2, rtol=4e-2)

    # 1) identity-shortcut configuration: BasicBlock(4, 4, stride=1)
    params1 = make_params(kp1, in_planes=4, planes=4, stride=1)
    out1 = jax.block_until_ready(fwd(x, params1, stride=1))
    ref1 = reference_basic_block(x, params1, stride=1)
    assert out1.shape == (2, 16, 16, 4)
    assert np.allclose(np.asarray(out1), np.asarray(ref1), **TOL), \
        "identity-shortcut BasicBlock mismatch"

    # 2) projection-shortcut configuration: BasicBlock(4, 8, stride=2)
    params2 = make_params(kp2, in_planes=4, planes=8, stride=2)
    out2 = jax.block_until_ready(fwd(x, params2, stride=2))
    ref2 = reference_basic_block(x, params2, stride=2)
    assert out2.shape == (2, 8, 8, 8)
    assert np.allclose(np.asarray(out2), np.asarray(ref2), **TOL), \
        "projection-shortcut BasicBlock mismatch"

    print("KERNEL_OK")
</pallas_src>

<mosaic_0001>
module attributes {stable_mosaic.version = 11 : i64} {
  func.func @kernel(%arg0: i32, %arg1: i32, %arg2: memref<1x1x18x18x4xbf16, #tpu.memory_space<vmem>>, %arg3: memref<128x128xbf16, #tpu.memory_space<vmem>>, %arg4: memref<1x128x4xbf16, #tpu.memory_space<vmem>>, %arg5: memref<1x1x1x4xf32, #tpu.memory_space<vmem>>, %arg6: memref<1x1x1x4xf32, #tpu.memory_space<vmem>>, %arg7: memref<128x128xbf16, #tpu.memory_space<vmem>>, %arg8: memref<128x128xf32, #tpu.memory_space<vmem>>) attributes {dimension_semantics = [#tpu.dimension_semantics<parallel>, #tpu.dimension_semantics<arbitrary>], iteration_bounds = array<i64: 2, 2>, scalar_prefetch = 0 : i64, scratch_operands = 2 : i64, tpu.core_type = #tpu.core_type<tc>, window_params = [{transform_indices = @transform_0, window_bounds = array<i64: 1, 1, 18, 18, 4>}, {pipeline_mode = #tpu.pipeline_mode<synchronous>, transform_indices = @transform_1, window_bounds = array<i64: 128, 128>}, {transform_indices = @transform_2, window_bounds = array<i64: 1, 128, 4>}, {transform_indices = @transform_3, window_bounds = array<i64: 1, 1, 1, 4>}, {transform_indices = @transform_4, window_bounds = array<i64: 1, 1, 1, 4>}]} {
    %c8_i32 = arith.constant 8 : i32
    %0 = arith.muli %arg1, %c8_i32 : i32
    %cst = arith.constant 0.000000e+00 : bf16
    %1 = vector.broadcast %cst : bf16 to vector<128x128xbf16>
    %c0 = arith.constant 0 : index
    %c0_0 = arith.constant 0 : index
    %2 = vector.load %arg7[%c0, %c0_0] : memref<128x128xbf16, #tpu.memory_space<vmem>>, vector<128x128xbf16>
    tpu.vector_store %arg7[%c0, %c0_0], %1 {strides = array<i32>} : memref<128x128xbf16, #tpu.memory_space<vmem>>, vector<128x128xbf16>,
    %c0_i32 = arith.constant 0 : i32
    %3 = arith.addi %0, %c0_i32 : i32
    %c0_1 = arith.constant 0 : index
    %c0_2 = arith.constant 0 : index
    %4 = arith.index_cast %3 : i32 to index
    %c0_3 = arith.constant 0 : index
    %c0_4 = arith.constant 0 : index
    %5 = vector.load %arg2[%c0_1, %c0_2, %4, %c0_3, %c0_4] : memref<1x1x18x18x4xbf16, #tpu.memory_space<vmem>>, vector<1x1x8x16x4xbf16>
    %6 = vector.shape_cast %5 : vector<1x1x8x16x4xbf16> to vector<8x16x4xbf16>
    %7 = vector.shape_cast %6 : vector<8x16x4xbf16> to vector<128x4xbf16>
    %c0_5 = arith.constant 0 : index
    %c0_6 = arith.constant 0 : index
    %8 = vector.load %arg7[%c0_5, %c0_6] : memref<128x128xbf16, #tpu.memory_space<vmem>>, vector<128x4xbf16>
    tpu.vector_store %arg7[%c0_5, %c0_6], %7 {strides = array<i32>} : memref<128x128xbf16, #tpu.memory_space<vmem>>, vector<128x4xbf16>,
    %c0_i32_7 = arith.constant 0 : i32
    %9 = arith.addi %0, %c0_i32_7 : i32
    %c0_8 = arith.constant 0 : index
    %c0_9 = arith.constant 0 : index
    %10 = arith.index_cast %9 : i32 to index
    %c1 = arith.constant 1 : index
    %c0_10 = arith.constant 0 : index
    %11 = vector.load %arg2[%c0_8, %c0_9, %10, %c1, %c0_10] : memref<1x1x18x18x4xbf16, #tpu.memory_space<vmem>>, vector<1x1x8x16x4xbf16>
    %12 = vector.shape_cast %11 : vector<1x1x8x16x4xbf16> to vector<8x16x4xbf16>
    %13 = vector.shape_cast %12 : vector<8x16x4xbf16> to vector<128x4xbf16>
    %c0_11 = arith.constant 0 : index
    %c4 = arith.constant 4 : index
    %14 = vector.load %arg7[%c0_11, %c4] : memref<128x128xbf16, #tpu.memory_space<vmem>>, vector<128x4xbf16>
    tpu.vector_store %arg7[%c0_11, %c4], %13 {strides = array<i32>} : memref<128x128xbf16, #tpu.memory_space<vmem>>, vector<128x4xbf16>,
    %c0_i32_12 = arith.constant 0 : i32
    %15 = arith.addi %0, %c0_i32_12 : i32
    %c0_13 = arith.constant 0 : index
    %c0_14 = arith.constant 0 : index
    %16 = arith.index_cast %15 : i32 to index
    %c2 = arith.constant 2 : index
    %c0_15 = arith.constant 0 : index
    %17 = vector.load %arg2[%c0_13, %c0_14, %16, %c2, %c0_15] : memref<1x1x18x18x4xbf16, #tpu.memory_space<vmem>>, vector<1x1x8x16x4xbf16>
    %18 = vector.shape_cast %17 : vector<1x1x8x16x4xbf16> to vector<8x16x4xbf16>
    %19 = vector.shape_cast %18 : vector<8x16x4xbf16> to vector<128x4xbf16>
    %c0_16 = arith.constant 0 : index
    %c8 = arith.constant 8 : index
    %20 = vector.load %arg7[%c0_16, %c8] : memref<128x128xbf16, #tpu.memory_space<vmem>>, vector<128x4xbf16>
    tpu.vector_store %arg7[%c0_16, %c8], %19 {strides = array<i32>} : memref<128x128xbf16, #tpu.memory_space<vmem>>, vector<128x4xbf16>,
    %c1_i32 = arith.constant 1 : i32
    %21 = arith.addi %0, %c1_i32 : i32
    %c0_17 = arith.constant 0 : index
    %c0_18 = arith.constant 0 : index
    %22 = arith.index_cast %21 : i32 to index
    %c0_19 = arith.constant 0 : index
    %c0_20 = arith.constant 0 : index
    %23 = vector.load %arg2[%c0_17, %c0_18, %22, %c0_19, %c0_20] : memref<1x1x18x18x4xbf16, #tpu.memory_space<vmem>>, vector<1x1x8x16x4xbf16>
    %24 = vector.shape_cast %23 : vector<1x1x8x16x4xbf16> to vector<8x16x4xbf16>
    %25 = vector.shape_cast %24 : vector<8x16x4xbf16> to vector<128x4xbf16>
    %c0_21 = arith.constant 0 : index
    %c12 = arith.constant 12 : index
    %26 = vector.load %arg7[%c0_21, %c12] : memref<128x128xbf16, #tpu.memory_space<vmem>>, vector<128x4xbf16>
    tpu.vector_store %arg7[%c0_21, %c12], %25 {strides = array<i32>} : memref<128x128xbf16, #tpu.memory_space<vmem>>, vector<128x4xbf16>,
    %c1_i32_22 = arith.constant 1 : i32
    %27 = arith.addi %0, %c1_i32_22 : i32
    %c0_23 = arith.constant 0 : index
    %c0_24 = arith.constant 0 : index
    %28 = arith.index_cast %27 : i32 to index
    %c1_25 = arith.constant 1 : index
    %c0_26 = arith.constant 0 : index
    %29 = vector.load %arg2[%c0_23, %c0_24, %28, %c1_25, %c0_26] : memref<1x1x18x18x4xbf16, #tpu.memory_space<vmem>>, vector<1x1x8x16x4xbf16>
    %30 = vector.shape_cast %29 : vector<1x1x8x16x4xbf16> to vector<8x16x4xbf16>
    %31 = vector.shape_cast %30 : vector<8x16x4xbf16> to vector<128x4xbf16>
    %c0_27 = arith.constant 0 : index
    %c16 = arith.constant 16 : index
    %32 = vector.load %arg7[%c0_27, %c16] : memref<128x128xbf16, #tpu.memory_space<vmem>>, vector<128x4xbf16>
    tpu.vector_store %arg7[%c0_27, %c16], %31 {strides = array<i32>} : memref<128x128xbf16, #tpu.memory_space<vmem>>, vector<128x4xbf16>,
    %c1_i32_28 = arith.constant 1 : i32
    %33 = arith.addi %0, %c1_i32_28 : i32
    %c0_29 = arith.constant 0 : index
    %c0_30 = arith.constant 0 : index
    %34 = arith.index_cast %33 : i32 to index
    %c2_31 = arith.constant 2 : index
    %c0_32 = arith.constant 0 : index
    %35 = vector.load %arg2[%c0_29, %c0_30, %34, %c2_31, %c0_32] : memref<1x1x18x18x4xbf16, #tpu.memory_space<vmem>>, vector<1x1x8x16x4xbf16>
    %36 = vector.shape_cast %35 : vector<1x1x8x16x4xbf16> to vector<8x16x4xbf16>
    %37 = vector.shape_cast %36 : vector<8x16x4xbf16> to vector<128x4xbf16>
    %c0_33 = arith.constant 0 : index
    %c20 = arith.constant 20 : index
    %38 = vector.load %arg7[%c0_33, %c20] : memref<128x128xbf16, #tpu.memory_space<vmem>>, vector<128x4xbf16>
    tpu.vector_store %arg7[%c0_33, %c20], %37 {strides = array<i32>} : memref<128x128xbf16, #tpu.memory_space<vmem>>, vector<128x4xbf16>,
    %c2_i32 = arith.constant 2 : i32
    %39 = arith.addi %0, %c2_i32 : i32
    %c0_34 = arith.constant 0 : index
    %c0_35 = arith.constant 0 : index
    %40 = arith.index_cast %39 : i32 to index
    %c0_36 = arith.constant 0 : index
    %c0_37 = arith.constant 0 : index
    %41 = vector.load %arg2[%c0_34, %c0_35, %40, %c0_36, %c0_37] : memref<1x1x18x18x4xbf16, #tpu.memory_space<vmem>>, vector<1x1x8x16x4xbf16>
    %42 = vector.shape_cast %41 : vector<1x1x8x16x4xbf16> to vector<8x16x4xbf16>
    %43 = vector.shape_cast %42 : vector<8x16x4xbf16> to vector<128x4xbf16>
    %c0_38 = arith.constant 0 : index
    %c24 = arith.constant 24 : index
    %44 = vector.load %arg7[%c0_38, %c24] : memref<128x128xbf16, #tpu.memory_space<vmem>>, vector<128x4xbf16>
    tpu.vector_store %arg7[%c0_38, %c24], %43 {strides = array<i32>} : memref<128x128xbf16, #tpu.memory_space<vmem>>, vector<128x4xbf16>,
    %c2_i32_39 = arith.constant 2 : i32
    %45 = arith.addi %0, %c2_i32_39 : i32
    %c0_40 = arith.constant 0 : index
    %c0_41 = arith.constant 0 : index
    %46 = arith.index_cast %45 : i32 to index
    %c1_42 = arith.constant 1 : index
    %c0_43 = arith.constant 0 : index
    %47 = vector.load %arg2[%c0_40, %c0_41, %46, %c1_42, %c0_43] : memref<1x1x18x18x4xbf16, #tpu.memory_space<vmem>>, vector<1x1x8x16x4xbf16>
    %48 = vector.shape_cast %47 : vector<1x1x8x16x4xbf16> to vector<8x16x4xbf16>
    %49 = vector.shape_cast %48 : vector<8x16x4xbf16> to vector<128x4xbf16>
    %c0_44 = arith.constant 0 : index
    %c28 = arith.constant 28 : index
    %50 = vector.load %arg7[%c0_44, %c28] : memref<128x128xbf16, #tpu.memory_space<vmem>>, vector<128x4xbf16>
    tpu.vector_store %arg7[%c0_44, %c28], %49 {strides = array<i32>} : memref<128x128xbf16, #tpu.memory_space<vmem>>, vector<128x4xbf16>,
    %c2_i32_45 = arith.constant 2 : i32
    %51 = arith.addi %0, %c2_i32_45 : i32
    %c0_46 = arith.constant 0 : index
    %c0_47 = arith.constant 0 : index
    %52 = arith.index_cast %51 : i32 to index
    %c2_48 = arith.constant 2 : index
    %c0_49 = arith.constant 0 : index
    %53 = vector.load %arg2[%c0_46, %c0_47, %52, %c2_48, %c0_49] : memref<1x1x18x18x4xbf16, #tpu.memory_space<vmem>>, vector<1x1x8x16x4xbf16>
    %54 = vector.shape_cast %53 : vector<1x1x8x16x4xbf16> to vector<8x16x4xbf16>
    %55 = vector.shape_cast %54 : vector<8x16x4xbf16> to vector<128x4xbf16>
    %c0_50 = arith.constant 0 : index
    %c32 = arith.constant 32 : index
    %56 = vector.load %arg7[%c0_50, %c32] : memref<128x128xbf16, #tpu.memory_space<vmem>>, vector<128x4xbf16>
    tpu.vector_store %arg7[%c0_50, %c32], %55 {strides = array<i32>} : memref<128x128xbf16, #tpu.memory_space<vmem>>, vector<128x4xbf16>,
    %c0_51 = arith.constant 0 : index
    %c0_52 = arith.constant 0 : index
    %57 = vector.load %arg7[%c0_51, %c0_52] : memref<128x128xbf16, #tpu.memory_space<vmem>>, vector<128x128xbf16>
    %c0_53 = arith.constant 0 : index
    %c0_54 = arith.constant 0 : index
    %58 = vector.load %arg3[%c0_53, %c0_54] : memref<128x128xbf16, #tpu.memory_space<vmem>>, vector<128x128xbf16>
    %cst_55 = arith.constant dense<0.000000e+00> : vector<128x128xf32>
    %59 = tpu.matmul %57, %58, %cst_55 {dimension_numbers = #tpu.dot_dimension_numbers<[1], [0], [0], [1], [0, 0, 1, 1], [], []>} : vector<128x128xbf16>, vector<128x128xbf16>, vector<128x128xf32> -> vector<128x128xf32>
    %c0_56 = arith.constant 0 : index
    %c0_57 = arith.constant 0 : index
    %60 = vector.load %arg8[%c0_56, %c0_57] : memref<128x128xf32, #tpu.memory_space<vmem>>, vector<128x128xf32>
    tpu.vector_store %arg8[%c0_56, %c0_57], %59 {strides = array<i32>} : memref<128x128xf32, #tpu.memory_space<vmem>>, vector<128x128xf32>,
    %c0_58 = arith.constant 0 : index
    %c0_59 = arith.constant 0 : index
    %61 = vector.load %arg8[%c0_58, %c0_59] : memref<128x128xf32, #tpu.memory_space<vmem>>, vector<128x4xf32>
    %62 = arith.truncf %61 : vector<128x4xf32> to vector<128x4xbf16>
    %63 = vector.shape_cast %62 : vector<128x4xbf16> to vector<1x128x4xbf16>
    %c0_60 = arith.constant 0 : index
    %c0_61 = arith.constant 0 : index
    %c0_62 = arith.constant 0 : index
    %64 = vector.load %arg4[%c0_60, %c0_61, %c0_62] : memref<1x128x4xbf16, #tpu.memory_space<vmem>>, vector<1x128x4xbf16>
    tpu.vector_store %arg4[%c0_60, %c0_61, %c0_62], %63 {strides = array<i32>} : memref<1x128x4xbf16, #tpu.memory_space<vmem>>, vector<1x128x4xbf16>,
    %cst_63 = arith.constant 0.000000e+00 : f32
    %65 = vector.broadcast %cst_63 : f32 to vector<1x4xf32>
    %cst_64 = arith.constant 0.000000e+00 : f32
    %66 = vector.broadcast %cst_64 : f32 to vector<1x4xf32>
    %c0_65 = arith.constant 0 : index
    %c0_66 = arith.constant 0 : index
    %67 = vector.load %arg8[%c0_65, %c0_66] : memref<128x128xf32, #tpu.memory_space<vmem>>, vector<32x4xf32>
    %cst_67 = arith.constant dense<0.000000e+00> : vector<4xf32>
    %68 = vector.multi_reduction <add>, %67, %cst_67 [0] : vector<32x4xf32> to vector<4xf32>
    %69 = vector.shape_cast %68 : vector<4xf32> to vector<1x4xf32>
    %70 = arith.addf %65, %69 : vector<1x4xf32>
    %71 = arith.mulf %67, %67 : vector<32x4xf32>
    %cst_68 = arith.constant dense<0.000000e+00> : vector<4xf32>
    %72 = vector.multi_reduction <add>, %71, %cst_68 [0] : vector<32x4xf32> to vector<4xf32>
    %73 = vector.shape_cast %72 : vector<4xf32> to vector<1x4xf32>
    %74 = arith.addf %66, %73 : vector<1x4xf32>
    %c32_69 = arith.constant 32 : index
    %c0_70 = arith.constant 0 : index
    %75 = vector.load %arg8[%c32_69, %c0_70] : memref<128x128xf32, #tpu.memory_space<vmem>>, vector<32x4xf32>
    %cst_71 = arith.constant dense<0.000000e+00> : vector<4xf32>
    %76 = vector.multi_reduction <add>, %75, %cst_71 [0] : vector<32x4xf32> to vector<4xf32>
    %77 = vector.shape_cast %76 : vector<4xf32> to vector<1x4xf32>
    %78 = arith.addf %70, %77 : vector<1x4xf32>
    %79 = arith.mulf %75, %75 : vector<32x4xf32>
    %cst_72 = arith.constant dense<0.000000e+00> : vector<4xf32>
    %80 = vector.multi_reduction <add>, %79, %cst_72 [0] : vector<32x4xf32> to vector<4xf32>
    %81 = vector.shape_cast %80 : vector<4xf32> to vector<1x4xf32>
    %82 = arith.addf %74, %81 : vector<1x4xf32>
    %c64 = arith.constant 64 : index
    %c0_73 = arith.constant 0 : index
    %83 = vector.load %arg8[%c64, %c0_73] : memref<128x128xf32, #tpu.memory_space<vmem>>, vector<32x4xf32>
    %cst_74 = arith.constant dense<0.000000e+00> : vector<4xf32>
    %84 = vector.multi_reduction <add>, %83, %cst_74 [0] : vector<32x4xf32> to vector<4xf32>
    %85 = vector.shape_cast %84 : vector<4xf32> to vector<1x4xf32>
    %86 = arith.addf %78, %85 : vector<1x4xf32>
    %87 = arith.mulf %83, %83 : vector<32x4xf32>
    %cst_75 = arith.constant dense<0.000000e+00> : vector<4xf32>
    %88 = vector.multi_reduction <add>, %87, %cst_75 [0] : vector<32x4xf32> to vector<4xf32>
    %89 = vector.shape_cast %88 : vector<4xf32> to vector<1x4xf32>
    %90 = arith.addf %82, %89 : vector<1x4xf32>
    %c96 = arith.constant 96 : index
    %c0_76 = arith.constant 0 : index
    %91 = vector.load %arg8[%c96, %c0_76] : memref<128x128xf32, #tpu.memory_space<vmem>>, vector<32x4xf32>
    %cst_77 = arith.constant dense<0.000000e+00> : vector<4xf32>
    %92 = vector.multi_reduction <add>, %91, %cst_77 [0] : vector<32x4xf32> to vector<4xf32>
    %93 = vector.shape_cast %92 : vector<4xf32> to vector<1x4xf32>
    %94 = arith.addf %86, %93 : vector<1x4xf32>
    %95 = arith.mulf %91, %91 : vector<32x4xf32>
    %cst_78 = arith.constant dense<0.000000e+00> : vector<4xf32>
    %96 = vector.multi_reduction <add>, %95, %cst_78 [0] : vector<32x4xf32> to vector<4xf32>
    %97 = vector.shape_cast %96 : vector<4xf32> to vector<1x4xf32>
    %98 = arith.addf %90, %97 : vector<1x4xf32>
    %99 = vector.shape_cast %94 : vector<1x4xf32> to vector<1x1x1x4xf32>
    %c0_79 = arith.constant 0 : index
    %c0_80 = arith.constant 0 : index
    %c0_81 = arith.constant 0 : index
    %c0_82 = arith.constant 0 : index
    %100 = vector.load %arg5[%c0_79, %c0_80, %c0_81, %c0_82] : memref<1x1x1x4xf32, #tpu.memory_space<vmem>>, vector<1x1x1x4xf32>
    tpu.vector_store %arg5[%c0_79, %c0_80, %c0_81, %c0_82], %99 {strides = array<i32>} : memref<1x1x1x4xf32, #tpu.memory_space<vmem>>, vector<1x1x1x4xf32>,
    %101 = vector.shape_cast %98 : vector<1x4xf32> to vector<1x1x1x4xf32>
    %c0_83 = arith.constant 0 : index
    %c0_84 = arith.constant 0 : index
    %c0_85 = arith.constant 0 : index
    %c0_86 = arith.constant 0 : index
    %102 = vector.load %arg6[%c0_83, %c0_84, %c0_85, %c0_86] : memref<1x1x1x4xf32, #tpu.memory_space<vmem>>, vector<1x1x1x4xf32>
    tpu.vector_store %arg6[%c0_83, %c0_84, %c0_85, %c0_86], %101 {strides = array<i32>} : memref<1x1x1x4xf32, #tpu.memory_space<vmem>>, vector<1x1x1x4xf32>,
    return
  }
  func.func @transform_0(%arg0: i32, %arg1: i32) -> (i32, i32, i32, i32, i32) {
    %c0_i32 = arith.constant 0 : i32
    %c0_i32_0 = arith.constant 0 : i32
    %c0_i32_1 = arith.constant 0 : i32
    %c0_i32_2 = arith.constant 0 : i32
    %c0_i32_3 = arith.constant 0 : i32
    return %arg0, %c0_i32, %c0_i32_0, %c0_i32_1, %c0_i32_2 : i32, i32, i32, i32, i32
  }
  func.func @transform_1(%arg0: i32, %arg1: i32) -> (i32, i32) {
    %c0_i32 = arith.constant 0 : i32
    %c0_i32_0 = arith.constant 0 : i32
    %c0_i32_1 = arith.constant 0 : i32
    return %c0_i32, %c0_i32_0 : i32, i32
  }
  func.func @transform_2(%arg0: i32, %arg1: i32) -> (i32, i32, i32) {
    %c0_i32 = arith.constant 0 : i32
    %c0_i32_0 = arith.constant 0 : i32
    return %arg0, %arg1, %c0_i32 : i32, i32, i32
  }
  func.func @transform_3(%arg0: i32, %arg1: i32) -> (i32, i32, i32, i32) {
    %c0_i32 = arith.constant 0 : i32
    %c0_i32_0 = arith.constant 0 : i32
    %c0_i32_1 = arith.constant 0 : i32
    return %arg0, %arg1, %c0_i32, %c0_i32_0 : i32, i32, i32, i32
  }
  func.func @transform_4(%arg0: i32, %arg1: i32) -> (i32, i32, i32, i32) {
    %c0_i32 = arith.constant 0 : i32
    %c0_i32_0 = arith.constant 0 : i32
    %c0_i32_1 = arith.constant 0 : i32
    return %arg0, %arg1, %c0_i32, %c0_i32_0 : i32, i32, i32, i32
  }
}

module attributes {stable_mosaic.version = 11 : i64} {
  func.func @_bn_add_relu_id_kernel(%arg0: i32, %arg1: memref<512x4xbf16, #tpu.memory_space<vmem>>, %arg2: memref<512x4xf32, #tpu.memory_space<vmem>>, %arg3: memref<1x4xf32, #tpu.memory_space<vmem>>, %arg4: memref<1x4xf32, #tpu.memory_space<vmem>>, %arg5: memref<512x4xf32, #tpu.memory_space<vmem>>) attributes {dimension_semantics = [#tpu.dimension_semantics<arbitrary>], iteration_bounds = array<i64: 1>, scalar_prefetch = 0 : i64, scratch_operands = 0 : i64, tpu.core_type = #tpu.core_type<tc>, window_params = [{transform_indices = @transform_0, window_bounds = array<i64: 512, 4>}, {transform_indices = @transform_1, window_bounds = array<i64: 512, 4>}, {pipeline_mode = #tpu.pipeline_mode<synchronous>, transform_indices = @transform_2, window_bounds = array<i64: 1, 4>}, {pipeline_mode = #tpu.pipeline_mode<synchronous>, transform_indices = @transform_3, window_bounds = array<i64: 1, 4>}, {transform_indices = @transform_4, window_bounds = array<i64: 512, 4>}]} {
    %c0 = arith.constant 0 : index
    %c0_0 = arith.constant 0 : index
    %0 = vector.load %arg1[%c0, %c0_0] : memref<512x4xbf16, #tpu.memory_space<vmem>>, vector<512x4xbf16>
    %1 = arith.extf %0 : vector<512x4xbf16> to vector<512x4xf32>
    %c0_1 = arith.constant 0 : index
    %c0_2 = arith.constant 0 : index
    %2 = vector.load %arg3[%c0_1, %c0_2] : memref<1x4xf32, #tpu.memory_space<vmem>>, vector<1x4xf32>
    %3 = vector.broadcast %2 : vector<1x4xf32> to vector<512x4xf32>
    %4 = arith.mulf %1, %3 : vector<512x4xf32>
    %c0_3 = arith.constant 0 : index
    %c0_4 = arith.constant 0 : index
    %5 = vector.load %arg4[%c0_3, %c0_4] : memref<1x4xf32, #tpu.memory_space<vmem>>, vector<1x4xf32>
    %6 = vector.broadcast %5 : vector<1x4xf32> to vector<512x4xf32>
    %7 = arith.addf %4, %6 : vector<512x4xf32>
    %c0_5 = arith.constant 0 : index
    %c0_6 = arith.constant 0 : index
    %8 = vector.load %arg2[%c0_5, %c0_6] : memref<512x4xf32, #tpu.memory_space<vmem>>, vector<512x4xf32>
    %9 = arith.addf %7, %8 : vector<512x4xf32>
    %cst = arith.constant 0.000000e+00 : f32
    %10 = vector.broadcast %cst : f32 to vector<512x4xf32>
    %11 = arith.maximumf %9, %10 : vector<512x4xf32>
    %c0_7 = arith.constant 0 : index
    %c0_8 = arith.constant 0 : index
    %12 = vector.load %arg5[%c0_7, %c0_8] : memref<512x4xf32, #tpu.memory_space<vmem>>, vector<512x4xf32>
    tpu.vector_store %arg5[%c0_7, %c0_8], %11 {strides = array<i32>} : memref<512x4xf32, #tpu.memory_space<vmem>>, vector<512x4xf32>,
    return
  }
  func.func @transform_0(%arg0: i32) -> (i32, i32) {
    %c0_i32 = arith.constant 0 : i32
    %c0_i32_0 = arith.constant 0 : i32
    return %arg0, %c0_i32 : i32, i32
  }
  func.func @transform_1(%arg0: i32) -> (i32, i32) {
    %c0_i32 = arith.constant 0 : i32
    %c0_i32_0 = arith.constant 0 : i32
    return %arg0, %c0_i32 : i32, i32
  }
  func.func @transform_2(%arg0: i32) -> (i32, i32) {
    %c0_i32 = arith.constant 0 : i32
    %c0_i32_0 = arith.constant 0 : i32
    %c0_i32_1 = arith.constant 0 : i32
    return %c0_i32, %c0_i32_0 : i32, i32
  }
  func.func @transform_3(%arg0: i32) -> (i32, i32) {
    %c0_i32 = arith.constant 0 : i32
    %c0_i32_0 = arith.constant 0 : i32
    %c0_i32_1 = arith.constant 0 : i32
    return %c0_i32, %c0_i32_0 : i32, i32
  }
  func.func @transform_4(%arg0: i32) -> (i32, i32) {
    %c0_i32 = arith.constant 0 : i32
    %c0_i32_0 = arith.constant 0 : i32
    return %arg0, %c0_i32 : i32, i32
  }
}

</mosaic_0001>

<llo_original>
// kernel: basic_block_forward.5
$region0: #{basic_block_forward.5}
  #allocation0 [shape = 'u32[]', space=smem, size = 0x4, offset = 0x4, fixed_abs, tag = 'smem constant byte address 0x4 - core index']
  #allocation1 [shape = 'u32[72,128]{1,0:T(1,128)}', space=vmem, size = 0x9000, scoped, tag = 'internal scratch']
  %s0 = inlined_call_operand.vmem [shape: bf16[512,4], index: 0, kind: input, shape index: {}]
  %s1 = inlined_call_operand.vmem [shape: f32[512,4], index: 1, kind: input, shape index: {}]
  %s2 = inlined_call_operand.vmem [shape: f32[1,4], index: 2, kind: input, shape index: {}]
  %s3 = inlined_call_operand.vmem [shape: f32[1,4], index: 3, kind: input, shape index: {}]
  %s4 = inlined_call_operand.vmem [shape: f32[512,4], index: 4, kind: output, shape index: {}]
  %s5 = sld [smem:[#allocation0]]
  $region26: #{basic_block_forward.5} parent=0
    _
  %s7 = ssub.s32 1, %s5
  %s8 = scalar_select 0, %s7, %s5
  // Predicated region
  $region2: #{basic_block_forward.5} parent=0 // pred_check
    _
  $region3: #{basic_block_forward.5} parent=0 // pred_check_branch
    %10 = sbr.rel (0) target = $region5
  $region4: #{basic_block_forward.5} parent=0 // pred_region
    _
  $region5: #{basic_block_forward.5} parent=0 // pred_fallthru
    _
  // Predicated region
  $region6: #{basic_block_forward.5} parent=0 // pred_check
    _
  $region7: #{basic_block_forward.5} parent=0 // pred_check_branch
    %12 = sbr.rel (0) target = $region9
  $region8: #{basic_block_forward.5} parent=0 // pred_region
    _
  $region9: #{basic_block_forward.5} parent=0 // pred_fallthru
    _
  // Predicated region
  $region10: #{basic_block_forward.5} parent=0 // pred_check
    _
  $region11: #{basic_block_forward.5} parent=0 // pred_check_branch
    %14 = sbr.rel (0) target = $region13
  $region12: #{basic_block_forward.5} parent=0 // pred_region
    _
  $region13: #{basic_block_forward.5} parent=0 // pred_fallthru
    _
  // Predicated region
  $region14: #{basic_block_forward.5} parent=0 // pred_check
    _
  $region15: #{basic_block_forward.5} parent=0 // pred_check_branch
    %16 = sbr.rel (0) target = $region17
  $region16: #{basic_block_forward.5} parent=0 // pred_region
    _
  $region17: #{basic_block_forward.5} parent=0 // pred_fallthru
    _
  %v17 = vld [vmem:[%s0] sm:$0xf]
  %v18 = vld [vmem:[%s0 + $0x4] sm:$0xf]
  %v19 = vld [vmem:[%s0 + $0x8] sm:$0xf]
  %v20 = vld [vmem:[%s0 + $0xc] sm:$0xf]
  %v21 = vld [vmem:[%s0 + $0x10] sm:$0xf]
  %v22 = vld [vmem:[%s0 + $0x14] sm:$0xf]
  %v23 = vld [vmem:[%s0 + $0x18] sm:$0xf]
  %v24 = vld [vmem:[%s0 + $0x1c] sm:$0xf]
  %v25 = vld [vmem:[%s0 + $0x20] sm:$0xf]
  %v26 = vld [vmem:[%s0 + $0x24] sm:$0xf]
  %v27 = vld [vmem:[%s0 + $0x28] sm:$0xf]
  %v28 = vld [vmem:[%s0 + $0x2c] sm:$0xf]
  %v29 = vld [vmem:[%s0 + $0x30] sm:$0xf]
  %v30 = vld [vmem:[%s0 + $0x34] sm:$0xf]
  %v31 = vld [vmem:[%s0 + $0x38] sm:$0xf]
  %v32 = vld [vmem:[%s0 + $0x3c] sm:$0xf]
  %v33 = vld [vmem:[%s0 + $0x40] sm:$0xf]
  %v34 = vld [vmem:[%s0 + $0x44] sm:$0xf]
  %v35 = vld [vmem:[%s0 + $0x48] sm:$0xf]
  %v36 = vld [vmem:[%s0 + $0x4c] sm:$0xf]
  %v37 = vld [vmem:[%s0 + $0x50] sm:$0xf]
  %v38 = vld [vmem:[%s0 + $0x54] sm:$0xf]
  %v39 = vld [vmem:[%s0 + $0x58] sm:$0xf]
  %v40 = vld [vmem:[%s0 + $0x5c] sm:$0xf]
  %v41 = vld [vmem:[%s0 + $0x60] sm:$0xf]
  %v42 = vld [vmem:[%s0 + $0x64] sm:$0xf]
  %v43 = vld [vmem:[%s0 + $0x68] sm:$0xf]
  %v44 = vld [vmem:[%s0 + $0x6c] sm:$0xf]
  %v45 = vld [vmem:[%s0 + $0x70] sm:$0xf]
  %v46 = vld [vmem:[%s0 + $0x74] sm:$0xf]
  %v47 = vld [vmem:[%s0 + $0x78] sm:$0xf]
  %v48 = vld [vmem:[%s0 + $0x7c] sm:$0xf]
  %v49 = vld [vmem:[%s0 + $0x80] sm:$0xf]
  %v50 = vld [vmem:[%s0 + $0x84] sm:$0xf]
  %v51 = vld [vmem:[%s0 + $0x88] sm:$0xf]
  %v52 = vld [vmem:[%s0 + $0x8c] sm:$0xf]
  %v53 = vld [vmem:[%s0 + $0x90] sm:$0xf]
  %v54 = vld [vmem:[%s0 + $0x94] sm:$0xf]
  %v55 = vld [vmem:[%s0 + $0x98] sm:$0xf]
  %v56 = vld [vmem:[%s0 + $0x9c] sm:$0xf]
  %v57 = vld [vmem:[%s0 + $0xa0] sm:$0xf]
  %v58 = vld [vmem:[%s0 + $0xa4] sm:$0xf]
  %v59 = vld [vmem:[%s0 + $0xa8] sm:$0xf]
  %v60 = vld [vmem:[%s0 + $0xac] sm:$0xf]
  %v61 = vld [vmem:[%s0 + $0xb0] sm:$0xf]
  %v62 = vld [vmem:[%s0 + $0xb4] sm:$0xf]
  %v63 = vld [vmem:[%s0 + $0xb8] sm:$0xf]
  %v64 = vld [vmem:[%s0 + $0xbc] sm:$0xf]
  %v65 = vld [vmem:[%s0 + $0xc0] sm:$0xf]
  %v66 = vld [vmem:[%s0 + $0xc4] sm:$0xf]
  %v67 = vld [vmem:[%s0 + $0xc8] sm:$0xf]
  %v68 = vld [vmem:[%s0 + $0xcc] sm:$0xf]
  %v69 = vld [vmem:[%s0 + $0xd0] sm:$0xf]
  %v70 = vld [vmem:[%s0 + $0xd4] sm:$0xf]
  %v71 = vld [vmem:[%s0 + $0xd8] sm:$0xf]
  %v72 = vld [vmem:[%s0 + $0xdc] sm:$0xf]
  %v73 = vld [vmem:[%s0 + $0xe0] sm:$0xf]
  %v74 = vld [vmem:[%s0 + $0xe4] sm:$0xf]
  %v75 = vld [vmem:[%s0 + $0xe8] sm:$0xf]
  %v76 = vld [vmem:[%s0 + $0xec] sm:$0xf]
  %v77 = vld [vmem:[%s0 + $0xf0] sm:$0xf]
  %v78 = vld [vmem:[%s0 + $0xf4] sm:$0xf]
  %v79 = vld [vmem:[%s0 + $0xf8] sm:$0xf]
  %v80 = vld [vmem:[%s0 + $0xfc] sm:$0xf]
  %v81 = vunpack.c.l.bf16 %v17
  %v82 = vunpack.c.l.bf16 %v18
  %v83 = vunpack.c.l.bf16 %v19
  %v84 = vunpack.c.l.bf16 %v20
  %v85 = vunpack.c.l.bf16 %v21
  %v86 = vunpack.c.l.bf16 %v22
  %v87 = vunpack.c.l.bf16 %v23
  %v88 = vunpack.c.l.bf16 %v24
  %v89 = vunpack.c.l.bf16 %v25
  %v90 = vunpack.c.l.bf16 %v26
  %v91 = vunpack.c.l.bf16 %v27
  %v92 = vunpack.c.l.bf16 %v28
  %v93 = vunpack.c.l.bf16 %v29
  %v94 = vunpack.c.l.bf16 %v30
  %v95 = vunpack.c.l.bf16 %v31
  %v96 = vunpack.c.l.bf16 %v32
  %v97 = vunpack.c.l.bf16 %v33
  %v98 = vunpack.c.l.bf16 %v34
  %v99 = vunpack.c.l.bf16 %v35
  %v100 = vunpack.c.l.bf16 %v36
  %v101 = vunpack.c.l.bf16 %v37
  %v102 = vunpack.c.l.bf16 %v38
  %v103 = vunpack.c.l.bf16 %v39
  %v104 = vunpack.c.l.bf16 %v40
  %v105 = vunpack.c.l.bf16 %v41
  %v106 = vunpack.c.l.bf16 %v42
  %v107 = vunpack.c.l.bf16 %v43
  %v108 = vunpack.c.l.bf16 %v44
  %v109 = vunpack.c.l.bf16 %v45
  %v110 = vunpack.c.l.bf16 %v46
  %v111 = vunpack.c.l.bf16 %v47
  %v112 = vunpack.c.l.bf16 %v48
  %v113 = vunpack.c.l.bf16 %v49
  %v114 = vunpack.c.l.bf16 %v50
  %v115 = vunpack.c.l.bf16 %v51
  %v116 = vunpack.c.l.bf16 %v52
  %v117 = vunpack.c.l.bf16 %v53
  %v118 = vunpack.c.l.bf16 %v54
  %v119 = vunpack.c.l.bf16 %v55
  %v120 = vunpack.c.l.bf16 %v56
  %v121 = vunpack.c.l.bf16 %v57
  %v122 = vunpack.c.l.bf16 %v58
  %v123 = vunpack.c.l.bf16 %v59
  %v124 = vunpack.c.l.bf16 %v60
  %v125 = vunpack.c.l.bf16 %v61
  %v126 = vunpack.c.l.bf16 %v62
  %v127 = vunpack.c.l.bf16 %v63
  %v128 = vunpack.c.l.bf16 %v64
  %v129 = vunpack.c.l.bf16 %v65
  %v130 = vunpack.c.l.bf16 %v66
  %v131 = vunpack.c.l.bf16 %v67
  %v132 = vunpack.c.l.bf16 %v68
  %v133 = vunpack.c.l.bf16 %v69
  %v134 = vunpack.c.l.bf16 %v70
  %v135 = vunpack.c.l.bf16 %v71
  %v136 = vunpack.c.l.bf16 %v72
  %v137 = vunpack.c.l.bf16 %v73
  %v138 = vunpack.c.l.bf16 %v74
  %v139 = vunpack.c.l.bf16 %v75
  %v140 = vunpack.c.l.bf16 %v76
  %v141 = vunpack.c.l.bf16 %v77
  %v142 = vunpack.c.l.bf16 %v78
  %v143 = vunpack.c.l.bf16 %v79
  %v144 = vunpack.c.l.bf16 %v80
  %v145 = vld [vmem:[%s2] sm:$0x1]
  %v147 = vperm.slane %v145, 0
  %v149 = vmul.f32 %v81, %v147
  %v150 = vmul.f32 %v82, %v147
  %v151 = vmul.f32 %v83, %v147
  %v152 = vmul.f32 %v84, %v147
  %v153 = vmul.f32 %v85, %v147
  %v154 = vmul.f32 %v86, %v147
  %v155 = vmul.f32 %v87, %v147
  %v156 = vmul.f32 %v88, %v147
  %v157 = vmul.f32 %v89, %v147
  %v158 = vmul.f32 %v90, %v147
  %v159 = vmul.f32 %v91, %v147
  %v160 = vmul.f32 %v92, %v147
  %v161 = vmul.f32 %v93, %v147
  %v162 = vmul.f32 %v94, %v147
  %v163 = vmul.f32 %v95, %v147
  %v164 = vmul.f32 %v96, %v147
  %v165 = vmul.f32 %v97, %v147
  %v166 = vmul.f32 %v98, %v147
  %v167 = vmul.f32 %v99, %v147
  %v168 = vmul.f32 %v100, %v147
  %v169 = vmul.f32 %v101, %v147
  %v170 = vmul.f32 %v102, %v147
  %v171 = vmul.f32 %v103, %v147
  %v172 = vmul.f32 %v104, %v147
  %v173 = vmul.f32 %v105, %v147
  %v174 = vmul.f32 %v106, %v147
  %v175 = vmul.f32 %v107, %v147
  %v176 = vmul.f32 %v108, %v147
  %v177 = vmul.f32 %v109, %v147
  %v178 = vmul.f32 %v110, %v147
  %v179 = vmul.f32 %v111, %v147
  %v180 = vmul.f32 %v112, %v147
  %v181 = vmul.f32 %v113, %v147
  %v182 = vmul.f32 %v114, %v147
  %v183 = vmul.f32 %v115, %v147
  %v184 = vmul.f32 %v116, %v147
  %v185 = vmul.f32 %v117, %v147
  %v186 = vmul.f32 %v118, %v147
  %v187 = vmul.f32 %v119, %v147
  %v188 = vmul.f32 %v120, %v147
  %v189 = vmul.f32 %v121, %v147
  %v190 = vmul.f32 %v122, %v147
  %v191 = vmul.f32 %v123, %v147
  %v192 = vmul.f32 %v124, %v147
  %v193 = vmul.f32 %v125, %v147
  %v194 = vmul.f32 %v126, %v147
  %v195 = vmul.f32 %v127, %v147
  %v196 = vmul.f32 %v128, %v147
  %v197 = vmul.f32 %v129, %v147
  %v198 = vmul.f32 %v130, %v147
  %v199 = vmul.f32 %v131, %v147
  %v200 = vmul.f32 %v132, %v147
  %v201 = vmul.f32 %v133, %v147
  %v202 = vmul.f32 %v134, %v147
  %v203 = vmul.f32 %v135, %v147
  %v204 = vmul.f32 %v136, %v147
  %v205 = vmul.f32 %v137, %v147
  %v206 = vmul.f32 %v138, %v147
  %v207 = vmul.f32 %v139, %v147
  %v208 = vmul.f32 %v140, %v147
  %v209 = vmul.f32 %v141, %v147
  %v210 = vmul.f32 %v142, %v147
  %v211 = vmul.f32 %v143, %v147
  %v212 = vmul.f32 %v144, %v147
  %v213 = vld [vmem:[%s3] sm:$0x1]
  %v215 = vperm.slane %v213, 0
  %v217 = vadd.f32 %v149, %v215
  %v218 = vadd.f32 %v150, %v215
  %v219 = vadd.f32 %v151, %v215
  %v220 = vadd.f32 %v152, %v215
  %v221 = vadd.f32 %v153, %v215
  %v222 = vadd.f32 %v154, %v215
  %v223 = vadd.f32 %v155, %v215
  %v224 = vadd.f32 %v156, %v215
  %v225 = vadd.f32 %v157, %v215
  %v226 = vadd.f32 %v158, %v215
  %v227 = vadd.f32 %v159, %v215
  %v228 = vadd.f32 %v160, %v215
  %v229 = vadd.f32 %v161, %v215
  %v230 = vadd.f32 %v162, %v215
  %v231 = vadd.f32 %v163, %v215
  %v232 = vadd.f32 %v164, %v215
  %v233 = vadd.f32 %v165, %v215
  %v234 = vadd.f32 %v166, %v215
  %v235 = vadd.f32 %v167, %v215
  %v236 = vadd.f32 %v168, %v215
  %v237 = vadd.f32 %v169, %v215
  %v238 = vadd.f32 %v170, %v215
  %v239 = vadd.f32 %v171, %v215
  %v240 = vadd.f32 %v172, %v215
  %v241 = vadd.f32 %v173, %v215
  %v242 = vadd.f32 %v174, %v215
  %v243 = vadd.f32 %v175, %v215
  %v244 = vadd.f32 %v176, %v215
  %v245 = vadd.f32 %v177, %v215
  %v246 = vadd.f32 %v178, %v215
  %v247 = vadd.f32 %v179, %v215
  %v248 = vadd.f32 %v180, %v215
  %v249 = vadd.f32 %v181, %v215
  %v250 = vadd.f32 %v182, %v215
  %v251 = vadd.f32 %v183, %v215
  %v252 = vadd.f32 %v184, %v215
  %v253 = vadd.f32 %v185, %v215
  %v254 = vadd.f32 %v186, %v215
  %v255 = vadd.f32 %v187, %v215
  %v256 = vadd.f32 %v188, %v215
  %v257 = vadd.f32 %v189, %v215
  %v258 = vadd.f32 %v190, %v215
  %v259 = vadd.f32 %v191, %v215
  %v260 = vadd.f32 %v192, %v215
  %v261 = vadd.f32 %v193, %v215
  %v262 = vadd.f32 %v194, %v215
  %v263 = vadd.f32 %v195, %v215
  %v264 = vadd.f32 %v196, %v215
  %v265 = vadd.f32 %v197, %v215
  %v266 = vadd.f32 %v198, %v215
  %v267 = vadd.f32 %v199, %v215
  %v268 = vadd.f32 %v200, %v215
  %v269 = vadd.f32 %v201, %v215
  %v270 = vadd.f32 %v202, %v215
  %v271 = vadd.f32 %v203, %v215
  %v272 = vadd.f32 %v204, %v215
  %v273 = vadd.f32 %v205, %v215
  %v274 = vadd.f32 %v206, %v215
  %v275 = vadd.f32 %v207, %v215
  %v276 = vadd.f32 %v208, %v215
  %v277 = vadd.f32 %v209, %v215
  %v278 = vadd.f32 %v210, %v215
  %v279 = vadd.f32 %v211, %v215
  %v280 = vadd.f32 %v212, %v215
  %v281 = vld [vmem:[%s1] sm:$0xff]
  %v282 = vld [vmem:[%s1 + $0x8] sm:$0xff]
  %v283 = vld [vmem:[%s1 + $0x10] sm:$0xff]
  %v284 = vld [vmem:[%s1 + $0x18] sm:$0xff]
  %v285 = vld [vmem:[%s1 + $0x20] sm:$0xff]
  %v286 = vld [vmem:[%s1 + $0x28] sm:$0xff]
  %v287 = vld [vmem:[%s1 + $0x30] sm:$0xff]
  %v288 = vld [vmem:[%s1 + $0x38] sm:$0xff]
  %v289 = vld [vmem:[%s1 + $0x40] sm:$0xff]
  %v290 = vld [vmem:[%s1 + $0x48] sm:$0xff]
  %v291 = vld [vmem:[%s1 + $0x50] sm:$0xff]
  %v292 = vld [vmem:[%s1 + $0x58] sm:$0xff]
  %v293 = vld [vmem:[%s1 + $0x60] sm:$0xff]
  %v294 = vld [vmem:[%s1 + $0x68] sm:$0xff]
  %v295 = vld [vmem:[%s1 + $0x70] sm:$0xff]
  %v296 = vld [vmem:[%s1 + $0x78] sm:$0xff]
  %v297 = vld [vmem:[%s1 + $0x80] sm:$0xff]
  %v298 = vld [vmem:[%s1 + $0x88] sm:$0xff]
  %v299 = vld [vmem:[%s1 + $0x90] sm:$0xff]
  %v300 = vld [vmem:[%s1 + $0x98] sm:$0xff]
  %v301 = vld [vmem:[%s1 + $0xa0] sm:$0xff]
  %v302 = vld [vmem:[%s1 + $0xa8] sm:$0xff]
  %v303 = vld [vmem:[%s1 + $0xb0] sm:$0xff]
  %v304 = vld [vmem:[%s1 + $0xb8] sm:$0xff]
  %v305 = vld [vmem:[%s1 + $0xc0] sm:$0xff]
  %v306 = vld [vmem:[%s1 + $0xc8] sm:$0xff]
  %v307 = vld [vmem:[%s1 + $0xd0] sm:$0xff]
  %v308 = vld [vmem:[%s1 + $0xd8] sm:$0xff]
  %v309 = vld [vmem:[%s1 + $0xe0] sm:$0xff]
  %v310 = vld [vmem:[%s1 + $0xe8] sm:$0xff]
  %v311 = vld [vmem:[%s1 + $0xf0] sm:$0xff]
  %v312 = vld [vmem:[%s1 + $0xf8] sm:$0xff]
  %v313 = vld [vmem:[%s1 + $0x100] sm:$0xff]
  %v314 = vld [vmem:[%s1 + $0x108] sm:$0xff]
  %v315 = vld [vmem:[%s1 + $0x110] sm:$0xff]
  %v316 = vld [vmem:[%s1 + $0x118] sm:$0xff]
  %v317 = vld [vmem:[%s1 + $0x120] sm:$0xff]
  %v318 = vld [vmem:[%s1 + $0x128] sm:$0xff]
  %v319 = vld [vmem:[%s1 + $0x130] sm:$0xff]
  %v320 = vld [vmem:[%s1 + $0x138] sm:$0xff]
  %v321 = vld [vmem:[%s1 + $0x140] sm:$0xff]
  %v322 = vld [vmem:[%s1 + $0x148] sm:$0xff]
  %v323 = vld [vmem:[%s1 + $0x150] sm:$0xff]
  %v324 = vld [vmem:[%s1 + $0x158] sm:$0xff]
  %v325 = vld [vmem:[%s1 + $0x160] sm:$0xff]
  %v326 = vld [vmem:[%s1 + $0x168] sm:$0xff]
  %v327 = vld [vmem:[%s1 + $0x170] sm:$0xff]
  %v328 = vld [vmem:[%s1 + $0x178] sm:$0xff]
  %v329 = vld [vmem:[%s1 + $0x180] sm:$0xff]
  %v330 = vld [vmem:[%s1 + $0x188] sm:$0xff]
  %v331 = vld [vmem:[%s1 + $0x190] sm:$0xff]
  %v332 = vld [vmem:[%s1 + $0x198] sm:$0xff]
  %v333 = vld [vmem:[%s1 + $0x1a0] sm:$0xff]
  %v334 = vld [vmem:[%s1 + $0x1a8] sm:$0xff]
  %v335 = vld [vmem:[%s1 + $0x1b0] sm:$0xff]
  %v336 = vld [vmem:[%s1 + $0x1b8] sm:$0xff]
  %v337 = vld [vmem:[%s1 + $0x1c0] sm:$0xff]
  %v338 = vld [vmem:[%s1 + $0x1c8] sm:$0xff]
  %v339 = vld [vmem:[%s1 + $0x1d0] sm:$0xff]
  %v340 = vld [vmem:[%s1 + $0x1d8] sm:$0xff]
  %v341 = vld [vmem:[%s1 + $0x1e0] sm:$0xff]
  %v342 = vld [vmem:[%s1 + $0x1e8] sm:$0xff]
  %v343 = vld [vmem:[%s1 + $0x1f0] sm:$0xff]
  %v344 = vld [vmem:[%s1 + $0x1f8] sm:$0xff]
  %v345 = vadd.f32 %v217, %v281
  %v346 = vadd.f32 %v218, %v282
  %v347 = vadd.f32 %v219, %v283
  %v348 = vadd.f32 %v220, %v284
  %v349 = vadd.f32 %v221, %v285
  %v350 = vadd.f32 %v222, %v286
  %v351 = vadd.f32 %v223, %v287
  %v352 = vadd.f32 %v224, %v288
  %v353 = vadd.f32 %v225, %v289
  %v354 = vadd.f32 %v226, %v290
  %v355 = vadd.f32 %v227, %v291
  %v356 = vadd.f32 %v228, %v292
  %v357 = vadd.f32 %v229, %v293
  %v358 = vadd.f32 %v230, %v294
  %v359 = vadd.f32 %v231, %v295
  %v360 = vadd.f32 %v232, %v296
  %v361 = vadd.f32 %v233, %v297
  %v362 = vadd.f32 %v234, %v298
  %v363 = vadd.f32 %v235, %v299
  %v364 = vadd.f32 %v236, %v300
  %v365 = vadd.f32 %v237, %v301
  %v366 = vadd.f32 %v238, %v302
  %v367 = vadd.f32 %v239, %v303
  %v368 = vadd.f32 %v240, %v304
  %v369 = vadd.f32 %v241, %v305
  %v370 = vadd.f32 %v242, %v306
  %v371 = vadd.f32 %v243, %v307
  %v372 = vadd.f32 %v244, %v308
  %v373 = vadd.f32 %v245, %v309
  %v374 = vadd.f32 %v246, %v310
  %v375 = vadd.f32 %v247, %v311
  %v376 = vadd.f32 %v248, %v312
  %v377 = vadd.f32 %v249, %v313
  %v378 = vadd.f32 %v250, %v314
  %v379 = vadd.f32 %v251, %v315
  %v380 = vadd.f32 %v252, %v316
  %v381 = vadd.f32 %v253, %v317
  %v382 = vadd.f32 %v254, %v318
  %v383 = vadd.f32 %v255, %v319
  %v384 = vadd.f32 %v256, %v320
  %v385 = vadd.f32 %v257, %v321
  %v386 = vadd.f32 %v258, %v322
  %v387 = vadd.f32 %v259, %v323
  %v388 = vadd.f32 %v260, %v324
  %v389 = vadd.f32 %v261, %v325
  %v390 = vadd.f32 %v262, %v326
  %v391 = vadd.f32 %v263, %v327
  %v392 = vadd.f32 %v264, %v328
  %v393 = vadd.f32 %v265, %v329
  %v394 = vadd.f32 %v266, %v330
  %v395 = vadd.f32 %v267, %v331
  %v396 = vadd.f32 %v268, %v332
  %v397 = vadd.f32 %v269, %v333
  %v398 = vadd.f32 %v270, %v334
  %v399 = vadd.f32 %v271, %v335
  %v400 = vadd.f32 %v272, %v336
  %v401 = vadd.f32 %v273, %v337
  %v402 = vadd.f32 %v274, %v338
  %v403 = vadd.f32 %v275, %v339
  %v404 = vadd.f32 %v276, %v340
  %v405 = vadd.f32 %v277, %v341
  %v406 = vadd.f32 %v278, %v342
  %v407 = vadd.f32 %v279, %v343
  %v408 = vadd.f32 %v280, %v344
  %v409 = vmax.f32 %v345, 0.0
  %v410 = vmax.f32 %v346, 0.0
  %v411 = vmax.f32 %v347, 0.0
  %v412 = vmax.f32 %v348, 0.0
  %v413 = vmax.f32 %v349, 0.0
  %v414 = vmax.f32 %v350, 0.0
  %v415 = vmax.f32 %v351, 0.0
  %v416 = vmax.f32 %v352, 0.0
  %v417 = vmax.f32 %v353, 0.0
  %v418 = vmax.f32 %v354, 0.0
  %v419 = vmax.f32 %v355, 0.0
  %v420 = vmax.f32 %v356, 0.0
  %v421 = vmax.f32 %v357, 0.0
  %v422 = vmax.f32 %v358, 0.0
  %v423 = vmax.f32 %v359, 0.0
  %v424 = vmax.f32 %v360, 0.0
  %v425 = vmax.f32 %v361, 0.0
  %v426 = vmax.f32 %v362, 0.0
  %v427 = vmax.f32 %v363, 0.0
  %v428 = vmax.f32 %v364, 0.0
  %v429 = vmax.f32 %v365, 0.0
  %v430 = vmax.f32 %v366, 0.0
  %v431 = vmax.f32 %v367, 0.0
  %v432 = vmax.f32 %v368, 0.0
  %v433 = vmax.f32 %v369, 0.0
  %v434 = vmax.f32 %v370, 0.0
  %v435 = vmax.f32 %v371, 0.0
  %v436 = vmax.f32 %v372, 0.0
  %v437 = vmax.f32 %v373, 0.0
  %v438 = vmax.f32 %v374, 0.0
  %v439 = vmax.f32 %v375, 0.0
  %v440 = vmax.f32 %v376, 0.0
  %v441 = vmax.f32 %v377, 0.0
  %v442 = vmax.f32 %v378, 0.0
  %v443 = vmax.f32 %v379, 0.0
  %v444 = vmax.f32 %v380, 0.0
  %v445 = vmax.f32 %v381, 0.0
  %v446 = vmax.f32 %v382, 0.0
  %v447 = vmax.f32 %v383, 0.0
  %v448 = vmax.f32 %v384, 0.0
  %v449 = vmax.f32 %v385, 0.0
  %v450 = vmax.f32 %v386, 0.0
  %v451 = vmax.f32 %v387, 0.0
  %v452 = vmax.f32 %v388, 0.0
  %v453 = vmax.f32 %v389, 0.0
  %v454 = vmax.f32 %v390, 0.0
  %v455 = vmax.f32 %v391, 0.0
  %v456 = vmax.f32 %v392, 0.0
  %v457 = vmax.f32 %v393, 0.0
  %v458 = vmax.f32 %v394, 0.0
  %v459 = vmax.f32 %v395, 0.0
  %v460 = vmax.f32 %v396, 0.0
  %v461 = vmax.f32 %v397, 0.0
  %v462 = vmax.f32 %v398, 0.0
  %v463 = vmax.f32 %v399, 0.0
  %v464 = vmax.f32 %v400, 0.0
  %v465 = vmax.f32 %v401, 0.0
  %v466 = vmax.f32 %v402, 0.0
  %v467 = vmax.f32 %v403, 0.0
  %v468 = vmax.f32 %v404, 0.0
  %v469 = vmax.f32 %v405, 0.0
  %v470 = vmax.f32 %v406, 0.0
  %v471 = vmax.f32 %v407, 0.0
  %v472 = vmax.f32 %v408, 0.0
  %vm473 = vcmask 31744
  %474 = vst.msk [vmem:[%s4] sm:$0xff] %vm473, %v409
  %475 = vst.msk [vmem:[%s4 + $0x8] sm:$0xff] %vm473, %v410
  %476 = vst.msk [vmem:[%s4 + $0x10] sm:$0xff] %vm473, %v411
  %477 = vst.msk [vmem:[%s4 + $0x18] sm:$0xff] %vm473, %v412
  %478 = vst.msk [vmem:[%s4 + $0x20] sm:$0xff] %vm473, %v413
  %479 = vst.msk [vmem:[%s4 + $0x28] sm:$0xff] %vm473, %v414
  %480 = vst.msk [vmem:[%s4 + $0x30] sm:$0xff] %vm473, %v415
  %481 = vst.msk [vmem:[%s4 + $0x38] sm:$0xff] %vm473, %v416
  %482 = vst.msk [vmem:[%s4 + $0x40] sm:$0xff] %vm473, %v417
  %483 = vst.msk [vmem:[%s4 + $0x48] sm:$0xff] %vm473, %v418
  %484 = vst.msk [vmem:[%s4 + $0x50] sm:$0xff] %vm473, %v419
  %485 = vst.msk [vmem:[%s4 + $0x58] sm:$0xff] %vm473, %v420
  %486 = vst.msk [vmem:[%s4 + $0x60] sm:$0xff] %vm473, %v421
  %487 = vst.msk [vmem:[%s4 + $0x68] sm:$0xff] %vm473, %v422
  %488 = vst.msk [vmem:[%s4 + $0x70] sm:$0xff] %vm473, %v423
  %489 = vst.msk [vmem:[%s4 + $0x78] sm:$0xff] %vm473, %v424
  %490 = vst.msk [vmem:[%s4 + $0x80] sm:$0xff] %vm473, %v425
  %491 = vst.msk [vmem:[%s4 + $0x88] sm:$0xff] %vm473, %v426
  %492 = vst.msk [vmem:[%s4 + $0x90] sm:$0xff] %vm473, %v427
  %493 = vst.msk [vmem:[%s4 + $0x98] sm:$0xff] %vm473, %v428
  %494 = vst.msk [vmem:[%s4 + $0xa0] sm:$0xff] %vm473, %v429
  %495 = vst.msk [vmem:[%s4 + $0xa8] sm:$0xff] %vm473, %v430
  %496 = vst.msk [vmem:[%s4 + $0xb0] sm:$0xff] %vm473, %v431
  %497 = vst.msk [vmem:[%s4 + $0xb8] sm:$0xff] %vm473, %v432
  %498 = vst.msk [vmem:[%s4 + $0xc0] sm:$0xff] %vm473, %v433
  %499 = vst.msk [vmem:[%s4 + $0xc8] sm:$0xff] %vm473, %v434
  %500 = vst.msk [vmem:[%s4 + $0xd0] sm:$0xff] %vm473, %v435
  %501 = vst.msk [vmem:[%s4 + $0xd8] sm:$0xff] %vm473, %v436
  %502 = vst.msk [vmem:[%s4 + $0xe0] sm:$0xff] %vm473, %v437
  %503 = vst.msk [vmem:[%s4 + $0xe8] sm:$0xff] %vm473, %v438
  %504 = vst.msk [vmem:[%s4 + $0xf0] sm:$0xff] %vm473, %v439
  %505 = vst.msk [vmem:[%s4 + $0xf8] sm:$0xff] %vm473, %v440
  %506 = vst.msk [vmem:[%s4 + $0x100] sm:$0xff] %vm473, %v441
  %507 = vst.msk [vmem:[%s4 + $0x108] sm:$0xff] %vm473, %v442
  %508 = vst.msk [vmem:[%s4 + $0x110] sm:$0xff] %vm473, %v443
  %509 = vst.msk [vmem:[%s4 + $0x118] sm:$0xff] %vm473, %v444
  %510 = vst.msk [vmem:[%s4 + $0x120] sm:$0xff] %vm473, %v445
  %511 = vst.msk [vmem:[%s4 + $0x128] sm:$0xff] %vm473, %v446
  %512 = vst.msk [vmem:[%s4 + $0x130] sm:$0xff] %vm473, %v447
  %513 = vst.msk [vmem:[%s4 + $0x138] sm:$0xff] %vm473, %v448
  %514 = vst.msk [vmem:[%s4 + $0x140] sm:$0xff] %vm473, %v449
  %515 = vst.msk [vmem:[%s4 + $0x148] sm:$0xff] %vm473, %v450
  %516 = vst.msk [vmem:[%s4 + $0x150] sm:$0xff] %vm473, %v451
  %517 = vst.msk [vmem:[%s4 + $0x158] sm:$0xff] %vm473, %v452
  %518 = vst.msk [vmem:[%s4 + $0x160] sm:$0xff] %vm473, %v453
  %519 = vst.msk [vmem:[%s4 + $0x168] sm:$0xff] %vm473, %v454
  %520 = vst.msk [vmem:[%s4 + $0x170] sm:$0xff] %vm473, %v455
  %521 = vst.msk [vmem:[%s4 + $0x178] sm:$0xff] %vm473, %v456
  %522 = vst.msk [vmem:[%s4 + $0x180] sm:$0xff] %vm473, %v457
  %523 = vst.msk [vmem:[%s4 + $0x188] sm:$0xff] %vm473, %v458
  %524 = vst.msk [vmem:[%s4 + $0x190] sm:$0xff] %vm473, %v459
  %525 = vst.msk [vmem:[%s4 + $0x198] sm:$0xff] %vm473, %v460
  %526 = vst.msk [vmem:[%s4 + $0x1a0] sm:$0xff] %vm473, %v461
  %527 = vst.msk [vmem:[%s4 + $0x1a8] sm:$0xff] %vm473, %v462
  %528 = vst.msk [vmem:[%s4 + $0x1b0] sm:$0xff] %vm473, %v463
  %529 = vst.msk [vmem:[%s4 + $0x1b8] sm:$0xff] %vm473, %v464
  %530 = vst.msk [vmem:[%s4 + $0x1c0] sm:$0xff] %vm473, %v465
  %531 = vst.msk [vmem:[%s4 + $0x1c8] sm:$0xff] %vm473, %v466
  %532 = vst.msk [vmem:[%s4 + $0x1d0] sm:$0xff] %vm473, %v467
  %533 = vst.msk [vmem:[%s4 + $0x1d8] sm:$0xff] %vm473, %v468
  %534 = vst.msk [vmem:[%s4 + $0x1e0] sm:$0xff] %vm473, %v469
  %535 = vst.msk [vmem:[%s4 + $0x1e8] sm:$0xff] %vm473, %v470
  %536 = vst.msk [vmem:[%s4 + $0x1f0] sm:$0xff] %vm473, %v471
  %537 = vst.msk [vmem:[%s4 + $0x1f8] sm:$0xff] %vm473, %v472
  // Predicated region
  $region18: #{basic_block_forward.5} parent=0 // pred_check
    _
  $region19: #{basic_block_forward.5} parent=0 // pred_check_branch
    %539 = sbr.rel (0) target = $region21
  $region20: #{basic_block_forward.5} parent=0 // pred_region
    _
  $region21: #{basic_block_forward.5} parent=0 // pred_fallthru
    _
  // Predicated region
  $region22: #{basic_block_forward.5} parent=0 // pred_check
    _
  $region23: #{basic_block_forward.5} parent=0 // pred_check_branch
    %541 = sbr.rel (0) target = $region25
  $region24: #{basic_block_forward.5} parent=0 // pred_region
    _
  $region25: #{basic_block_forward.5} parent=0 // pred_fallthru
    _

// kernel: basic_block_forward.3
$region0: #{basic_block_forward.3}
  #allocation0 [shape = 'u32[]', space=smem, size = 0x4, offset = 0x4, fixed_abs, tag = 'smem constant byte address 0x4 - core index']
  #allocation1 [shape = 'u32[72,128]{1,0:T(1,128)}', space=vmem, size = 0x9000, scoped, tag = 'internal scratch']
  #allocation2 [shape = 'bf16[128,128]{1,0:T(8,128)(2,1)}', space=vmem, size = 0x8000, scoped, tag = 'scratch operand']
  #allocation3 [shape = 'f32[128,128]{1,0:T(8,128)}', space=vmem, size = 0x10000, scoped, tag = 'scratch operand']
  %s0 = inlined_call_operand.vmem [shape: bf16[2,1,18,18,4], index: 0, kind: input, shape index: {}]
  %s1 = inlined_call_operand.vmem [shape: bf16[128,128], index: 1, kind: input, shape index: {}]
  %s2 = inlined_call_operand.vmem [shape: bf16[2,256,4], index: 2, kind: output, shape index: {0}]
  %s3 = inlined_call_operand.vmem [shape: f32[2,2,1,4], index: 3, kind: output, shape index: {1}]
  %s4 = inlined_call_operand.vmem [shape: f32[2,2,1,4], index: 4, kind: output, shape index: {2}]
  %5 = xla_tuple %s2, %s3, %s4
  %s6 = sld [smem:[#allocation0]]
  $region57: #{basic_block_forward.3} parent=0
    _
  %s8 = ssub.s32 1, %s6
  %s9 = scalar_select 0, %s8, %s6
  loop: start=0, step=1, limit=6
  $region2: #{basic_block_forward.3} parent=0 // loop_pre_header
    _
  $region3: #{basic_block_forward.3} parent=0 // loop_header
    %s11 = sphi 0, %s15
    %p12 = scmp.ge.s32.totalorder %s11, 6
    %s18 = sphi 0, %s30
    %s19 = sphi 0, %s26
    %s20 = sphi 0, %s18
    %s21 = sphi 0, %s19
    %s22 = sphi 0, %s20
    %s23 = sphi 0, %s21
    %s33 = sphi 0, %s35
    %s36 = sphi 0, %s33
    %s37 = sphi 0, %s36
    %s53 = sphi 0, %s37
    %s57 = sphi 0, %s57
    %s59 = sphi 0, %s57
    %s60 = sphi 0, %s59
    %s74 = sphi 0, %s60
    %s82 = sphi 0, %s84
    %s85 = sphi 0, %s82
    %s86 = sphi 0, %s85
    %s102 = sphi 0, %s86
    %s110 = sphi 0, %s112
    %s113 = sphi 0, %s110
    %s114 = sphi 0, %s113
    %s130 = sphi 0, %s114
    %s138 = sphi 0, %s140
    %s141 = sphi 0, %s138
    %s142 = sphi 0, %s141
    %s158 = sphi 0, %s142
  $region4: #{basic_block_forward.3} parent=0 // loop_header_branch
    %14 = sbr.rel (%p12) target = $region8
  $region5: #{basic_block_forward.3} parent=0 // loop_body
    %s16 = ssub.s32 %s11, 1
    %s17 = ssub.s32 %s11, 2
    %s24 = sadd.s32 1, %s19
    %p25 = scmp.ge.s32.totalorder %s24, 2
    %s26 = scalar_select %p25, 0, %s24
    %s27 = sadd.s32 1, %s18
    %s28 = scalar_select %p25, %s27, %s18
    %p29 = scmp.ge.s32.totalorder %s28, 2
    %s30 = scalar_select %p29, 0, %s28
    %s31 = ssub.s32 %s18, %s30
    %p32 = scmp.eq.s32.totalorder %s31, 0
    %s34 = sadd.s32 %s33, 1
    %s35 = scalar_select %p32, %s33, %s34
    %p38 = pneg %p32
    %p39 = scmp.eq.s32.totalorder %s11, 3
    %p40 = por %p38, %p39
    %p41 = scmp.ne.s32.totalorder %s33, %s36
    %p42 = scmp.eq.s32.totalorder %s11, 0
    %p43 = por %p41, %p42
    %p44 = scmp.ne.s32.totalorder %s33, %s36
    %p45 = scmp.eq.s32.totalorder %s16, 3
    %p46 = por %p44, %p45
    %p47 = scmp.ne.s32.totalorder %s36, %s37
    %p48 = scmp.eq.s32.totalorder %s16, 0
    %p49 = por %p47, %p48
    %p50 = scmp.ne.s32.totalorder %s36, %s37
    %p51 = scmp.eq.s32.totalorder %s17, 3
    %p52 = por %p50, %p51
    %p54 = scmp.ne.s32.totalorder %s37, %s53
    %p55 = scmp.eq.s32.totalorder %s17, 0
    %p56 = por %p54, %p55
    %s58 = sadd.s32 %s57, 1
    %p61 = scmp.eq.s32.totalorder %s11, 3
    %p62 = scmp.ne.s32.totalorder %s57, %s59
    %p63 = scmp.eq.s32.totalorder %s11, 0
    %p64 = por %p62, %p63
    %p65 = scmp.ne.s32.totalorder %s57, %s59
    %p66 = scmp.eq.s32.totalorder %s16, 3
    %p67 = por %p65, %p66
    %p68 = scmp.ne.s32.totalorder %s59, %s60
    %p69 = scmp.eq.s32.totalorder %s16, 0
    %p70 = por %p68, %p69
    %p71 = scmp.ne.s32.totalorder %s59, %s60
    %p72 = scmp.eq.s32.totalorder %s17, 3
    %p73 = por %p71, %p72
    %p75 = scmp.ne.s32.totalorder %s60, %s74
    %p76 = scmp.eq.s32.totalorder %s17, 0
    %p77 = por %p75, %p76
    %s78 = ssub.s32 %s18, %s30
    %s79 = ssub.s32 %s19, %s26
    %s80 = sor.u32 %s78, %s79
    %p81 = scmp.eq.s32.totalorder %s80, 0
    %s83 = sadd.s32 %s82, 1
    %s84 = scalar_select %p81, %s82, %s83
    %p87 = pneg %p81
    %p88 = scmp.eq.s32.totalorder %s11, 3
    %p89 = por %p87, %p88
    %p90 = scmp.ne.s32.totalorder %s82, %s85
    %p91 = scmp.eq.s32.totalorder %s11, 0
    %p92 = por %p90, %p91
    %p93 = scmp.ne.s32.totalorder %s82, %s85
    %p94 = scmp.eq.s32.totalorder %s16, 3
    %p95 = por %p93, %p94
    %p96 = scmp.ne.s32.totalorder %s85, %s86
    %p97 = scmp.eq.s32.totalorder %s16, 0
    %p98 = por %p96, %p97
    %p99 = scmp.ne.s32.totalorder %s85, %s86
    %p100 = scmp.eq.s32.totalorder %s17, 3
    %p101 = por %p99, %p100
    %p103 = scmp.ne.s32.totalorder %s86, %s102
    %p104 = scmp.eq.s32.totalorder %s17, 0
    %p105 = por %p103, %p104
    %s106 = ssub.s32 %s18, %s30
    %s107 = ssub.s32 %s19, %s26
    %s108 = sor.u32 %s106, %s107
    %p109 = scmp.eq.s32.totalorder %s108, 0
    %s111 = sadd.s32 %s110, 1
    %s112 = scalar_select %p109, %s110, %s111
    %p115 = pneg %p109
    %p116 = scmp.eq.s32.totalorder %s11, 3
    %p117 = por %p115, %p116
    %p118 = scmp.ne.s32.totalorder %s110, %s113
    %p119 = scmp.eq.s32.totalorder %s11, 0
    %p120 = por %p118, %p119
    %p121 = scmp.ne.s32.totalorder %s110, %s113
    %p122 = scmp.eq.s32.totalorder %s16, 3
    %p123 = por %p121, %p122
    %p124 = scmp.ne.s32.totalorder %s113, %s114
    %p125 = scmp.eq.s32.totalorder %s16, 0
    %p126 = por %p124, %p125
    %p127 = scmp.ne.s32.totalorder %s113, %s114
    %p128 = scmp.eq.s32.totalorder %s17, 3
    %p129 = por %p127, %p128
    %p131 = scmp.ne.s32.totalorder %s114, %s130
    %p132 = scmp.eq.s32.totalorder %s17, 0
    %p133 = por %p131, %p132
    %s134 = ssub.s32 %s18, %s30
    %s135 = ssub.s32 %s19, %s26
    %s136 = sor.u32 %s134, %s135
    %p137 = scmp.eq.s32.totalorder %s136, 0
    %s139 = sadd.s32 %s138, 1
    %s140 = scalar_select %p137, %s138, %s139
    %p143 = pneg %p137
    %p144 = scmp.eq.s32.totalorder %s11, 3
    %p145 = por %p143, %p144
    %p146 = scmp.ne.s32.totalorder %s138, %s141
    %p147 = scmp.eq.s32.totalorder %s11, 0
    %p148 = por %p146, %p147
    %p149 = scmp.ne.s32.totalorder %s138, %s141
    %p150 = scmp.eq.s32.totalorder %s16, 3
    %p151 = por %p149, %p150
    %p152 = scmp.ne.s32.totalorder %s141, %s142
    %p153 = scmp.eq.s32.totalorder %s16, 0
    %p154 = por %p152, %p153
    %p155 = scmp.ne.s32.totalorder %s141, %s142
    %p156 = scmp.eq.s32.totalorder %s17, 3
    %p157 = por %p155, %p156
    %p159 = scmp.ne.s32.totalorder %s142, %s158
    %p160 = scmp.eq.s32.totalorder %s17, 0
    %p161 = por %p159, %p160
    %p162 = scmp.le.s32.totalorder 1, %s11
    %p163 = scmp.lt.s32.totalorder %s11, 5
    %p164 = pnand %p162, %p163
    %p165 = pneg %p164
    // Predicated region
    $region9: #{basic_block_forward.3} parent=5 // pred_check
      _
    $region10: #{basic_block_forward.3} parent=5 // pred_check_branch
      %167 = sbr.rel (%p164) target = $region12
    $region11: #{basic_block_forward.3} parent=5 // pred_region
      %s168 = ssub.s32 %s11, 1
      // Predicated region
      $region13: #{basic_block_forward.3} parent=11 // pred_check
        %p169 = pneg %p70
      $region14: #{basic_block_forward.3} parent=11 // pred_check_branch
        %171 = sbr.rel (%p169) target = $region16
      $region15: #{basic_block_forward.3} parent=11 // pred_region
        _
      $region16: #{basic_block_forward.3} parent=11 // pred_fallthru
        _
    $region12: #{basic_block_forward.3} parent=5 // pred_fallthru
      _
    %p172 = scmp.lt.s32.totalorder %s11, 4
    // Predicated region
    $region17: #{basic_block_forward.3} parent=5 // pred_check
      %p173 = pneg %p172
    $region18: #{basic_block_forward.3} parent=5 // pred_check_branch
      %175 = sbr.rel (%p173) target = $region20
    $region19: #{basic_block_forward.3} parent=5 // pred_region
      // Predicated region
      $region21: #{basic_block_forward.3} parent=19 // pred_check
        %p176 = pneg %p43
      $region22: #{basic_block_forward.3} parent=19 // pred_check_branch
        %178 = sbr.rel (%p176) target = $region24
      $region23: #{basic_block_forward.3} parent=19 // pred_region
        %p179 = scmp.lt.s32.totalorder %s18, 1
        %s180 = scalar_select %p179, %s18, 1
        %s181 = smul.addr %s180, 54
        %s182 = smul.addr %s181, 4
        %s183 = scalar_lea.vmem %s0, %s182
      $region24: #{basic_block_forward.3} parent=19 // pred_fallthru
        _
    $region20: #{basic_block_forward.3} parent=5 // pred_fallthru
      _
    %p184 = scmp.le.s32.totalorder 1, %s11
    %p185 = scmp.lt.s32.totalorder %s11, 5
    %p186 = pnand %p184, %p185
    %p187 = pneg %p186
    // Predicated region
    $region25: #{basic_block_forward.3} parent=5 // pred_check
      _
    $region26: #{basic_block_forward.3} parent=5 // pred_check_branch
      %189 = sbr.rel (%p186) target = $region28
    $region27: #{basic_block_forward.3} parent=5 // pred_region
      %s190 = ssub.s32 %s11, 1
      %p191 = scmp.lt.s32.totalorder %s20, 1
      %s192 = scalar_select %p191, %s20, 1
      %s193 = smul.addr %s192, 54
      %s194 = smul.addr %s193, 4
      %s195 = scalar_lea.vmem %s0, %s194
      %p196 = pneg %p49
      %p197 = pneg %p46
      %p198 = pneg %p70
      %p199 = pneg %p67
      %p200 = pneg %p98
      %p201 = pneg %p95
      %s202 = smul.u32 16, %s21
      %p203 = scmp.lt.s32.totalorder %s20, 1
      %s204 = scalar_select %p203, %s20, 1
      %p205 = scmp.lt.s32.totalorder %s202, 31
      %s206 = scalar_select %p205, %s202, 31
      %s207 = smul.addr %s204, 32
      %s208 = sadd.s32 %s206, %s207
      %s209 = smul.addr %s208, 4
      %s210 = scalar_lea.vmem %s2, %s209
      %p211 = pneg %p126
      %p212 = pneg %p123
      %p213 = scmp.lt.s32.totalorder %s20, 1
      %s214 = scalar_select %p213, %s20, 1
      %p215 = scmp.lt.s32.totalorder %s21, 1
      %s216 = scalar_select %p215, %s21, 1
      %s217 = smul.addr %s214, 2
      %s218 = sadd.s32 %s216, %s217
      %s219 = scalar_lea.vmem %s3, %s218
      %p220 = pneg %p154
      %p221 = pneg %p151
      %p222 = scmp.lt.s32.totalorder %s20, 1
      %s223 = scalar_select %p222, %s20, 1
      %p224 = scmp.lt.s32.totalorder %s21, 1
      %s225 = scalar_select %p224, %s21, 1
      %s226 = smul.addr %s223, 2
      %s227 = sadd.s32 %s225, %s226
      %s228 = scalar_lea.vmem %s4, %s227
      %p229 = scmp.lt.s32.totalorder %s20, 1
      %s230 = scalar_select %p229, %s20, 1
      %s231 = smul.addr %s230, 54
      %s232 = smul.addr %s231, 4
      %s233 = scalar_lea.vmem %s0, %s232
      %s234 = smul.u32 16, %s21
      %p235 = scmp.lt.s32.totalorder %s20, 1
      %s236 = scalar_select %p235, %s20, 1
      %p237 = scmp.lt.s32.totalorder %s234, 31
      %s238 = scalar_select %p237, %s234, 31
      %s239 = smul.addr %s236, 32
      %s240 = sadd.s32 %s238, %s239
      %s241 = smul.addr %s240, 4
      %s242 = scalar_lea.vmem %s2, %s241
      %s243 = smul.u32 16, %s21
      %p244 = scmp.lt.s32.totalorder %s20, 1
      %s245 = scalar_select %p244, %s20, 1
      %p246 = scmp.lt.s32.totalorder %s21, 1
      %s247 = scalar_select %p246, %s21, 1
      %s248 = smul.addr %s245, 2
      %s249 = sadd.s32 %s247, %s248
      %s250 = scalar_lea.vmem %s3, %s249
      %p251 = scmp.lt.s32.totalorder %s20, 1
      %s252 = scalar_select %p251, %s20, 1
      %p253 = scmp.lt.s32.totalorder %s21, 1
      %s254 = scalar_select %p253, %s21, 1
      %s255 = smul.addr %s252, 2
      %s256 = sadd.s32 %s254, %s255
      %s257 = scalar_lea.vmem %s4, %s256
      %s259 = smul.u32 %s21, 8
      %260 = vst [vmem:[#allocation2] sm:$0xf] 0
      %261 = vst [vmem:[#allocation2 + $0x4] sm:$0xf] 0
      %262 = vst [vmem:[#allocation2 + $0x8] sm:$0xf] 0
      %263 = vst [vmem:[#allocation2 + $0xc] sm:$0xf] 0
      %264 = vst [vmem:[#allocation2 + $0x10] sm:$0xf] 0
      %265 = vst [vmem:[#allocation2 + $0x14] sm:$0xf] 0
      %266 = vst [vmem:[#allocation2 + $0x18] sm:$0xf] 0
      %267 = vst [vmem:[#allocation2 + $0x1c] sm:$0xf] 0
      %268 = vst [vmem:[#allocation2 + $0x20] sm:$0xf] 0
      %269 = vst [vmem:[#allocation2 + $0x24] sm:$0xf] 0
      %270 = vst [vmem:[#allocation2 + $0x28] sm:$0xf] 0
      %271 = vst [vmem:[#allocation2 + $0x2c] sm:$0xf] 0
      %272 = vst [vmem:[#allocation2 + $0x30] sm:$0xf] 0
      %273 = vst [vmem:[#allocation2 + $0x34] sm:$0xf] 0
      %274 = vst [vmem:[#allocation2 + $0x38] sm:$0xf] 0
      %275 = vst [vmem:[#allocation2 + $0x3c] sm:$0xf] 0
      %s276 = smul.u32 %s259, 3
      %s277 = smul.addr %s276, 4
      %s278 = scalar_lea.vmem %s233, %s277
      %v279 = vld [vmem:[%s278] sm:$0xf]
      %v280 = vld [vmem:[%s278 + $0x4] sm:$0xf]
      %v281 = vld [vmem:[%s278 + $0xc] sm:$0xf]
      %v282 = vld [vmem:[%s278 + $0x10] sm:$0xf]
      %v283 = vld [vmem:[%s278 + $0x18] sm:$0xf]
      %v284 = vld [vmem:[%s278 + $0x1c] sm:$0xf]
      %v285 = vld [vmem:[%s278 + $0x24] sm:$0xf]
      %v286 = vld [vmem:[%s278 + $0x28] sm:$0xf]
      %v287 = vld [vmem:[%s278 + $0x30] sm:$0xf]
      %v288 = vld [vmem:[%s278 + $0x34] sm:$0xf]
      %v289 = vld [vmem:[%s278 + $0x3c] sm:$0xf]
      %v290 = vld [vmem:[%s278 + $0x40] sm:$0xf]
      %v291 = vld [vmem:[%s278 + $0x48] sm:$0xf]
      %v292 = vld [vmem:[%s278 + $0x4c] sm:$0xf]
      %v293 = vld [vmem:[%s278 + $0x54] sm:$0xf]
      %v294 = vld [vmem:[%s278 + $0x58] sm:$0xf]
      %vm295 = vcmask 27648
      %296 = vst.msk [vmem:[#allocation2] sm:$0xf] %vm295, %v279
      %297 = vst.msk [vmem:[#allocation2 + $0x4] sm:$0xf] %vm295, %v280
      %298 = vst.msk [vmem:[#allocation2 + $0x8] sm:$0xf] %vm295, %v281
      %299 = vst.msk [vmem:[#allocation2 + $0xc] sm:$0xf] %vm295, %v282
      %300 = vst.msk [vmem:[#allocation2 + $0x10] sm:$0xf] %vm295, %v283
      %301 = vst.msk [vmem:[#allocation2 + $0x14] sm:$0xf] %vm295, %v284
      %302 = vst.msk [vmem:[#allocation2 + $0x18] sm:$0xf] %vm295, %v285
      %303 = vst.msk [vmem:[#allocation2 + $0x1c] sm:$0xf] %vm295, %v286
      %304 = vst.msk [vmem:[#allocation2 + $0x20] sm:$0xf] %vm295, %v287
      %305 = vst.msk [vmem:[#allocation2 + $0x24] sm:$0xf] %vm295, %v288
      %306 = vst.msk [vmem:[#allocation2 + $0x28] sm:$0xf] %vm295, %v289
      %307 = vst.msk [vmem:[#allocation2 + $0x2c] sm:$0xf] %vm295, %v290
      %308 = vst.msk [vmem:[#allocation2 + $0x30] sm:$0xf] %vm295, %v291
      %309 = vst.msk [vmem:[#allocation2 + $0x34] sm:$0xf] %vm295, %v292
      %310 = vst.msk [vmem:[#allocation2 + $0x38] sm:$0xf] %vm295, %v293
      %311 = vst.msk [vmem:[#allocation2 + $0x3c] sm:$0xf] %vm295, %v294
      %v312 = vld [vmem:[%s278] sm:$0xf]
      %v313 = vld [vmem:[%s278 + $0x4] sm:$0xf]
      %v314 = vld [vmem:[%s278 + $0x8] sm:$0x1]
      %v315 = vld [vmem:[%s278 + $0xc] sm:$0xf]
      %v316 = vld [vmem:[%s278 + $0x10] sm:$0xf]
      %v317 = vld [vmem:[%s278 + $0x14] sm:$0x1]
      %v318 = vld [vmem:[%s278 + $0x18] sm:$0xf]
      %v319 = vld [vmem:[%s278 + $0x1c] sm:$0xf]
      %v320 = vld [vmem:[%s278 + $0x20] sm:$0x1]
      %v321 = vld [vmem:[%s278 + $0x24] sm:$0xf]
      %v322 = vld [vmem:[%s278 + $0x28] sm:$0xf]
      %v323 = vld [vmem:[%s278 + $0x2c] sm:$0x1]
      %v324 = vld [vmem:[%s278 + $0x30] sm:$0xf]
      %v325 = vld [vmem:[%s278 + $0x34] sm:$0xf]
      %v326 = vld [vmem:[%s278 + $0x38] sm:$0x1]
      %v327 = vld [vmem:[%s278 + $0x3c] sm:$0xf]
      %v328 = vld [vmem:[%s278 + $0x40] sm:$0xf]
      %v329 = vld [vmem:[%s278 + $0x44] sm:$0x1]
      %v330 = vld [vmem:[%s278 + $0x48] sm:$0xf]
      %v331 = vld [vmem:[%s278 + $0x4c] sm:$0xf]
      %v332 = vld [vmem:[%s278 + $0x50] sm:$0x1]
      %v333 = vld [vmem:[%s278 + $0x54] sm:$0xf]
      %v334 = vld [vmem:[%s278 + $0x58] sm:$0xf]
      %v335 = vld [vmem:[%s278 + $0x5c] sm:$0x1]
      %vm336 = vsmask.f32 3328
      %vm337 = vsmask.f32 7440
      %vm338 = vmor %vm336, %vm337
      %v340 = vshrl.u32 %v312, 16
      %v342 = vrot.slane %v340, 4
      %v343 = vshll.u32 %v312, 16
      %v345 = vrot.slane %v343, 5
      %v346 = vor.u32 %v342, %v345
      %v347 = vrot.slane %v346, 4
      %v349 = vshll.u32 %v313, 16
      %v351 = vrot.slane %v349, 5
      %v352 = vsel %vm338, %v347, %v351
      %v353 = vshrl.u32 %v313, 16
      %v355 = vrot.slane %v353, 4
      %v356 = vor.u32 %v355, %v351
      %v357 = vrot.slane %v356, 4
      %v359 = vshll.u32 %v314, 16
      %v361 = vrot.slane %v359, 5
      %v362 = vsel %vm338, %v357, %v361
      %v364 = vshrl.u32 %v315, 16
      %v366 = vrot.slane %v364, 4
      %v367 = vshll.u32 %v315, 16
      %v369 = vrot.slane %v367, 5
      %v370 = vor.u32 %v366, %v369
      %v371 = vrot.slane %v370, 4
      %v373 = vshll.u32 %v316, 16
      %v375 = vrot.slane %v373, 5
      %v376 = vsel %vm338, %v371, %v375
      %v377 = vshrl.u32 %v316, 16
      %v379 = vrot.slane %v377, 4
      %v380 = vor.u32 %v379, %v375
      %v381 = vrot.slane %v380, 4
      %v383 = vshll.u32 %v317, 16
      %v385 = vrot.slane %v383, 5
      %v386 = vsel %vm338, %v381, %v385
      %v388 = vshrl.u32 %v318, 16
      %v390 = vrot.slane %v388, 4
      %v391 = vshll.u32 %v318, 16
      %v393 = vrot.slane %v391, 5
      %v394 = vor.u32 %v390, %v393
      %v395 = vrot.slane %v394, 4
      %v397 = vshll.u32 %v319, 16
      %v399 = vrot.slane %v397, 5
      %v400 = vsel %vm338, %v395, %v399
      %v401 = vshrl.u32 %v319, 16
      %v403 = vrot.slane %v401, 4
      %v404 = vor.u32 %v403, %v399
      %v405 = vrot.slane %v404, 4
      %v407 = vshll.u32 %v320, 16
      %v409 = vrot.slane %v407, 5
      %v410 = vsel %vm338, %v405, %v409
      %v412 = vshrl.u32 %v321, 16
      %v414 = vrot.slane %v412, 4
      %v415 = vshll.u32 %v321, 16
      %v417 = vrot.slane %v415, 5
      %v418 = vor.u32 %v414, %v417
      %v419 = vrot.slane %v418, 4
      %v421 = vshll.u32 %v322, 16
      %v423 = vrot.slane %v421, 5
      %v424 = vsel %vm338, %v419, %v423
      %v425 = vshrl.u32 %v322, 16
      %v427 = vrot.slane %v425, 4
      %v428 = vor.u32 %v427, %v423
      %v429 = vrot.slane %v428, 4
      %v431 = vshll.u32 %v323, 16
      %v433 = vrot.slane %v431, 5
      %v434 = vsel %vm338, %v429, %v433
      %v436 = vshrl.u32 %v324, 16
      %v438 = vrot.slane %v436, 4
      %v439 = vshll.u32 %v324, 16
      %v441 = vrot.slane %v439, 5
      %v442 = vor.u32 %v438, %v441
      %v443 = vrot.slane %v442, 4
      %v445 = vshll.u32 %v325, 16
      %v447 = vrot.slane %v445, 5
      %v448 = vsel %vm338, %v443, %v447
      %v449 = vshrl.u32 %v325, 16
      %v451 = vrot.slane %v449, 4
      %v452 = vor.u32 %v451, %v447
      %v453 = vrot.slane %v452, 4
      %v455 = vshll.u32 %v326, 16
      %v457 = vrot.slane %v455, 5
      %v458 = vsel %vm338, %v453, %v457
      %v460 = vshrl.u32 %v327, 16
      %v462 = vrot.slane %v460, 4
      %v463 = vshll.u32 %v327, 16
      %v465 = vrot.slane %v463, 5
      %v466 = vor.u32 %v462, %v465
      %v467 = vrot.slane %v466, 4
      %v469 = vshll.u32 %v328, 16
      %v471 = vrot.slane %v469, 5
      %v472 = vsel %vm338, %v467, %v471
      %v473 = vshrl.u32 %v328, 16
      %v475 = vrot.slane %v473, 4
      %v476 = vor.u32 %v475, %v471
      %v477 = vrot.slane %v476, 4
      %v479 = vshll.u32 %v329, 16
      %v481 = vrot.slane %v479, 5
      %v482 = vsel %vm338, %v477, %v481
      %v484 = vshrl.u32 %v330, 16
      %v486 = vrot.slane %v484, 4
      %v487 = vshll.u32 %v330, 16
      %v489 = vrot.slane %v487, 5
      %v490 = vor.u32 %v486, %v489
      %v491 = vrot.slane %v490, 4
      %v493 = vshll.u32 %v331, 16
      %v495 = vrot.slane %v493, 5
      %v496 = vsel %vm338, %v491, %v495
      %v497 = vshrl.u32 %v331, 16
      %v499 = vrot.slane %v497, 4
      %v500 = vor.u32 %v499, %v495
      %v501 = vrot.slane %v500, 4
      %v503 = vshll.u32 %v332, 16
      %v505 = vrot.slane %v503, 5
      %v506 = vsel %vm338, %v501, %v505
      %v508 = vshrl.u32 %v333, 16
      %v510 = vrot.slane %v508, 4
      %v511 = vshll.u32 %v333, 16
      %v513 = vrot.slane %v511, 5
      %v514 = vor.u32 %v510, %v513
      %v515 = vrot.slane %v514, 4
      %v517 = vshll.u32 %v334, 16
      %v519 = vrot.slane %v517, 5
      %v520 = vsel %vm338, %v515, %v519
      %v521 = vshrl.u32 %v334, 16
      %v523 = vrot.slane %v521, 4
      %v524 = vor.u32 %v523, %v519
      %v525 = vrot.slane %v524, 4
      %v527 = vshll.u32 %v335, 16
      %v529 = vrot.slane %v527, 5
      %v530 = vsel %vm338, %v525, %v529
      %531 = vrot.lane.b32.xlu0 %v352, 4
      %v532 = vpop.permute.xlu0 %531
      %533 = vrot.lane.b32.xlu0 %v362, 4
      %v534 = vpop.permute.xlu0 %533
      %535 = vrot.lane.b32.xlu0 %v376, 4
      %v536 = vpop.permute.xlu0 %535
      %537 = vrot.lane.b32.xlu0 %v386, 4
      %v538 = vpop.permute.xlu0 %537
      %539 = vrot.lane.b32.xlu0 %v400, 4
      %v540 = vpop.permute.xlu0 %539
      %541 = vrot.lane.b32.xlu0 %v410, 4
      %v542 = vpop.permute.xlu0 %541
      %543 = vrot.lane.b32.xlu0 %v424, 4
      %v544 = vpop.permute.xlu0 %543
      %545 = vrot.lane.b32.xlu0 %v434, 4
      %v546 = vpop.permute.xlu0 %545
      %547 = vrot.lane.b32.xlu0 %v448, 4
      %v548 = vpop.permute.xlu0 %547
      %549 = vrot.lane.b32.xlu0 %v458, 4
      %v550 = vpop.permute.xlu0 %549
      %551 = vrot.lane.b32.xlu0 %v472, 4
      %v552 = vpop.permute.xlu0 %551
      %553 = vrot.lane.b32.xlu0 %v482, 4
      %v554 = vpop.permute.xlu0 %553
      %555 = vrot.lane.b32.xlu0 %v496, 4
      %v556 = vpop.permute.xlu0 %555
      %557 = vrot.lane.b32.xlu0 %v506, 4
      %v558 = vpop.permute.xlu0 %557
      %559 = vrot.lane.b32.xlu0 %v520, 4
      %v560 = vpop.permute.xlu0 %559
      %561 = vrot.lane.b32.xlu0 %v530, 4
      %v562 = vpop.permute.xlu0 %561
      %vm579 = vcmask 60448
      %580 = vst.msk [vmem:[#allocation2] sm:$0xf] %vm579, %v532
      %581 = vst.msk [vmem:[#allocation2 + $0x4] sm:$0xf] %vm579, %v534
      %582 = vst.msk [vmem:[#allocation2 + $0x8] sm:$0xf] %vm579, %v536
      %583 = vst.msk [vmem:[#allocation2 + $0xc] sm:$0xf] %vm579, %v538
      %584 = vst.msk [vmem:[#allocation2 + $0x10] sm:$0xf] %vm579, %v540
      %585 = vst.msk [vmem:[#allocation2 + $0x14] sm:$0xf] %vm579, %v542
      %586 = vst.msk [vmem:[#allocation2 + $0x18] sm:$0xf] %vm579, %v544
      %587 = vst.msk [vmem:[#allocation2 + $0x1c] sm:$0xf] %vm579, %v546
      %588 = vst.msk [vmem:[#allocation2 + $0x20] sm:$0xf] %vm579, %v548
      %589 = vst.msk [vmem:[#allocation2 + $0x24] sm:$0xf] %vm579, %v550
      %590 = vst.msk [vmem:[#allocation2 + $0x28] sm:$0xf] %vm579, %v552
      %591 = vst.msk [vmem:[#allocation2 + $0x2c] sm:$0xf] %vm579, %v554
      %592 = vst.msk [vmem:[#allocation2 + $0x30] sm:$0xf] %vm579, %v556
      %593 = vst.msk [vmem:[#allocation2 + $0x34] sm:$0xf] %vm579, %v558
      %594 = vst.msk [vmem:[#allocation2 + $0x38] sm:$0xf] %vm579, %v560
      %595 = vst.msk [vmem:[#allocation2 + $0x3c] sm:$0xf] %vm579, %v562
      %v596 = vld [vmem:[%s278] sm:$0xe]
      %v597 = vld [vmem:[%s278 + $0x4] sm:$0xf]
      %v598 = vld [vmem:[%s278 + $0x8] sm:$0x1]
      %v599 = vld [vmem:[%s278 + $0xc] sm:$0xe]
      %v600 = vld [vmem:[%s278 + $0x10] sm:$0xf]
      %v601 = vld [vmem:[%s278 + $0x14] sm:$0x1]
      %v602 = vld [vmem:[%s278 + $0x18] sm:$0xe]
      %v603 = vld [vmem:[%s278 + $0x1c] sm:$0xf]
      %v604 = vld [vmem:[%s278 + $0x20] sm:$0x1]
      %v605 = vld [vmem:[%s278 + $0x24] sm:$0xe]
      %v606 = vld [vmem:[%s278 + $0x28] sm:$0xf]
      %v607 = vld [vmem:[%s278 + $0x2c] sm:$0x1]
      %v608 = vld [vmem:[%s278 + $0x30] sm:$0xe]
      %v609 = vld [vmem:[%s278 + $0x34] sm:$0xf]
      %v610 = vld [vmem:[%s278 + $0x38] sm:$0x1]
      %v611 = vld [vmem:[%s278 + $0x3c] sm:$0xe]
      %v612 = vld [vmem:[%s278 + $0x40] sm:$0xf]
      %v613 = vld [vmem:[%s278 + $0x44] sm:$0x1]
      %v614 = vld [vmem:[%s278 + $0x48] sm:$0xe]
      %v615 = vld [vmem:[%s278 + $0x4c] sm:$0xf]
      %v616 = vld [vmem:[%s278 + $0x50] sm:$0x1]
      %v617 = vld [vmem:[%s278 + $0x54] sm:$0xe]
      %v618 = vld [vmem:[%s278 + $0x58] sm:$0xf]
      %v619 = vld [vmem:[%s278 + $0x5c] sm:$0x1]
      %vm644 = vcmask 1042432
      %vm645 = vcmask 1046532
      %vm646 = vmor %vm644, %vm645
      %v647 = vrot.slane %v596, 5
      %v648 = vrot.slane %v647, 4
      %v649 = vrot.slane %v597, 5
      %v650 = vsel %vm646, %v648, %v649
      %v651 = vrot.slane %v649, 4
      %v652 = vrot.slane %v598, 5
      %v653 = vsel %vm646, %v651, %v652
      %v654 = vrot.slane %v599, 5
      %v655 = vrot.slane %v654, 4
      %v656 = vrot.slane %v600, 5
      %v657 = vsel %vm646, %v655, %v656
      %v658 = vrot.slane %v656, 4
      %v659 = vrot.slane %v601, 5
      %v660 = vsel %vm646, %v658, %v659
      %v661 = vrot.slane %v602, 5
      %v662 = vrot.slane %v661, 4
      %v663 = vrot.slane %v603, 5
      %v664 = vsel %vm646, %v662, %v663
      %v665 = vrot.slane %v663, 4
      %v666 = vrot.slane %v604, 5
      %v667 = vsel %vm646, %v665, %v666
      %v668 = vrot.slane %v605, 5
      %v669 = vrot.slane %v668, 4
      %v670 = vrot.slane %v606, 5
      %v671 = vsel %vm646, %v669, %v670
      %v672 = vrot.slane %v670, 4
      %v673 = vrot.slane %v607, 5
      %v674 = vsel %vm646, %v672, %v673
      %v675 = vrot.slane %v608, 5
      %v676 = vrot.slane %v675, 4
      %v677 = vrot.slane %v609, 5
      %v678 = vsel %vm646, %v676, %v677
      %v679 = vrot.slane %v677, 4
      %v680 = vrot.slane %v610, 5
      %v681 = vsel %vm646, %v679, %v680
      %v682 = vrot.slane %v611, 5
      %v683 = vrot.slane %v682, 4
      %v684 = vrot.slane %v612, 5
      %v685 = vsel %vm646, %v683, %v684
      %v686 = vrot.slane %v684, 4
      %v687 = vrot.slane %v613, 5
      %v688 = vsel %vm646, %v686, %v687
      %v689 = vrot.slane %v614, 5
      %v690 = vrot.slane %v689, 4
      %v691 = vrot.slane %v615, 5
      %v692 = vsel %vm646, %v690, %v691
      %v693 = vrot.slane %v691, 4
      %v694 = vrot.slane %v616, 5
      %v695 = vsel %vm646, %v693, %v694
      %v696 = vrot.slane %v617, 5
      %v697 = vrot.slane %v696, 4
      %v698 = vrot.slane %v618, 5
      %v699 = vsel %vm646, %v697, %v698
      %v700 = vrot.slane %v698, 4
      %v701 = vrot.slane %v619, 5
      %v702 = vsel %vm646, %v700, %v701
      %703 = vrot.lane.b32.xlu0 %v650, 8
      %v704 = vpop.permute.xlu0 %703
      %705 = vrot.lane.b32.xlu0 %v653, 8
      %v706 = vpop.permute.xlu0 %705
      %707 = vrot.lane.b32.xlu0 %v657, 8
      %v708 = vpop.permute.xlu0 %707
      %709 = vrot.lane.b32.xlu0 %v660, 8
      %v710 = vpop.permute.xlu0 %709
      %711 = vrot.lane.b32.xlu0 %v664, 8
      %v712 = vpop.permute.xlu0 %711
      %713 = vrot.lane.b32.xlu0 %v667, 8
      %v714 = vpop.permute.xlu0 %713
      %715 = vrot.lane.b32.xlu0 %v671, 8
      %v716 = vpop.permute.xlu0 %715
      %717 = vrot.lane.b32.xlu0 %v674, 8
      %v718 = vpop.permute.xlu0 %717
      %719 = vrot.lane.b32.xlu0 %v678, 8
      %v720 = vpop.permute.xlu0 %719
      %721 = vrot.lane.b32.xlu0 %v681, 8
      %v722 = vpop.permute.xlu0 %721
      %723 = vrot.lane.b32.xlu0 %v685, 8
      %v724 = vpop.permute.xlu0 %723
      %725 = vrot.lane.b32.xlu0 %v688, 8
      %v726 = vpop.permute.xlu0 %725
      %727 = vrot.lane.b32.xlu0 %v692, 8
      %v728 = vpop.permute.xlu0 %727
      %729 = vrot.lane.b32.xlu0 %v695, 8
      %v730 = vpop.permute.xlu0 %729
      %731 = vrot.lane.b32.xlu0 %v699, 8
      %v732 = vpop.permute.xlu0 %731
      %733 = vrot.lane.b32.xlu0 %v702, 8
      %v734 = vpop.permute.xlu0 %733
      %vm751 = vcmask 93248
      %752 = vst.msk [vmem:[#allocation2] sm:$0xf] %vm751, %v704
      %753 = vst.msk [vmem:[#allocation2 + $0x4] sm:$0xf] %vm751, %v706
      %754 = vst.msk [vmem:[#allocation2 + $0x8] sm:$0xf] %vm751, %v708
      %755 = vst.msk [vmem:[#allocation2 + $0xc] sm:$0xf] %vm751, %v710
      %756 = vst.msk [vmem:[#allocation2 + $0x10] sm:$0xf] %vm751, %v712
      %757 = vst.msk [vmem:[#allocation2 + $0x14] sm:$0xf] %vm751, %v714
      %758 = vst.msk [vmem:[#allocation2 + $0x18] sm:$0xf] %vm751, %v716
      %759 = vst.msk [vmem:[#allocation2 + $0x1c] sm:$0xf] %vm751, %v718
      %760 = vst.msk [vmem:[#allocation2 + $0x20] sm:$0xf] %vm751, %v720
      %761 = vst.msk [vmem:[#allocation2 + $0x24] sm:$0xf] %vm751, %v722
      %762 = vst.msk [vmem:[#allocation2 + $0x28] sm:$0xf] %vm751, %v724
      %763 = vst.msk [vmem:[#allocation2 + $0x2c] sm:$0xf] %vm751, %v726
      %764 = vst.msk [vmem:[#allocation2 + $0x30] sm:$0xf] %vm751, %v728
      %765 = vst.msk [vmem:[#allocation2 + $0x34] sm:$0xf] %vm751, %v730
      %766 = vst.msk [vmem:[#allocation2 + $0x38] sm:$0xf] %vm751, %v732
      %767 = vst.msk [vmem:[#allocation2 + $0x3c] sm:$0xf] %vm751, %v734
      %s768 = sadd.s32 %s259, 1
      %s769 = smul.u32 %s768, 3
      %s770 = smul.addr %s769, 4
      %s771 = scalar_lea.vmem %s233, %s770
      %v772 = vld [vmem:[%s771] sm:$0xf]
      %v773 = vld [vmem:[%s771 + $0x4] sm:$0xf]
      %v774 = vld [vmem:[%s771 + $0xc] sm:$0xf]
      %v775 = vld [vmem:[%s771 + $0x10] sm:$0xf]
      %v776 = vld [vmem:[%s771 + $0x18] sm:$0xf]
      %v777 = vld [vmem:[%s771 + $0x1c] sm:$0xf]
      %v778 = vld [vmem:[%s771 + $0x24] sm:$0xf]
      %v779 = vld [vmem:[%s771 + $0x28] sm:$0xf]
      %v780 = vld [vmem:[%s771 + $0x30] sm:$0xf]
      %v781 = vld [vmem:[%s771 + $0x34] sm:$0xf]
      %v782 = vld [vmem:[%s771 + $0x3c] sm:$0xf]
      %v783 = vld [vmem:[%s771 + $0x40] sm:$0xf]
      %v784 = vld [vmem:[%s771 + $0x48] sm:$0xf]
      %v785 = vld [vmem:[%s771 + $0x4c] sm:$0xf]
      %v786 = vld [vmem:[%s771 + $0x54] sm:$0xf]
      %v787 = vld [vmem:[%s771 + $0x58] sm:$0xf]
      %804 = vrot.lane.b32.xlu0 %v772, 12
      %v805 = vpop.permute.xlu0 %804
      %806 = vrot.lane.b32.xlu0 %v773, 12
      %v807 = vpop.permute.xlu0 %806
      %808 = vrot.lane.b32.xlu0 %v774, 12
      %v809 = vpop.permute.xlu0 %808
      %810 = vrot.lane.b32.xlu0 %v775, 12
      %v811 = vpop.permute.xlu0 %810
      %812 = vrot.lane.b32.xlu0 %v776, 12
      %v813 = vpop.permute.xlu0 %812
      %814 = vrot.lane.b32.xlu0 %v777, 12
      %v815 = vpop.permute.xlu0 %814
      %816 = vrot.lane.b32.xlu0 %v778, 12
      %v817 = vpop.permute.xlu0 %816
      %818 = vrot.lane.b32.xlu0 %v779, 12
      %v819 = vpop.permute.xlu0 %818
      %820 = vrot.lane.b32.xlu0 %v780, 12
      %v821 = vpop.permute.xlu0 %820
      %822 = vrot.lane.b32.xlu0 %v781, 12
      %v823 = vpop.permute.xlu0 %822
      %824 = vrot.lane.b32.xlu0 %v782, 12
      %v825 = vpop.permute.xlu0 %824
      %826 = vrot.lane.b32.xlu0 %v783, 12
      %v827 = vpop.permute.xlu0 %826
      %828 = vrot.lane.b32.xlu0 %v784, 12
      %v829 = vpop.permute.xlu0 %828
      %830 = vrot.lane.b32.xlu0 %v785, 12
      %v831 = vpop.permute.xlu0 %830
      %832 = vrot.lane.b32.xlu0 %v786, 12
      %v833 = vpop.permute.xlu0 %832
      %834 = vrot.lane.b32.xlu0 %v787, 12
      %v835 = vpop.permute.xlu0 %834
      %vm852 = vcmask 126048
      %853 = vst.msk [vmem:[#allocation2] sm:$0xf] %vm852, %v805
      %854 = vst.msk [vmem:[#allocation2 + $0x4] sm:$0xf] %vm852, %v807
      %855 = vst.msk [vmem:[#allocation2 + $0x8] sm:$0xf] %vm852, %v809
      %856 = vst.msk [vmem:[#allocation2 + $0xc] sm:$0xf] %vm852, %v811
      %857 = vst.msk [vmem:[#allocation2 + $0x10] sm:$0xf] %vm852, %v813
      %858 = vst.msk [vmem:[#allocation2 + $0x14] sm:$0xf] %vm852, %v815
      %859 = vst.msk [vmem:[#allocation2 + $0x18] sm:$0xf] %vm852, %v817
      %860 = vst.msk [vmem:[#allocation2 + $0x1c] sm:$0xf] %vm852, %v819
      %861 = vst.msk [vmem:[#allocation2 + $0x20] sm:$0xf] %vm852, %v821
      %862 = vst.msk [vmem:[#allocation2 + $0x24] sm:$0xf] %vm852, %v823
      %863 = vst.msk [vmem:[#allocation2 + $0x28] sm:$0xf] %vm852, %v825
      %864 = vst.msk [vmem:[#allocation2 + $0x2c] sm:$0xf] %vm852, %v827
      %865 = vst.msk [vmem:[#allocation2 + $0x30] sm:$0xf] %vm852, %v829
      %866 = vst.msk [vmem:[#allocation2 + $0x34] sm:$0xf] %vm852, %v831
      %867 = vst.msk [vmem:[#allocation2 + $0x38] sm:$0xf] %vm852, %v833
      %868 = vst.msk [vmem:[#allocation2 + $0x3c] sm:$0xf] %vm852, %v835
      %v869 = vld [vmem:[%s771] sm:$0xf]
      %v870 = vld [vmem:[%s771 + $0x4] sm:$0xf]
      %v871 = vld [vmem:[%s771 + $0x8] sm:$0x1]
      %v872 = vld [vmem:[%s771 + $0xc] sm:$0xf]
      %v873 = vld [vmem:[%s771 + $0x10] sm:$0xf]
      %v874 = vld [vmem:[%s771 + $0x14] sm:$0x1]
      %v875 = vld [vmem:[%s771 + $0x18] sm:$0xf]
      %v876 = vld [vmem:[%s771 + $0x1c] sm:$0xf]
      %v877 = vld [vmem:[%s771 + $0x20] sm:$0x1]
      %v878 = vld [vmem:[%s771 + $0x24] sm:$0xf]
      %v879 = vld [vmem:[%s771 + $0x28] sm:$0xf]
      %v880 = vld [vmem:[%s771 + $0x2c] sm:$0x1]
      %v881 = vld [vmem:[%s771 + $0x30] sm:$0xf]
      %v882 = vld [vmem:[%s771 + $0x34] sm:$0xf]
      %v883 = vld [vmem:[%s771 + $0x38] sm:$0x1]
      %v884 = vld [vmem:[%s771 + $0x3c] sm:$0xf]
      %v885 = vld [vmem:[%s771 + $0x40] sm:$0xf]
      %v886 = vld [vmem:[%s771 + $0x44] sm:$0x1]
      %v887 = vld [vmem:[%s771 + $0x48] sm:$0xf]
      %v888 = vld [vmem:[%s771 + $0x4c] sm:$0xf]
      %v889 = vld [vmem:[%s771 + $0x50] sm:$0x1]
      %v890 = vld [vmem:[%s771 + $0x54] sm:$0xf]
      %v891 = vld [vmem:[%s771 + $0x58] sm:$0xf]
      %v892 = vld [vmem:[%s771 + $0x5c] sm:$0x1]
      %v894 = vshrl.u32 %v869, 16
      %v896 = vrot.slane %v894, 4
      %v897 = vshll.u32 %v869, 16
      %v899 = vrot.slane %v897, 5
      %v900 = vor.u32 %v896, %v899
      %v901 = vrot.slane %v900, 4
      %v903 = vshll.u32 %v870, 16
      %v905 = vrot.slane %v903, 5
      %v906 = vsel %vm338, %v901, %v905
      %v907 = vshrl.u32 %v870, 16
      %v909 = vrot.slane %v907, 4
      %v910 = vor.u32 %v909, %v905
      %v911 = vrot.slane %v910, 4
      %v913 = vshll.u32 %v871, 16
      %v915 = vrot.slane %v913, 5
      %v916 = vsel %vm338, %v911, %v915
      %v918 = vshrl.u32 %v872, 16
      %v920 = vrot.slane %v918, 4
      %v921 = vshll.u32 %v872, 16
      %v923 = vrot.slane %v921, 5
      %v924 = vor.u32 %v920, %v923
      %v925 = vrot.slane %v924, 4
      %v927 = vshll.u32 %v873, 16
      %v929 = vrot.slane %v927, 5
      %v930 = vsel %vm338, %v925, %v929
      %v931 = vshrl.u32 %v873, 16
      %v933 = vrot.slane %v931, 4
      %v934 = vor.u32 %v933, %v929
      %v935 = vrot.slane %v934, 4
      %v937 = vshll.u32 %v874, 16
      %v939 = vrot.slane %v937, 5
      %v940 = vsel %vm338, %v935, %v939
      %v942 = vshrl.u32 %v875, 16
      %v944 = vrot.slane %v942, 4
      %v945 = vshll.u32 %v875, 16
      %v947 = vrot.slane %v945, 5
      %v948 = vor.u32 %v944, %v947
      %v949 = vrot.slane %v948, 4
      %v951 = vshll.u32 %v876, 16
      %v953 = vrot.slane %v951, 5
      %v954 = vsel %vm338, %v949, %v953
      %v955 = vshrl.u32 %v876, 16
      %v957 = vrot.slane %v955, 4
      %v958 = vor.u32 %v957, %v953
      %v959 = vrot.slane %v958, 4
      %v961 = vshll.u32 %v877, 16
      %v963 = vrot.slane %v961, 5
      %v964 = vsel %vm338, %v959, %v963
      %v966 = vshrl.u32 %v878, 16
      %v968 = vrot.slane %v966, 4
      %v969 = vshll.u32 %v878, 16
      %v971 = vrot.slane %v969, 5
      %v972 = vor.u32 %v968, %v971
      %v973 = vrot.slane %v972, 4
      %v975 = vshll.u32 %v879, 16
      %v977 = vrot.slane %v975, 5
      %v978 = vsel %vm338, %v973, %v977
      %v979 = vshrl.u32 %v879, 16
      %v981 = vrot.slane %v979, 4
      %v982 = vor.u32 %v981, %v977
      %v983 = vrot.slane %v982, 4
      %v985 = vshll.u32 %v880, 16
      %v987 = vrot.slane %v985, 5
      %v988 = vsel %vm338, %v983, %v987
      %v990 = vshrl.u32 %v881, 16
      %v992 = vrot.slane %v990, 4
      %v993 = vshll.u32 %v881, 16
      %v995 = vrot.slane %v993, 5
      %v996 = vor.u32 %v992, %v995
      %v997 = vrot.slane %v996, 4
      %v999 = vshll.u32 %v882, 16
      %v1001 = vrot.slane %v999, 5
      %v1002 = vsel %vm338, %v997, %v1001
      %v1003 = vshrl.u32 %v882, 16
      %v1005 = vrot.slane %v1003, 4
      %v1006 = vor.u32 %v1005, %v1001
      %v1007 = vrot.slane %v1006, 4
      %v1009 = vshll.u32 %v883, 16
      %v1011 = vrot.slane %v1009, 5
      %v1012 = vsel %vm338, %v1007, %v1011
      %v1014 = vshrl.u32 %v884, 16
      %v1016 = vrot.slane %v1014, 4
      %v1017 = vshll.u32 %v884, 16
      %v1019 = vrot.slane %v1017, 5
      %v1020 = vor.u32 %v1016, %v1019
      %v1021 = vrot.slane %v1020, 4
      %v1023 = vshll.u32 %v885, 16
      %v1025 = vrot.slane %v1023, 5
      %v1026 = vsel %vm338, %v1021, %v1025
      %v1027 = vshrl.u32 %v885, 16
      %v1029 = vrot.slane %v1027, 4
      %v1030 = vor.u32 %v1029, %v1025
      %v1031 = vrot.slane %v1030, 4
      %v1033 = vshll.u32 %v886, 16
      %v1035 = vrot.slane %v1033, 5
      %v1036 = vsel %vm338, %v1031, %v1035
      %v1038 = vshrl.u32 %v887, 16
      %v1040 = vrot.slane %v1038, 4
      %v1041 = vshll.u32 %v887, 16
      %v1043 = vrot.slane %v1041, 5
      %v1044 = vor.u32 %v1040, %v1043
      %v1045 = vrot.slane %v1044, 4
      %v1047 = vshll.u32 %v888, 16
      %v1049 = vrot.slane %v1047, 5
      %v1050 = vsel %vm338, %v1045, %v1049
      %v1051 = vshrl.u32 %v888, 16
      %v1053 = vrot.slane %v1051, 4
      %v1054 = vor.u32 %v1053, %v1049
      %v1055 = vrot.slane %v1054, 4
      %v1057 = vshll.u32 %v889, 16
      %v1059 = vrot.slane %v1057, 5
      %v1060 = vsel %vm338, %v1055, %v1059
      %v1062 = vshrl.u32 %v890, 16
      %v1064 = vrot.slane %v1062, 4
      %v1065 = vshll.u32 %v890, 16
      %v1067 = vrot.slane %v1065, 5
      %v1068 = vor.u32 %v1064, %v1067
      %v1069 = vrot.slane %v1068, 4
      %v1071 = vshll.u32 %v891, 16
      %v1073 = vrot.slane %v1071, 5
      %v1074 = vsel %vm338, %v1069, %v1073
      %v1075 = vshrl.u32 %v891, 16
      %v1077 = vrot.slane %v1075, 4
      %v1078 = vor.u32 %v1077, %v1073
      %v1079 = vrot.slane %v1078, 4
      %v1081 = vshll.u32 %v892, 16
      %v1083 = vrot.slane %v1081, 5
      %v1084 = vsel %vm338, %v1079, %v1083
      %1085 = vrot.lane.b32.xlu0 %v906, 16
      %v1086 = vpop.permute.xlu0 %1085
      %1087 = vrot.lane.b32.xlu0 %v916, 16
      %v1088 = vpop.permute.xlu0 %1087
      %1089 = vrot.lane.b32.xlu0 %v930, 16
      %v1090 = vpop.permute.xlu0 %1089
      %1091 = vrot.lane.b32.xlu0 %v940, 16
      %v1092 = vpop.permute.xlu0 %1091
      %1093 = vrot.lane.b32.xlu0 %v954, 16
      %v1094 = vpop.permute.xlu0 %1093
      %1095 = vrot.lane.b32.xlu0 %v964, 16
      %v1096 = vpop.permute.xlu0 %1095
      %1097 = vrot.lane.b32.xlu0 %v978, 16
      %v1098 = vpop.permute.xlu0 %1097
      %1099 = vrot.lane.b32.xlu0 %v988, 16
      %v1100 = vpop.permute.xlu0 %1099
      %1101 = vrot.lane.b32.xlu0 %v1002, 16
      %v1102 = vpop.permute.xlu0 %1101
      %1103 = vrot.lane.b32.xlu0 %v1012, 16
      %v1104 = vpop.permute.xlu0 %1103
      %1105 = vrot.lane.b32.xlu0 %v1026, 16
      %v1106 = vpop.permute.xlu0 %1105
      %1107 = vrot.lane.b32.xlu0 %v1036, 16
      %v1108 = vpop.permute.xlu0 %1107
      %1109 = vrot.lane.b32.xlu0 %v1050, 16
      %v1110 = vpop.permute.xlu0 %1109
      %1111 = vrot.lane.b32.xlu0 %v1060, 16
      %v1112 = vpop.permute.xlu0 %1111
      %1113 = vrot.lane.b32.xlu0 %v1074, 16
      %v1114 = vpop.permute.xlu0 %1113
      %1115 = vrot.lane.b32.xlu0 %v1084, 16
      %v1116 = vpop.permute.xlu0 %1115
      %vm1133 = vcmask 158848
      %1134 = vst.msk [vmem:[#allocation2] sm:$0xf] %vm1133, %v1086
      %1135 = vst.msk [vmem:[#allocation2 + $0x4] sm:$0xf] %vm1133, %v1088
      %1136 = vst.msk [vmem:[#allocation2 + $0x8] sm:$0xf] %vm1133, %v1090
      %1137 = vst.msk [vmem:[#allocation2 + $0xc] sm:$0xf] %vm1133, %v1092
      %1138 = vst.msk [vmem:[#allocation2 + $0x10] sm:$0xf] %vm1133, %v1094
      %1139 = vst.msk [vmem:[#allocation2 + $0x14] sm:$0xf] %vm1133, %v1096
      %1140 = vst.msk [vmem:[#allocation2 + $0x18] sm:$0xf] %vm1133, %v1098
      %1141 = vst.msk [vmem:[#allocation2 + $0x1c] sm:$0xf] %vm1133, %v1100
      %1142 = vst.msk [vmem:[#allocation2 + $0x20] sm:$0xf] %vm1133, %v1102
      %1143 = vst.msk [vmem:[#allocation2 + $0x24] sm:$0xf] %vm1133, %v1104
      %1144 = vst.msk [vmem:[#allocation2 + $0x28] sm:$0xf] %vm1133, %v1106
      %1145 = vst.msk [vmem:[#allocation2 + $0x2c] sm:$0xf] %vm1133, %v1108
      %1146 = vst.msk [vmem:[#allocation2 + $0x30] sm:$0xf] %vm1133, %v1110
      %1147 = vst.msk [vmem:[#allocation2 + $0x34] sm:$0xf] %vm1133, %v1112
      %1148 = vst.msk [vmem:[#allocation2 + $0x38] sm:$0xf] %vm1133, %v1114
      %1149 = vst.msk [vmem:[#allocation2 + $0x3c] sm:$0xf] %vm1133, %v1116
      %v1150 = vld [vmem:[%s771] sm:$0xe]
      %v1151 = vld [vmem:[%s771 + $0x4] sm:$0xf]
      %v1152 = vld [vmem:[%s771 + $0x8] sm:$0x1]
      %v1153 = vld [vmem:[%s771 + $0xc] sm:$0xe]
      %v1154 = vld [vmem:[%s771 + $0x10] sm:$0xf]
      %v1155 = vld [vmem:[%s771 + $0x14] sm:$0x1]
      %v1156 = vld [vmem:[%s771 + $0x18] sm:$0xe]
      %v1157 = vld [vmem:[%s771 + $0x1c] sm:$0xf]
      %v1158 = vld [vmem:[%s771 + $0x20] sm:$0x1]
      %v1159 = vld [vmem:[%s771 + $0x24] sm:$0xe]
      %v1160 = vld [vmem:[%s771 + $0x28] sm:$0xf]
      %v1161 = vld [vmem:[%s771 + $0x2c] sm:$0x1]
      %v1162 = vld [vmem:[%s771 + $0x30] sm:$0xe]
      %v1163 = vld [vmem:[%s771 + $0x34] sm:$0xf]
      %v1164 = vld [vmem:[%s771 + $0x38] sm:$0x1]
      %v1165 = vld [vmem:[%s771 + $0x3c] sm:$0xe]
      %v1166 = vld [vmem:[%s771 + $0x40] sm:$0xf]
      %v1167 = vld [vmem:[%s771 + $0x44] sm:$0x1]
      %v1168 = vld [vmem:[%s771 + $0x48] sm:$0xe]
      %v1169 = vld [vmem:[%s771 + $0x4c] sm:$0xf]
      %v1170 = vld [vmem:[%s771 + $0x50] sm:$0x1]
      %v1171 = vld [vmem:[%s771 + $0x54] sm:$0xe]
      %v1172 = vld [vmem:[%s771 + $0x58] sm:$0xf]
      %v1173 = vld [vmem:[%s771 + $0x5c] sm:$0x1]
      %v1198 = vrot.slane %v1150, 5
      %v1199 = vrot.slane %v1198, 4
      %v1200 = vrot.slane %v1151, 5
      %v1201 = vsel %vm646, %v1199, %v1200
      %v1202 = vrot.slane %v1200, 4
      %v1203 = vrot.slane %v1152, 5
      %v1204 = vsel %vm646, %v1202, %v1203
      %v1205 = vrot.slane %v1153, 5
      %v1206 = vrot.slane %v1205, 4
      %v1207 = vrot.slane %v1154, 5
      %v1208 = vsel %vm646, %v1206, %v1207
      %v1209 = vrot.slane %v1207, 4
      %v1210 = vrot.slane %v1155, 5
      %v1211 = vsel %vm646, %v1209, %v1210
      %v1212 = vrot.slane %v1156, 5
      %v1213 = vrot.slane %v1212, 4
      %v1214 = vrot.slane %v1157, 5
      %v1215 = vsel %vm646, %v1213, %v1214
      %v1216 = vrot.slane %v1214, 4
      %v1217 = vrot.slane %v1158, 5
      %v1218 = vsel %vm646, %v1216, %v1217
      %v1219 = vrot.slane %v1159, 5
      %v1220 = vrot.slane %v1219, 4
      %v1221 = vrot.slane %v1160, 5
      %v1222 = vsel %vm646, %v1220, %v1221
      %v1223 = vrot.slane %v1221, 4
      %v1224 = vrot.slane %v1161, 5
      %v1225 = vsel %vm646, %v1223, %v1224
      %v1226 = vrot.slane %v1162, 5
      %v1227 = vrot.slane %v1226, 4
      %v1228 = vrot.slane %v1163, 5
      %v1229 = vsel %vm646, %v1227, %v1228
      %v1230 = vrot.slane %v1228, 4
      %v1231 = vrot.slane %v1164, 5
      %v1232 = vsel %vm646, %v1230, %v1231
      %v1233 = vrot.slane %v1165, 5
      %v1234 = vrot.slane %v1233, 4
      %v1235 = vrot.slane %v1166, 5
      %v1236 = vsel %vm646, %v1234, %v1235
      %v1237 = vrot.slane %v1235, 4
      %v1238 = vrot.slane %v1167, 5
      %v1239 = vsel %vm646, %v1237, %v1238
      %v1240 = vrot.slane %v1168, 5
      %v1241 = vrot.slane %v1240, 4
      %v1242 = vrot.slane %v1169, 5
      %v1243 = vsel %vm646, %v1241, %v1242
      %v1244 = vrot.slane %v1242, 4
      %v1245 = vrot.slane %v1170, 5
      %v1246 = vsel %vm646, %v1244, %v1245
      %v1247 = vrot.slane %v1171, 5
      %v1248 = vrot.slane %v1247, 4
      %v1249 = vrot.slane %v1172, 5
      %v1250 = vsel %vm646, %v1248, %v1249
      %v1251 = vrot.slane %v1249, 4
      %v1252 = vrot.slane %v1173, 5
      %v1253 = vsel %vm646, %v1251, %v1252
      %1254 = vrot.lane.b32.xlu0 %v1201, 20
      %v1255 = vpop.permute.xlu0 %1254
      %1256 = vrot.lane.b32.xlu0 %v1204, 20
      %v1257 = vpop.permute.xlu0 %1256
      %1258 = vrot.lane.b32.xlu0 %v1208, 20
      %v1259 = vpop.permute.xlu0 %1258
      %1260 = vrot.lane.b32.xlu0 %v1211, 20
      %v1261 = vpop.permute.xlu0 %1260
      %1262 = vrot.lane.b32.xlu0 %v1215, 20
      %v1263 = vpop.permute.xlu0 %1262
      %1264 = vrot.lane.b32.xlu0 %v1218, 20
      %v1265 = vpop.permute.xlu0 %1264
      %1266 = vrot.lane.b32.xlu0 %v1222, 20
      %v1267 = vpop.permute.xlu0 %1266
      %1268 = vrot.lane.b32.xlu0 %v1225, 20
      %v1269 = vpop.permute.xlu0 %1268
      %1270 = vrot.lane.b32.xlu0 %v1229, 20
      %v1271 = vpop.permute.xlu0 %1270
      %1272 = vrot.lane.b32.xlu0 %v1232, 20
      %v1273 = vpop.permute.xlu0 %1272
      %1274 = vrot.lane.b32.xlu0 %v1236, 20
      %v1275 = vpop.permute.xlu0 %1274
      %1276 = vrot.lane.b32.xlu0 %v1239, 20
      %v1277 = vpop.permute.xlu0 %1276
      %1278 = vrot.lane.b32.xlu0 %v1243, 20
      %v1279 = vpop.permute.xlu0 %1278
      %1280 = vrot.lane.b32.xlu0 %v1246, 20
      %v1281 = vpop.permute.xlu0 %1280
      %1282 = vrot.lane.b32.xlu0 %v1250, 20
      %v1283 = vpop.permute.xlu0 %1282
      %1284 = vrot.lane.b32.xlu0 %v1253, 20
      %v1285 = vpop.permute.xlu0 %1284
      %vm1302 = vcmask 191648
      %1303 = vst.msk [vmem:[#allocation2] sm:$0xf] %vm1302, %v1255
      %1304 = vst.msk [vmem:[#allocation2 + $0x4] sm:$0xf] %vm1302, %v1257
      %1305 = vst.msk [vmem:[#allocation2 + $0x8] sm:$0xf] %vm1302, %v1259
      %1306 = vst.msk [vmem:[#allocation2 + $0xc] sm:$0xf] %vm1302, %v1261
      %1307 = vst.msk [vmem:[#allocation2 + $0x10] sm:$0xf] %vm1302, %v1263
      %1308 = vst.msk [vmem:[#allocation2 + $0x14] sm:$0xf] %vm1302, %v1265
      %1309 = vst.msk [vmem:[#allocation2 + $0x18] sm:$0xf] %vm1302, %v1267
      %1310 = vst.msk [vmem:[#allocation2 + $0x1c] sm:$0xf] %vm1302, %v1269
      %1311 = vst.msk [vmem:[#allocation2 + $0x20] sm:$0xf] %vm1302, %v1271
      %1312 = vst.msk [vmem:[#allocation2 + $0x24] sm:$0xf] %vm1302, %v1273
      %1313 = vst.msk [vmem:[#allocation2 + $0x28] sm:$0xf] %vm1302, %v1275
      %1314 = vst.msk [vmem:[#allocation2 + $0x2c] sm:$0xf] %vm1302, %v1277
      %1315 = vst.msk [vmem:[#allocation2 + $0x30] sm:$0xf] %vm1302, %v1279
      %1316 = vst.msk [vmem:[#allocation2 + $0x34] sm:$0xf] %vm1302, %v1281
      %1317 = vst.msk [vmem:[#allocation2 + $0x38] sm:$0xf] %vm1302, %v1283
      %1318 = vst.msk [vmem:[#allocation2 + $0x3c] sm:$0xf] %vm1302, %v1285
      %s1319 = sadd.s32 %s259, 2
      %s1320 = smul.u32 %s1319, 3
      %s1321 = smul.addr %s1320, 4
      %s1322 = scalar_lea.vmem %s233, %s1321
      %v1323 = vld [vmem:[%s1322] sm:$0xf]
      %v1324 = vld [vmem:[%s1322 + $0x4] sm:$0xf]
      %v1325 = vld [vmem:[%s1322 + $0xc] sm:$0xf]
      %v1326 = vld [vmem:[%s1322 + $0x10] sm:$0xf]
      %v1327 = vld [vmem:[%s1322 + $0x18] sm:$0xf]
      %v1328 = vld [vmem:[%s1322 + $0x1c] sm:$0xf]
      %v1329 = vld [vmem:[%s1322 + $0x24] sm:$0xf]
      %v1330 = vld [vmem:[%s1322 + $0x28] sm:$0xf]
      %v1331 = vld [vmem:[%s1322 + $0x30] sm:$0xf]
      %v1332 = vld [vmem:[%s1322 + $0x34] sm:$0xf]
      %v1333 = vld [vmem:[%s1322 + $0x3c] sm:$0xf]
      %v1334 = vld [vmem:[%s1322 + $0x40] sm:$0xf]
      %v1335 = vld [vmem:[%s1322 + $0x48] sm:$0xf]
      %v1336 = vld [vmem:[%s1322 + $0x4c] sm:$0xf]
      %v1337 = vld [vmem:[%s1322 + $0x54] sm:$0xf]
      %v1338 = vld [vmem:[%s1322 + $0x58] sm:$0xf]
      %1355 = vrot.lane.b32.xlu0 %v1323, 24
      %v1356 = vpop.permute.xlu0 %1355
      %1357 = vrot.lane.b32.xlu0 %v1324, 24
      %v1358 = vpop.permute.xlu0 %1357
      %1359 = vrot.lane.b32.xlu0 %v1325, 24
      %v1360 = vpop.permute.xlu0 %1359
      %1361 = vrot.lane.b32.xlu0 %v1326, 24
      %v1362 = vpop.permute.xlu0 %1361
      %1363 = vrot.lane.b32.xlu0 %v1327, 24
      %v1364 = vpop.permute.xlu0 %1363
      %1365 = vrot.lane.b32.xlu0 %v1328, 24
      %v1366 = vpop.permute.xlu0 %1365
      %1367 = vrot.lane.b32.xlu0 %v1329, 24
      %v1368 = vpop.permute.xlu0 %1367
      %1369 = vrot.lane.b32.xlu0 %v1330, 24
      %v1370 = vpop.permute.xlu0 %1369
      %1371 = vrot.lane.b32.xlu0 %v1331, 24
      %v1372 = vpop.permute.xlu0 %1371
      %1373 = vrot.lane.b32.xlu0 %v1332, 24
      %v1374 = vpop.permute.xlu0 %1373
      %1375 = vrot.lane.b32.xlu0 %v1333, 24
      %v1376 = vpop.permute.xlu0 %1375
      %1377 = vrot.lane.b32.xlu0 %v1334, 24
      %v1378 = vpop.permute.xlu0 %1377
      %1379 = vrot.lane.b32.xlu0 %v1335, 24
      %v1380 = vpop.permute.xlu0 %1379
      %1381 = vrot.lane.b32.xlu0 %v1336, 24
      %v1382 = vpop.permute.xlu0 %1381
      %1383 = vrot.lane.b32.xlu0 %v1337, 24
      %v1384 = vpop.permute.xlu0 %1383
      %1385 = vrot.lane.b32.xlu0 %v1338, 24
      %v1386 = vpop.permute.xlu0 %1385
      %vm1403 = vcmask 224448
      %1404 = vst.msk [vmem:[#allocation2] sm:$0xf] %vm1403, %v1356
      %1405 = vst.msk [vmem:[#allocation2 + $0x4] sm:$0xf] %vm1403, %v1358
      %1406 = vst.msk [vmem:[#allocation2 + $0x8] sm:$0xf] %vm1403, %v1360
      %1407 = vst.msk [vmem:[#allocation2 + $0xc] sm:$0xf] %vm1403, %v1362
      %1408 = vst.msk [vmem:[#allocation2 + $0x10] sm:$0xf] %vm1403, %v1364
      %1409 = vst.msk [vmem:[#allocation2 + $0x14] sm:$0xf] %vm1403, %v1366
      %1410 = vst.msk [vmem:[#allocation2 + $0x18] sm:$0xf] %vm1403, %v1368
      %1411 = vst.msk [vmem:[#allocation2 + $0x1c] sm:$0xf] %vm1403, %v1370
      %1412 = vst.msk [vmem:[#allocation2 + $0x20] sm:$0xf] %vm1403, %v1372
      %1413 = vst.msk [vmem:[#allocation2 + $0x24] sm:$0xf] %vm1403, %v1374
      %1414 = vst.msk [vmem:[#allocation2 + $0x28] sm:$0xf] %vm1403, %v1376
      %1415 = vst.msk [vmem:[#allocation2 + $0x2c] sm:$0xf] %vm1403, %v1378
      %1416 = vst.msk [vmem:[#allocation2 + $0x30] sm:$0xf] %vm1403, %v1380
      %1417 = vst.msk [vmem:[#allocation2 + $0x34] sm:$0xf] %vm1403, %v1382
      %1418 = vst.msk [vmem:[#allocation2 + $0x38] sm:$0xf] %vm1403, %v1384
      %1419 = vst.msk [vmem:[#allocation2 + $0x3c] sm:$0xf] %vm1403, %v1386
      %v1420 = vld [vmem:[%s1322] sm:$0xf]
      %v1421 = vld [vmem:[%s1322 + $0x4] sm:$0xf]
      %v1422 = vld [vmem:[%s1322 + $0x8] sm:$0x1]
      %v1423 = vld [vmem:[%s1322 + $0xc] sm:$0xf]
      %v1424 = vld [vmem:[%s1322 + $0x10] sm:$0xf]
      %v1425 = vld [vmem:[%s1322 + $0x14] sm:$0x1]
      %v1426 = vld [vmem:[%s1322 + $0x18] sm:$0xf]
      %v1427 = vld [vmem:[%s1322 + $0x1c] sm:$0xf]
      %v1428 = vld [vmem:[%s1322 + $0x20] sm:$0x1]
      %v1429 = vld [vmem:[%s1322 + $0x24] sm:$0xf]
      %v1430 = vld [vmem:[%s1322 + $0x28] sm:$0xf]
      %v1431 = vld [vmem:[%s1322 + $0x2c] sm:$0x1]
      %v1432 = vld [vmem:[%s1322 + $0x30] sm:$0xf]
      %v1433 = vld [vmem:[%s1322 + $0x34] sm:$0xf]
      %v1434 = vld [vmem:[%s1322 + $0x38] sm:$0x1]
      %v1435 = vld [vmem:[%s1322 + $0x3c] sm:$0xf]
      %v1436 = vld [vmem:[%s1322 + $0x40] sm:$0xf]
      %v1437 = vld [vmem:[%s1322 + $0x44] sm:$0x1]
      %v1438 = vld [vmem:[%s1322 + $0x48] sm:$0xf]
      %v1439 = vld [vmem:[%s1322 + $0x4c] sm:$0xf]
      %v1440 = vld [vmem:[%s1322 + $0x50] sm:$0x1]
      %v1441 = vld [vmem:[%s1322 + $0x54] sm:$0xf]
      %v1442 = vld [vmem:[%s1322 + $0x58] sm:$0xf]
      %v1443 = vld [vmem:[%s1322 + $0x5c] sm:$0x1]
      %v1445 = vshrl.u32 %v1420, 16
      %v1447 = vrot.slane %v1445, 4
      %v1448 = vshll.u32 %v1420, 16
      %v1450 = vrot.slane %v1448, 5
      %v1451 = vor.u32 %v1447, %v1450
      %v1452 = vrot.slane %v1451, 4
      %v1454 = vshll.u32 %v1421, 16
      %v1456 = vrot.slane %v1454, 5
      %v1457 = vsel %vm338, %v1452, %v1456
      %v1458 = vshrl.u32 %v1421, 16
      %v1460 = vrot.slane %v1458, 4
      %v1461 = vor.u32 %v1460, %v1456
      %v1462 = vrot.slane %v1461, 4
      %v1464 = vshll.u32 %v1422, 16
      %v1466 = vrot.slane %v1464, 5
      %v1467 = vsel %vm338, %v1462, %v1466
      %v1469 = vshrl.u32 %v1423, 16
      %v1471 = vrot.slane %v1469, 4
      %v1472 = vshll.u32 %v1423, 16
      %v1474 = vrot.slane %v1472, 5
      %v1475 = vor.u32 %v1471, %v1474
      %v1476 = vrot.slane %v1475, 4
      %v1478 = vshll.u32 %v1424, 16
      %v1480 = vrot.slane %v1478, 5
      %v1481 = vsel %vm338, %v1476, %v1480
      %v1482 = vshrl.u32 %v1424, 16
      %v1484 = vrot.slane %v1482, 4
      %v1485 = vor.u32 %v1484, %v1480
      %v1486 = vrot.slane %v1485, 4
      %v1488 = vshll.u32 %v1425, 16
      %v1490 = vrot.slane %v1488, 5
      %v1491 = vsel %vm338, %v1486, %v1490
      %v1493 = vshrl.u32 %v1426, 16
      %v1495 = vrot.slane %v1493, 4
      %v1496 = vshll.u32 %v1426, 16
      %v1498 = vrot.slane %v1496, 5
      %v1499 = vor.u32 %v1495, %v1498
      %v1500 = vrot.slane %v1499, 4
      %v1502 = vshll.u32 %v1427, 16
      %v1504 = vrot.slane %v1502, 5
      %v1505 = vsel %vm338, %v1500, %v1504
      %v1506 = vshrl.u32 %v1427, 16
      %v1508 = vrot.slane %v1506, 4
      %v1509 = vor.u32 %v1508, %v1504
      %v1510 = vrot.slane %v1509, 4
      %v1512 = vshll.u32 %v1428, 16
      %v1514 = vrot.slane %v1512, 5
      %v1515 = vsel %vm338, %v1510, %v1514
      %v1517 = vshrl.u32 %v1429, 16
      %v1519 = vrot.slane %v1517, 4
      %v1520 = vshll.u32 %v1429, 16
      %v1522 = vrot.slane %v1520, 5
      %v1523 = vor.u32 %v1519, %v1522
      %v1524 = vrot.slane %v1523, 4
      %v1526 = vshll.u32 %v1430, 16
      %v1528 = vrot.slane %v1526, 5
      %v1529 = vsel %vm338, %v1524, %v1528
      %v1530 = vshrl.u32 %v1430, 16
      %v1532 = vrot.slane %v1530, 4
      %v1533 = vor.u32 %v1532, %v1528
      %v1534 = vrot.slane %v1533, 4
      %v1536 = vshll.u32 %v1431, 16
      %v1538 = vrot.slane %v1536, 5
      %v1539 = vsel %vm338, %v1534, %v1538
      %v1541 = vshrl.u32 %v1432, 16
      %v1543 = vrot.slane %v1541, 4
      %v1544 = vshll.u32 %v1432, 16
      %v1546 = vrot.slane %v1544, 5
      %v1547 = vor.u32 %v1543, %v1546
      %v1548 = vrot.slane %v1547, 4
      %v1550 = vshll.u32 %v1433, 16
      %v1552 = vrot.slane %v1550, 5
      %v1553 = vsel %vm338, %v1548, %v1552
      %v1554 = vshrl.u32 %v1433, 16
      %v1556 = vrot.slane %v1554, 4
      %v1557 = vor.u32 %v1556, %v1552
      %v1558 = vrot.slane %v1557, 4
      %v1560 = vshll.u32 %v1434, 16
      %v1562 = vrot.slane %v1560, 5
      %v1563 = vsel %vm338, %v1558, %v1562
      %v1565 = vshrl.u32 %v1435, 16
      %v1567 = vrot.slane %v1565, 4
      %v1568 = vshll.u32 %v1435, 16
      %v1570 = vrot.slane %v1568, 5
      %v1571 = vor.u32 %v1567, %v1570
      %v1572 = vrot.slane %v1571, 4
      %v1574 = vshll.u32 %v1436, 16
      %v1576 = vrot.slane %v1574, 5
      %v1577 = vsel %vm338, %v1572, %v1576
      %v1578 = vshrl.u32 %v1436, 16
      %v1580 = vrot.slane %v1578, 4
      %v1581 = vor.u32 %v1580, %v1576
      %v1582 = vrot.slane %v1581, 4
      %v1584 = vshll.u32 %v1437, 16
      %v1586 = vrot.slane %v1584, 5
      %v1587 = vsel %vm338, %v1582, %v1586
      %v1589 = vshrl.u32 %v1438, 16
      %v1591 = vrot.slane %v1589, 4
      %v1592 = vshll.u32 %v1438, 16
      %v1594 = vrot.slane %v1592, 5
      %v1595 = vor.u32 %v1591, %v1594
      %v1596 = vrot.slane %v1595, 4
      %v1598 = vshll.u32 %v1439, 16
      %v1600 = vrot.slane %v1598, 5
      %v1601 = vsel %vm338, %v1596, %v1600
      %v1602 = vshrl.u32 %v1439, 16
      %v1604 = vrot.slane %v1602, 4
      %v1605 = vor.u32 %v1604, %v1600
      %v1606 = vrot.slane %v1605, 4
      %v1608 = vshll.u32 %v1440, 16
      %v1610 = vrot.slane %v1608, 5
      %v1611 = vsel %vm338, %v1606, %v1610
      %v1613 = vshrl.u32 %v1441, 16
      %v1615 = vrot.slane %v1613, 4
      %v1616 = vshll.u32 %v1441, 16
      %v1618 = vrot.slane %v1616, 5
      %v1619 = vor.u32 %v1615, %v1618
      %v1620 = vrot.slane %v1619, 4
      %v1622 = vshll.u32 %v1442, 16
      %v1624 = vrot.slane %v1622, 5
      %v1625 = vsel %vm338, %v1620, %v1624
      %v1626 = vshrl.u32 %v1442, 16
      %v1628 = vrot.slane %v1626, 4
      %v1629 = vor.u32 %v1628, %v1624
      %v1630 = vrot.slane %v1629, 4
      %v1632 = vshll.u32 %v1443, 16
      %v1634 = vrot.slane %v1632, 5
      %v1635 = vsel %vm338, %v1630, %v1634
      %1636 = vrot.lane.b32.xlu0 %v1457, 28
      %v1637 = vpop.permute.xlu0 %1636
      %1638 = vrot.lane.b32.xlu0 %v1467, 28
      %v1639 = vpop.permute.xlu0 %1638
      %1640 = vrot.lane.b32.xlu0 %v1481, 28
      %v1641 = vpop.permute.xlu0 %1640
      %1642 = vrot.lane.b32.xlu0 %v1491, 28
      %v1643 = vpop.permute.xlu0 %1642
      %1644 = vrot.lane.b32.xlu0 %v1505, 28
      %v1645 = vpop.permute.xlu0 %1644
      %1646 = vrot.lane.b32.xlu0 %v1515, 28
      %v1647 = vpop.permute.xlu0 %1646
      %1648 = vrot.lane.b32.xlu0 %v1529, 28
      %v1649 = vpop.permute.xlu0 %1648
      %1650 = vrot.lane.b32.xlu0 %v1539, 28
      %v1651 = vpop.permute.xlu0 %1650
      %1652 = vrot.lane.b32.xlu0 %v1553, 28
      %v1653 = vpop.permute.xlu0 %1652
      %1654 = vrot.lane.b32.xlu0 %v1563, 28
      %v1655 = vpop.permute.xlu0 %1654
      %1656 = vrot.lane.b32.xlu0 %v1577, 28
      %v1657 = vpop.permute.xlu0 %1656
      %1658 = vrot.lane.b32.xlu0 %v1587, 28
      %v1659 = vpop.permute.xlu0 %1658
      %1660 = vrot.lane.b32.xlu0 %v1601, 28
      %v1661 = vpop.permute.xlu0 %1660
      %1662 = vrot.lane.b32.xlu0 %v1611, 28
      %v1663 = vpop.permute.xlu0 %1662
      %1664 = vrot.lane.b32.xlu0 %v1625, 28
      %v1665 = vpop.permute.xlu0 %1664
      %1666 = vrot.lane.b32.xlu0 %v1635, 28
      %v1667 = vpop.permute.xlu0 %1666
      %vm1684 = vcmask 257248
      %1685 = vst.msk [vmem:[#allocation2] sm:$0xf] %vm1684, %v1637
      %1686 = vst.msk [vmem:[#allocation2 + $0x4] sm:$0xf] %vm1684, %v1639
      %1687 = vst.msk [vmem:[#allocation2 + $0x8] sm:$0xf] %vm1684, %v1641
      %1688 = vst.msk [vmem:[#allocation2 + $0xc] sm:$0xf] %vm1684, %v1643
      %1689 = vst.msk [vmem:[#allocation2 + $0x10] sm:$0xf] %vm1684, %v1645
      %1690 = vst.msk [vmem:[#allocation2 + $0x14] sm:$0xf] %vm1684, %v1647
      %1691 = vst.msk [vmem:[#allocation2 + $0x18] sm:$0xf] %vm1684, %v1649
      %1692 = vst.msk [vmem:[#allocation2 + $0x1c] sm:$0xf] %vm1684, %v1651
      %1693 = vst.msk [vmem:[#allocation2 + $0x20] sm:$0xf] %vm1684, %v1653
      %1694 = vst.msk [vmem:[#allocation2 + $0x24] sm:$0xf] %vm1684, %v1655
      %1695 = vst.msk [vmem:[#allocation2 + $0x28] sm:$0xf] %vm1684, %v1657
      %1696 = vst.msk [vmem:[#allocation2 + $0x2c] sm:$0xf] %vm1684, %v1659
      %1697 = vst.msk [vmem:[#allocation2 + $0x30] sm:$0xf] %vm1684, %v1661
      %1698 = vst.msk [vmem:[#allocation2 + $0x34] sm:$0xf] %vm1684, %v1663
      %1699 = vst.msk [vmem:[#allocation2 + $0x38] sm:$0xf] %vm1684, %v1665
      %1700 = vst.msk [vmem:[#allocation2 + $0x3c] sm:$0xf] %vm1684, %v1667
      %v1701 = vld [vmem:[%s1322] sm:$0xe]
      %v1702 = vld [vmem:[%s1322 + $0x4] sm:$0xf]
      %v1703 = vld [vmem:[%s1322 + $0x8] sm:$0x1]
      %v1704 = vld [vmem:[%s1322 + $0xc] sm:$0xe]
      %v1705 = vld [vmem:[%s1322 + $0x10] sm:$0xf]
      %v1706 = vld [vmem:[%s1322 + $0x14] sm:$0x1]
      %v1707 = vld [vmem:[%s1322 + $0x18] sm:$0xe]
      %v1708 = vld [vmem:[%s1322 + $0x1c] sm:$0xf]
      %v1709 = vld [vmem:[%s1322 + $0x20] sm:$0x1]
      %v1710 = vld [vmem:[%s1322 + $0x24] sm:$0xe]
      %v1711 = vld [vmem:[%s1322 + $0x28] sm:$0xf]
      %v1712 = vld [vmem:[%s1322 + $0x2c] sm:$0x1]
      %v1713 = vld [vmem:[%s1322 + $0x30] sm:$0xe]
      %v1714 = vld [vmem:[%s1322 + $0x34] sm:$0xf]
      %v1715 = vld [vmem:[%s1322 + $0x38] sm:$0x1]
      %v1716 = vld [vmem:[%s1322 + $0x3c] sm:$0xe]
      %v1717 = vld [vmem:[%s1322 + $0x40] sm:$0xf]
      %v1718 = vld [vmem:[%s1322 + $0x44] sm:$0x1]
      %v1719 = vld [vmem:[%s1322 + $0x48] sm:$0xe]
      %v1720 = vld [vmem:[%s1322 + $0x4c] sm:$0xf]
      %v1721 = vld [vmem:[%s1322 + $0x50] sm:$0x1]
      %v1722 = vld [vmem:[%s1322 + $0x54] sm:$0xe]
      %v1723 = vld [vmem:[%s1322 + $0x58] sm:$0xf]
      %v1724 = vld [vmem:[%s1322 + $0x5c] sm:$0x1]
      %v1749 = vrot.slane %v1701, 5
      %v1750 = vrot.slane %v1749, 4
      %v1751 = vrot.slane %v1702, 5
      %v1752 = vsel %vm646, %v1750, %v1751
      %v1753 = vrot.slane %v1751, 4
      %v1754 = vrot.slane %v1703, 5
      %v1755 = vsel %vm646, %v1753, %v1754
      %v1756 = vrot.slane %v1704, 5
      %v1757 = vrot.slane %v1756, 4
      %v1758 = vrot.slane %v1705, 5
      %v1759 = vsel %vm646, %v1757, %v1758
      %v1760 = vrot.slane %v1758, 4
      %v1761 = vrot.slane %v1706, 5
      %v1762 = vsel %vm646, %v1760, %v1761
      %v1763 = vrot.slane %v1707, 5
      %v1764 = vrot.slane %v1763, 4
      %v1765 = vrot.slane %v1708, 5
      %v1766 = vsel %vm646, %v1764, %v1765
      %v1767 = vrot.slane %v1765, 4
      %v1768 = vrot.slane %v1709, 5
      %v1769 = vsel %vm646, %v1767, %v1768
      %v1770 = vrot.slane %v1710, 5
      %v1771 = vrot.slane %v1770, 4
      %v1772 = vrot.slane %v1711, 5
      %v1773 = vsel %vm646, %v1771, %v1772
      %v1774 = vrot.slane %v1772, 4
      %v1775 = vrot.slane %v1712, 5
      %v1776 = vsel %vm646, %v1774, %v1775
      %v1777 = vrot.slane %v1713, 5
      %v1778 = vrot.slane %v1777, 4
      %v1779 = vrot.slane %v1714, 5
      %v1780 = vsel %vm646, %v1778, %v1779
      %v1781 = vrot.slane %v1779, 4
      %v1782 = vrot.slane %v1715, 5
      %v1783 = vsel %vm646, %v1781, %v1782
      %v1784 = vrot.slane %v1716, 5
      %v1785 = vrot.slane %v1784, 4
      %v1786 = vrot.slane %v1717, 5
      %v1787 = vsel %vm646, %v1785, %v1786
      %v1788 = vrot.slane %v1786, 4
      %v1789 = vrot.slane %v1718, 5
      %v1790 = vsel %vm646, %v1788, %v1789
      %v1791 = vrot.slane %v1719, 5
      %v1792 = vrot.slane %v1791, 4
      %v1793 = vrot.slane %v1720, 5
      %v1794 = vsel %vm646, %v1792, %v1793
      %v1795 = vrot.slane %v1793, 4
      %v1796 = vrot.slane %v1721, 5
      %v1797 = vsel %vm646, %v1795, %v1796
      %v1798 = vrot.slane %v1722, 5
      %v1799 = vrot.slane %v1798, 4
      %v1800 = vrot.slane %v1723, 5
      %v1801 = vsel %vm646, %v1799, %v1800
      %v1802 = vrot.slane %v1800, 4
      %v1803 = vrot.slane %v1724, 5
      %v1804 = vsel %vm646, %v1802, %v1803
      %1805 = vrot.lane.b32.xlu0 %v1752, 32
      %v1806 = vpop.permute.xlu0 %1805
      %1807 = vrot.lane.b32.xlu0 %v1755, 32
      %v1808 = vpop.permute.xlu0 %1807
      %1809 = vrot.lane.b32.xlu0 %v1759, 32
      %v1810 = vpop.permute.xlu0 %1809
      %1811 = vrot.lane.b32.xlu0 %v1762, 32
      %v1812 = vpop.permute.xlu0 %1811
      %1813 = vrot.lane.b32.xlu0 %v1766, 32
      %v1814 = vpop.permute.xlu0 %1813
      %1815 = vrot.lane.b32.xlu0 %v1769, 32
      %v1816 = vpop.permute.xlu0 %1815
      %1817 = vrot.lane.b32.xlu0 %v1773, 32
      %v1818 = vpop.permute.xlu0 %1817
      %1819 = vrot.lane.b32.xlu0 %v1776, 32
      %v1820 = vpop.permute.xlu0 %1819
      %1821 = vrot.lane.b32.xlu0 %v1780, 32
      %v1822 = vpop.permute.xlu0 %1821
      %1823 = vrot.lane.b32.xlu0 %v1783, 32
      %v1824 = vpop.permute.xlu0 %1823
      %1825 = vrot.lane.b32.xlu0 %v1787, 32
      %v1826 = vpop.permute.xlu0 %1825
      %1827 = vrot.lane.b32.xlu0 %v1790, 32
      %v1828 = vpop.permute.xlu0 %1827
      %1829 = vrot.lane.b32.xlu0 %v1794, 32
      %v1830 = vpop.permute.xlu0 %1829
      %1831 = vrot.lane.b32.xlu0 %v1797, 32
      %v1832 = vpop.permute.xlu0 %1831
      %1833 = vrot.lane.b32.xlu0 %v1801, 32
      %v1834 = vpop.permute.xlu0 %1833
      %1835 = vrot.lane.b32.xlu0 %v1804, 32
      %v1836 = vpop.permute.xlu0 %1835
      %vm1853 = vcmask 290048
      %1854 = vst.msk [vmem:[#allocation2] sm:$0xf] %vm1853, %v1806
      %1855 = vst.msk [vmem:[#allocation2 + $0x4] sm:$0xf] %vm1853, %v1808
      %1856 = vst.msk [vmem:[#allocation2 + $0x8] sm:$0xf] %vm1853, %v1810
      %1857 = vst.msk [vmem:[#allocation2 + $0xc] sm:$0xf] %vm1853, %v1812
      %1858 = vst.msk [vmem:[#allocation2 + $0x10] sm:$0xf] %vm1853, %v1814
      %1859 = vst.msk [vmem:[#allocation2 + $0x14] sm:$0xf] %vm1853, %v1816
      %1860 = vst.msk [vmem:[#allocation2 + $0x18] sm:$0xf] %vm1853, %v1818
      %1861 = vst.msk [vmem:[#allocation2 + $0x1c] sm:$0xf] %vm1853, %v1820
      %1862 = vst.msk [vmem:[#allocation2 + $0x20] sm:$0xf] %vm1853, %v1822
      %1863 = vst.msk [vmem:[#allocation2 + $0x24] sm:$0xf] %vm1853, %v1824
      %1864 = vst.msk [vmem:[#allocation2 + $0x28] sm:$0xf] %vm1853, %v1826
      %1865 = vst.msk [vmem:[#allocation2 + $0x2c] sm:$0xf] %vm1853, %v1828
      %1866 = vst.msk [vmem:[#allocation2 + $0x30] sm:$0xf] %vm1853, %v1830
      %1867 = vst.msk [vmem:[#allocation2 + $0x34] sm:$0xf] %vm1853, %v1832
      %1868 = vst.msk [vmem:[#allocation2 + $0x38] sm:$0xf] %vm1853, %v1834
      %1869 = vst.msk [vmem:[#allocation2 + $0x3c] sm:$0xf] %vm1853, %v1836
      %v1870 = vld [vmem:[#allocation2] sm:$0xf]
      %v1871 = vld [vmem:[#allocation2 + $0x4] sm:$0xf]
      %v1872 = vld [vmem:[#allocation2 + $0x8] sm:$0xf]
      %v1873 = vld [vmem:[#allocation2 + $0xc] sm:$0xf]
      %v1874 = vld [vmem:[#allocation2 + $0x10] sm:$0xf]
      %v1875 = vld [vmem:[#allocation2 + $0x14] sm:$0xf]
      %v1876 = vld [vmem:[#allocation2 + $0x18] sm:$0xf]
      %v1877 = vld [vmem:[#allocation2 + $0x1c] sm:$0xf]
      %v1878 = vld [vmem:[#allocation2 + $0x20] sm:$0xf]
      %v1879 = vld [vmem:[#allocation2 + $0x24] sm:$0xf]
      %v1880 = vld [vmem:[#allocation2 + $0x28] sm:$0xf]
      %v1881 = vld [vmem:[#allocation2 + $0x2c] sm:$0xf]
      %v1882 = vld [vmem:[#allocation2 + $0x30] sm:$0xf]
      %v1883 = vld [vmem:[#allocation2 + $0x34] sm:$0xf]
      %v1884 = vld [vmem:[#allocation2 + $0x38] sm:$0xf]
      %v1885 = vld [vmem:[#allocation2 + $0x3c] sm:$0xf]
      %v1886 = vld [vmem:[%s1] sm:$0xf]
      %v1887 = vld [vmem:[%s1 + $0x4] sm:$0xf]
      %v1888 = vld [vmem:[%s1 + $0x8] sm:$0xf]
      %v1889 = vld [vmem:[%s1 + $0xc] sm:$0xf]
      %v1890 = vld [vmem:[%s1 + $0x10] sm:$0xf]
      %v1891 = vld [vmem:[%s1 + $0x14] sm:$0xf]
      %v1892 = vld [vmem:[%s1 + $0x18] sm:$0xf]
      %v1893 = vld [vmem:[%s1 + $0x1c] sm:$0xf]
      %v1894 = vld [vmem:[%s1 + $0x20] sm:$0xf]
      %v1895 = vld [vmem:[%s1 + $0x24] sm:$0xf]
      %v1896 = vld [vmem:[%s1 + $0x28] sm:$0xf]
      %v1897 = vld [vmem:[%s1 + $0x2c] sm:$0xf]
      %v1898 = vld [vmem:[%s1 + $0x30] sm:$0xf]
      %v1899 = vld [vmem:[%s1 + $0x34] sm:$0xf]
      %v1900 = vld [vmem:[%s1 + $0x38] sm:$0xf]
      %v1901 = vld [vmem:[%s1 + $0x3c] sm:$0xf]
      %v1918 = vunpack.c.l.b16 %v1870
      %v1919 = vunpack.c.l.b16 %v1871
      %v1920 = vunpack.c.l.b16 %v1872
      %v1921 = vunpack.c.l.b16 %v1873
      %v1922 = vunpack.c.l.b16 %v1874
      %v1923 = vunpack.c.l.b16 %v1875
      %v1924 = vunpack.c.l.b16 %v1876
      %v1925 = vunpack.c.l.b16 %v1877
      %v1926 = vunpack.c.l.b16 %v1878
      %v1927 = vunpack.c.l.b16 %v1879
      %v1928 = vunpack.c.l.b16 %v1880
      %v1929 = vunpack.c.l.b16 %v1881
      %v1930 = vunpack.c.l.b16 %v1882
      %v1931 = vunpack.c.l.b16 %v1883
      %v1932 = vunpack.c.l.b16 %v1884
      %v1933 = vunpack.c.l.b16 %v1885
      %v1934 = vpack.c.b16 %v1919, %v1918
      %v1935 = vpack.c.b16 %v1921, %v1920
      %v1936 = vpack.c.b16 %v1923, %v1922
      %v1937 = vpack.c.b16 %v1925, %v1924
      %v1938 = vpack.c.b16 %v1927, %v1926
      %v1939 = vpack.c.b16 %v1929, %v1928
      %v1940 = vpack.c.b16 %v1931, %v1930
      %v1941 = vpack.c.b16 %v1933, %v1932
      %v1966 = vunpack.c.l.b16 %v1886
      %v1967 = vunpack.c.l.b16 %v1887
      %v1968 = vunpack.c.l.b16 %v1888
      %v1969 = vunpack.c.l.b16 %v1889
      %v1970 = vunpack.c.l.b16 %v1890
      %v1971 = vunpack.c.l.b16 %v1891
      %v1972 = vunpack.c.l.b16 %v1892
      %v1973 = vunpack.c.l.b16 %v1893
      %v1974 = vunpack.c.l.b16 %v1894
      %v1975 = vunpack.c.l.b16 %v1895
      %v1976 = vunpack.c.l.b16 %v1896
      %v1977 = vunpack.c.l.b16 %v1897
      %v1978 = vunpack.c.l.b16 %v1898
      %v1979 = vunpack.c.l.b16 %v1899
      %v1980 = vunpack.c.l.b16 %v1900
      %v1981 = vunpack.c.l.b16 %v1901
      %v1982 = vpack.c.b16 %v1967, %v1966
      %v1983 = vpack.c.b16 %v1969, %v1968
      %v1984 = vpack.c.b16 %v1971, %v1970
      %v1985 = vpack.c.b16 %v1973, %v1972
      %v1986 = vpack.c.b16 %v1975, %v1974
      %v1987 = vpack.c.b16 %v1977, %v1976
      %v1988 = vpack.c.b16 %v1979, %v1978
      %v1989 = vpack.c.b16 %v1981, %v1980
      %1998 = vmatpush.bf16.msra.mxu0 %v1989
      %1999 = vmatpush.bf16.msra.mxu0 %v1988
      %2000 = vmatpush.bf16.msra.mxu0 %v1987
      %2001 = vmatpush.bf16.msra.mxu0 %v1986
      %2002 = vmatpush.bf16.msra.mxu0 %v1985
      %2003 = vmatpush.bf16.msra.mxu0 %v1984
      %2004 = vmatpush.bf16.msra.mxu0 %v1983
      %2005 = vmatpush.bf16.msra.mxu0 %v1982
      %2006 = vmatmul.bf16.gmra.mxu0 %v1934
      %v2007 = vpop.f32.mrf.mxu0
      %v2008 = vadd.f32 0.0, %v2007
      %v2009 = vpop.f32.mrf.mxu0
      %v2010 = vadd.f32 0.0, %v2009
      %2011 = vmatmul.bf16.gmra.mxu0 %v1935
      %v2012 = vpop.f32.mrf.mxu0
      %v2013 = vadd.f32 0.0, %v2012
      %v2014 = vpop.f32.mrf.mxu0
      %v2015 = vadd.f32 0.0, %v2014
      %2016 = vmatmul.bf16.gmra.mxu0 %v1936
      %v2017 = vpop.f32.mrf.mxu0
      %v2018 = vadd.f32 0.0, %v2017
      %v2019 = vpop.f32.mrf.mxu0
      %v2020 = vadd.f32 0.0, %v2019
      %2021 = vmatmul.bf16.gmra.mxu0 %v1937
      %v2022 = vpop.f32.mrf.mxu0
      %v2023 = vadd.f32 0.0, %v2022
      %v2024 = vpop.f32.mrf.mxu0
      %v2025 = vadd.f32 0.0, %v2024
      %2026 = vmatmul.bf16.gmra.mxu0 %v1938
      %v2027 = vpop.f32.mrf.mxu0
      %v2028 = vadd.f32 0.0, %v2027
      %v2029 = vpop.f32.mrf.mxu0
      %v2030 = vadd.f32 0.0, %v2029
      %2031 = vmatmul.bf16.gmra.mxu0 %v1939
      %v2032 = vpop.f32.mrf.mxu0
      %v2033 = vadd.f32 0.0, %v2032
      %v2034 = vpop.f32.mrf.mxu0
      %v2035 = vadd.f32 0.0, %v2034
      %2036 = vmatmul.bf16.gmra.mxu0 %v1940
      %v2037 = vpop.f32.mrf.mxu0
      %v2038 = vadd.f32 0.0, %v2037
      %v2039 = vpop.f32.mrf.mxu0
      %v2040 = vadd.f32 0.0, %v2039
      %2041 = vmatmul.bf16.gmra.mxu0 %v1941
      %v2042 = vpop.f32.mrf.mxu0
      %v2043 = vadd.f32 0.0, %v2042
      %v2044 = vpop.f32.mrf.mxu0
      %v2045 = vadd.f32 0.0, %v2044
      %2046 = vdwg.mxu0
      %2047 = vst [vmem:[#allocation3] sm:$0xff] %v2008
      %2048 = vst [vmem:[#allocation3 + $0x8] sm:$0xff] %v2010
      %2049 = vst [vmem:[#allocation3 + $0x10] sm:$0xff] %v2013
      %2050 = vst [vmem:[#allocation3 + $0x18] sm:$0xff] %v2015
      %2051 = vst [vmem:[#allocation3 + $0x20] sm:$0xff] %v2018
      %2052 = vst [vmem:[#allocation3 + $0x28] sm:$0xff] %v2020
      %2053 = vst [vmem:[#allocation3 + $0x30] sm:$0xff] %v2023
      %2054 = vst [vmem:[#allocation3 + $0x38] sm:$0xff] %v2025
      %2055 = vst [vmem:[#allocation3 + $0x40] sm:$0xff] %v2028
      %2056 = vst [vmem:[#allocation3 + $0x48] sm:$0xff] %v2030
      %2057 = vst [vmem:[#allocation3 + $0x50] sm:$0xff] %v2033
      %2058 = vst [vmem:[#allocation3 + $0x58] sm:$0xff] %v2035
      %2059 = vst [vmem:[#allocation3 + $0x60] sm:$0xff] %v2038
      %2060 = vst [vmem:[#allocation3 + $0x68] sm:$0xff] %v2040
      %2061 = vst [vmem:[#allocation3 + $0x70] sm:$0xff] %v2043
      %2062 = vst [vmem:[#allocation3 + $0x78] sm:$0xff] %v2045
      %v2063 = vld [vmem:[#allocation3] sm:$0xff]
      %v2064 = vld [vmem:[#allocation3 + $0x8] sm:$0xff]
      %v2065 = vld [vmem:[#allocation3 + $0x10] sm:$0xff]
      %v2066 = vld [vmem:[#allocation3 + $0x18] sm:$0xff]
      %v2067 = vld [vmem:[#allocation3 + $0x20] sm:$0xff]
      %v2068 = vld [vmem:[#allocation3 + $0x28] sm:$0xff]
      %v2069 = vld [vmem:[#allocation3 + $0x30] sm:$0xff]
      %v2070 = vld [vmem:[#allocation3 + $0x38] sm:$0xff]
      %v2071 = vld [vmem:[#allocation3 + $0x40] sm:$0xff]
      %v2072 = vld [vmem:[#allocation3 + $0x48] sm:$0xff]
      %v2073 = vld [vmem:[#allocation3 + $0x50] sm:$0xff]
      %v2074 = vld [vmem:[#allocation3 + $0x58] sm:$0xff]
      %v2075 = vld [vmem:[#allocation3 + $0x60] sm:$0xff]
      %v2076 = vld [vmem:[#allocation3 + $0x68] sm:$0xff]
      %v2077 = vld [vmem:[#allocation3 + $0x70] sm:$0xff]
      %v2078 = vld [vmem:[#allocation3 + $0x78] sm:$0xff]
      %v2079 = vpack.c.bf16 %v2063, %v2063
      %v2080 = vpack.c.bf16 %v2064, %v2064
      %v2081 = vpack.c.bf16 %v2065, %v2065
      %v2082 = vpack.c.bf16 %v2066, %v2066
      %v2083 = vpack.c.bf16 %v2067, %v2067
      %v2084 = vpack.c.bf16 %v2068, %v2068
      %v2085 = vpack.c.bf16 %v2069, %v2069
      %v2086 = vpack.c.bf16 %v2070, %v2070
      %v2087 = vpack.c.bf16 %v2071, %v2071
      %v2088 = vpack.c.bf16 %v2072, %v2072
      %v2089 = vpack.c.bf16 %v2073, %v2073
      %v2090 = vpack.c.bf16 %v2074, %v2074
      %v2091 = vpack.c.bf16 %v2075, %v2075
      %v2092 = vpack.c.bf16 %v2076, %v2076
      %v2093 = vpack.c.bf16 %v2077, %v2077
      %v2094 = vpack.c.bf16 %v2078, %v2078
      %2095 = vst.msk [vmem:[%s242] sm:$0xf] %vm295, %v2079
      %2096 = vst.msk [vmem:[%s242 + $0x4] sm:$0xf] %vm295, %v2080
      %2097 = vst.msk [vmem:[%s242 + $0x8] sm:$0xf] %vm295, %v2081
      %2098 = vst.msk [vmem:[%s242 + $0xc] sm:$0xf] %vm295, %v2082
      %2099 = vst.msk [vmem:[%s242 + $0x10] sm:$0xf] %vm295, %v2083
      %2100 = vst.msk [vmem:[%s242 + $0x14] sm:$0xf] %vm295, %v2084
      %2101 = vst.msk [vmem:[%s242 + $0x18] sm:$0xf] %vm295, %v2085
      %2102 = vst.msk [vmem:[%s242 + $0x1c] sm:$0xf] %vm295, %v2086
      %2103 = vst.msk [vmem:[%s242 + $0x20] sm:$0xf] %vm295, %v2087
      %2104 = vst.msk [vmem:[%s242 + $0x24] sm:$0xf] %vm295, %v2088
      %2105 = vst.msk [vmem:[%s242 + $0x28] sm:$0xf] %vm295, %v2089
      %2106 = vst.msk [vmem:[%s242 + $0x2c] sm:$0xf] %vm295, %v2090
      %2107 = vst.msk [vmem:[%s242 + $0x30] sm:$0xf] %vm295, %v2091
      %2108 = vst.msk [vmem:[%s242 + $0x34] sm:$0xf] %vm295, %v2092
      %2109 = vst.msk [vmem:[%s242 + $0x38] sm:$0xf] %vm295, %v2093
      %2110 = vst.msk [vmem:[%s242 + $0x3c] sm:$0xf] %vm295, %v2094
      %v2111 = vld [vmem:[#allocation3] sm:$0xff]
      %v2112 = vld [vmem:[#allocation3 + $0x8] sm:$0xff]
      %v2113 = vld [vmem:[#allocation3 + $0x10] sm:$0xff]
      %v2114 = vld [vmem:[#allocation3 + $0x18] sm:$0xff]
      %vm2115 = vcmask 31744
      %v2116 = vsel %vm2115, %v2111, 0.0
      %v2117 = vsel %vm2115, %v2112, 0.0
      %v2118 = vadd.f32 %v2116, %v2117
      %v2119 = vsel %vm2115, %v2113, 0.0
      %v2120 = vadd.f32 %v2118, %v2119
      %v2121 = vsel %vm2115, %v2114, 0.0
      %v2122 = vadd.f32 %v2120, %v2121
      %v2123 = vrot.slane %v2122, 4
      %v2124 = vadd.f32 %v2122, %v2123
      %v2125 = vrot.slane %v2124, 2
      %v2126 = vadd.f32 %v2124, %v2125
      %v2127 = vrot.slane %v2126, 1
      %v2128 = vadd.f32 %v2126, %v2127
      %v2129 = vadd.f32 %v2128, 0.0
      %v2130 = vmul.f32 %v2111, %v2111
      %v2131 = vmul.f32 %v2112, %v2112
      %v2132 = vmul.f32 %v2113, %v2113
      %v2133 = vmul.f32 %v2114, %v2114
      %v2134 = vsel %vm2115, %v2130, 0.0
      %v2135 = vsel %vm2115, %v2131, 0.0
      %v2136 = vadd.f32 %v2134, %v2135
      %v2137 = vsel %vm2115, %v2132, 0.0
      %v2138 = vadd.f32 %v2136, %v2137
      %v2139 = vsel %vm2115, %v2133, 0.0
      %v2140 = vadd.f32 %v2138, %v2139
      %v2141 = vrot.slane %v2140, 4
      %v2142 = vadd.f32 %v2140, %v2141
      %v2143 = vrot.slane %v2142, 2
      %v2144 = vadd.f32 %v2142, %v2143
      %v2145 = vrot.slane %v2144, 1
      %v2146 = vadd.f32 %v2144, %v2145
      %v2147 = vadd.f32 %v2146, 0.0
      %v2148 = vld [vmem:[#allocation3 + $0x20] sm:$0xff]
      %v2149 = vld [vmem:[#allocation3 + $0x28] sm:$0xff]
      %v2150 = vld [vmem:[#allocation3 + $0x30] sm:$0xff]
      %v2151 = vld [vmem:[#allocation3 + $0x38] sm:$0xff]
      %v2152 = vsel %vm2115, %v2148, 0.0
      %v2153 = vsel %vm2115, %v2149, 0.0
      %v2154 = vadd.f32 %v2152, %v2153
      %v2155 = vsel %vm2115, %v2150, 0.0
      %v2156 = vadd.f32 %v2154, %v2155
      %v2157 = vsel %vm2115, %v2151, 0.0
      %v2158 = vadd.f32 %v2156, %v2157
      %v2159 = vrot.slane %v2158, 4
      %v2160 = vadd.f32 %v2158, %v2159
      %v2161 = vrot.slane %v2160, 2
      %v2162 = vadd.f32 %v2160, %v2161
      %v2163 = vrot.slane %v2162, 1
      %v2164 = vadd.f32 %v2162, %v2163
      %v2165 = vadd.f32 %v2129, %v2164
      %v2166 = vmul.f32 %v2148, %v2148
      %v2167 = vmul.f32 %v2149, %v2149
      %v2168 = vmul.f32 %v2150, %v2150
      %v2169 = vmul.f32 %v2151, %v2151
      %v2170 = vsel %vm2115, %v2166, 0.0
      %v2171 = vsel %vm2115, %v2167, 0.0
      %v2172 = vadd.f32 %v2170, %v2171
      %v2173 = vsel %vm2115, %v2168, 0.0
      %v2174 = vadd.f32 %v2172, %v2173
      %v2175 = vsel %vm2115, %v2169, 0.0
      %v2176 = vadd.f32 %v2174, %v2175
      %v2177 = vrot.slane %v2176, 4
      %v2178 = vadd.f32 %v2176, %v2177
      %v2179 = vrot.slane %v2178, 2
      %v2180 = vadd.f32 %v2178, %v2179
      %v2181 = vrot.slane %v2180, 1
      %v2182 = vadd.f32 %v2180, %v2181
      %v2183 = vadd.f32 %v2147, %v2182
      %v2184 = vld [vmem:[#allocation3 + $0x40] sm:$0xff]
      %v2185 = vld [vmem:[#allocation3 + $0x48] sm:$0xff]
      %v2186 = vld [vmem:[#allocation3 + $0x50] sm:$0xff]
      %v2187 = vld [vmem:[#allocation3 + $0x58] sm:$0xff]
      %v2188 = vsel %vm2115, %v2184, 0.0
      %v2189 = vsel %vm2115, %v2185, 0.0
      %v2190 = vadd.f32 %v2188, %v2189
      %v2191 = vsel %vm2115, %v2186, 0.0
      %v2192 = vadd.f32 %v2190, %v2191
      %v2193 = vsel %vm2115, %v2187, 0.0
      %v2194 = vadd.f32 %v2192, %v2193
      %v2195 = vrot.slane %v2194, 4
      %v2196 = vadd.f32 %v2194, %v2195
      %v2197 = vrot.slane %v2196, 2
      %v2198 = vadd.f32 %v2196, %v2197
      %v2199 = vrot.slane %v2198, 1
      %v2200 = vadd.f32 %v2198, %v2199
      %v2201 = vadd.f32 %v2165, %v2200
      %v2202 = vmul.f32 %v2184, %v2184
      %v2203 = vmul.f32 %v2185, %v2185
      %v2204 = vmul.f32 %v2186, %v2186
      %v2205 = vmul.f32 %v2187, %v2187
      %v2206 = vsel %vm2115, %v2202, 0.0
      %v2207 = vsel %vm2115, %v2203, 0.0
      %v2208 = vadd.f32 %v2206, %v2207
      %v2209 = vsel %vm2115, %v2204, 0.0
      %v2210 = vadd.f32 %v2208, %v2209
      %v2211 = vsel %vm2115, %v2205, 0.0
      %v2212 = vadd.f32 %v2210, %v2211
      %v2213 = vrot.slane %v2212, 4
      %v2214 = vadd.f32 %v2212, %v2213
      %v2215 = vrot.slane %v2214, 2
      %v2216 = vadd.f32 %v2214, %v2215
      %v2217 = vrot.slane %v2216, 1
      %v2218 = vadd.f32 %v2216, %v2217
      %v2219 = vadd.f32 %v2183, %v2218
      %v2220 = vld [vmem:[#allocation3 + $0x60] sm:$0xff]
      %v2221 = vld [vmem:[#allocation3 + $0x68] sm:$0xff]
      %v2222 = vld [vmem:[#allocation3 + $0x70] sm:$0xff]
      %v2223 = vld [vmem:[#allocation3 + $0x78] sm:$0xff]
      %v2224 = vsel %vm2115, %v2220, 0.0
      %v2225 = vsel %vm2115, %v2221, 0.0
      %v2226 = vadd.f32 %v2224, %v2225
      %v2227 = vsel %vm2115, %v2222, 0.0
      %v2228 = vadd.f32 %v2226, %v2227
      %v2229 = vsel %vm2115, %v2223, 0.0
      %v2230 = vadd.f32 %v2228, %v2229
      %v2231 = vrot.slane %v2230, 4
      %v2232 = vadd.f32 %v2230, %v2231
      %v2233 = vrot.slane %v2232, 2
      %v2234 = vadd.f32 %v2232, %v2233
      %v2235 = vrot.slane %v2234, 1
      %v2236 = vadd.f32 %v2234, %v2235
      %v2237 = vadd.f32 %v2201, %v2236
      %v2238 = vmul.f32 %v2220, %v2220
      %v2239 = vmul.f32 %v2221, %v2221
      %v2240 = vmul.f32 %v2222, %v2222
      %v2241 = vmul.f32 %v2223, %v2223
      %v2242 = vsel %vm2115, %v2238, 0.0
      %v2243 = vsel %vm2115, %v2239, 0.0
      %v2244 = vadd.f32 %v2242, %v2243
      %v2245 = vsel %vm2115, %v2240, 0.0
      %v2246 = vadd.f32 %v2244, %v2245
      %v2247 = vsel %vm2115, %v2241, 0.0
      %v2248 = vadd.f32 %v2246, %v2247
      %v2249 = vrot.slane %v2248, 4
      %v2250 = vadd.f32 %v2248, %v2249
      %v2251 = vrot.slane %v2250, 2
      %v2252 = vadd.f32 %v2250, %v2251
      %v2253 = vrot.slane %v2252, 1
      %v2254 = vadd.f32 %v2252, %v2253
      %v2255 = vadd.f32 %v2219, %v2254
      %vm2256 = vcmask 24576
      %2257 = vst.msk [vmem:[%s250] sm:$0x1] %vm2256, %v2237
      %2258 = vst.msk [vmem:[%s257] sm:$0x1] %vm2256, %v2255
      %s2259 = smul.u32 16, %s21
      %p2260 = scmp.lt.s32.totalorder %s20, 1
      %s2261 = scalar_select %p2260, %s20, 1
      %p2262 = scmp.lt.s32.totalorder %s2259, 31
      %s2263 = scalar_select %p2262, %s2259, 31
      %s2264 = smul.addr %s2261, 32
      %s2265 = sadd.s32 %s2263, %s2264
      %s2266 = smul.addr %s2265, 4
      %s2267 = scalar_lea.vmem %s2, %s2266
      %p2268 = scmp.lt.s32.totalorder %s20, 1
      %s2269 = scalar_select %p2268, %s20, 1
      %p2270 = scmp.lt.s32.totalorder %s21, 1
      %s2271 = scalar_select %p2270, %s21, 1
      %s2272 = smul.addr %s2269, 2
      %s2273 = sadd.s32 %s2271, %s2272
      %s2274 = scalar_lea.vmem %s3, %s2273
      %p2275 = scmp.lt.s32.totalorder %s20, 1
      %s2276 = scalar_select %p2275, %s20, 1
      %p2277 = scmp.lt.s32.totalorder %s21, 1
      %s2278 = scalar_select %p2277, %s21, 1
      %s2279 = smul.addr %s2276, 2
      %s2280 = sadd.s32 %s2278, %s2279
      %s2281 = scalar_lea.vmem %s4, %s2280
      // Predicated region
      $region29: #{basic_block_forward.3} parent=27 // pred_check
        %p2282 = pneg %p95
      $region30: #{basic_block_forward.3} parent=27 // pred_check_branch
        %2284 = sbr.rel (%p2282) target = $region32
      $region31: #{basic_block_forward.3} parent=27 // pred_region
        %s2285 = smul.u32 16, %s21
      $region32: #{basic_block_forward.3} parent=27 // pred_fallthru
        _
      // Predicated region
      $region33: #{basic_block_forward.3} parent=27 // pred_check
        %p2286 = pneg %p123
      $region34: #{basic_block_forward.3} parent=27 // pred_check_branch
        %2288 = sbr.rel (%p2286) target = $region36
      $region35: #{basic_block_forward.3} parent=27 // pred_region
        _
      $region36: #{basic_block_forward.3} parent=27 // pred_fallthru
        _
      // Predicated region
      $region37: #{basic_block_forward.3} parent=27 // pred_check
        %p2289 = pneg %p151
      $region38: #{basic_block_forward.3} parent=27 // pred_check_branch
        %2291 = sbr.rel (%p2289) target = $region40
      $region39: #{basic_block_forward.3} parent=27 // pred_region
        _
      $region40: #{basic_block_forward.3} parent=27 // pred_fallthru
        _
    $region28: #{basic_block_forward.3} parent=5 // pred_fallthru
      _
    %p2292 = scmp.le.s32.totalorder 2, %s11
    // Predicated region
    $region41: #{basic_block_forward.3} parent=5 // pred_check
      %p2293 = pneg %p2292
    $region42: #{basic_block_forward.3} parent=5 // pred_check_branch
      %2295 = sbr.rel (%p2293) target = $region44
    $region43: #{basic_block_forward.3} parent=5 // pred_region
      %s2296 = ssub.s32 %s11, 2
      // Predicated region
      $region45: #{basic_block_forward.3} parent=43 // pred_check
        %p2297 = pneg %p101
      $region46: #{basic_block_forward.3} parent=43 // pred_check_branch
        %2299 = sbr.rel (%p2297) target = $region48
      $region47: #{basic_block_forward.3} parent=43 // pred_region
        %s2300 = smul.u32 16, %s23
        %p2301 = scmp.lt.s32.totalorder %s22, 1
        %s2302 = scalar_select %p2301, %s22, 1
        %p2303 = scmp.lt.s32.totalorder %s2300, 31
        %s2304 = scalar_select %p2303, %s2300, 31
        %s2305 = smul.addr %s2302, 32
        %s2306 = sadd.s32 %s2304, %s2305
        %s2307 = smul.addr %s2306, 4
        %s2308 = scalar_lea.vmem %s2, %s2307
      $region48: #{basic_block_forward.3} parent=43 // pred_fallthru
        _
      // Predicated region
      $region49: #{basic_block_forward.3} parent=43 // pred_check
        %p2309 = pneg %p129
      $region50: #{basic_block_forward.3} parent=43 // pred_check_branch
        %2311 = sbr.rel (%p2309) target = $region52
      $region51: #{basic_block_forward.3} parent=43 // pred_region
        %p2312 = scmp.lt.s32.totalorder %s22, 1
        %s2313 = scalar_select %p2312, %s22, 1
        %p2314 = scmp.lt.s32.totalorder %s23, 1
        %s2315 = scalar_select %p2314, %s23, 1
        %s2316 = smul.addr %s2313, 2
        %s2317 = sadd.s32 %s2315, %s2316
        %s2318 = scalar_lea.vmem %s3, %s2317
      $region52: #{basic_block_forward.3} parent=43 // pred_fallthru
        _
      // Predicated region
      $region53: #{basic_block_forward.3} parent=43 // pred_check
        %p2319 = pneg %p157
      $region54: #{basic_block_forward.3} parent=43 // pred_check_branch
        %2321 = sbr.rel (%p2319) target = $region56
      $region55: #{basic_block_forward.3} parent=43 // pred_region
        %p2322 = scmp.lt.s32.totalorder %s22, 1
        %s2323 = scalar_select %p2322, %s22, 1
        %p2324 = scmp.lt.s32.totalorder %s23, 1
        %s2325 = scalar_select %p2324, %s23, 1
        %s2326 = smul.addr %s2323, 2
        %s2327 = sadd.s32 %s2325, %s2326
        %s2328 = scalar_lea.vmem %s4, %s2327
      $region56: #{basic_block_forward.3} parent=43 // pred_fallthru
        _
    $region44: #{basic_block_forward.3} parent=5 // pred_fallthru
      _
  $region6: #{basic_block_forward.3} parent=0 // loop_footer
    %s15 = sadd.s32 1, %s11
  $region7: #{basic_block_forward.3} parent=0 // loop_footer_branch
    %10 = sbr.rel target = $region3
  $region8: #{basic_block_forward.3} parent=0 // loop_exit
    _

</llo_original>
